<compile_context>
chip_gen: v7x
topology: tpu7x:2x2x1
jax: 0.10.0
libtpu: 0.0.40
codegen_flags: <defaults>
</compile_context>

<pallas_src>
import jax
import jax.numpy as jnp
from jax import lax
from jax.experimental import pallas as pl
from jax.experimental.pallas import tpu as pltpu

KERNEL_SIZE = 7
PAD = KERNEL_SIZE // 2
_C_CHUNK = 8          # channels reduced per unrolled step inside one C tile


def _round_up(x, m):
    return ((x + m - 1) // m) * m


def _choose_blocks(n, c, hw, itemsize, target_bytes):
    """Pick (batch_block, channel_block) from a bytes-per-grid-step budget."""
    per_batch = c * hw * itemsize
    # Batch block: amortize grid-step overhead with big DMAs, keep >= 2 batch
    # steps (two v7x TensorCores), keep Nb a divisor of N (no padded copy of
    # x), and cap it so the finalize accumulator stays register resident.
    nb = max(1, min(n, target_bytes // max(min(per_batch, 256 << 10), 1)))
    if n >= 2:
        nb = max(1, min(nb, n // 2))
    nb = min(nb, 32)
    while n % nb:
        nb -= 1
    # Channel block: tile the reduction axis when a full-C block would be big
    # (keeps the double-buffered input block a few MiB -> safe on v7x VMEM).
    if c <= 8 or nb * per_batch <= 2 * target_bytes:
        cb = c
    else:
        divisors = [d for d in range(8, c, 8) if c % d == 0]
        fitting = [d for d in divisors
                   if nb * d * hw * itemsize <= 2 * target_bytes]
        if fitting:
            cb = max(fitting)
        elif divisors:
            cb = min(divisors)
        else:
            cb = c            # no clean multiple-of-8 divisor; full-C block
    return nb, cb


def spatial_attention(x, weight, bias, *, batch_block=None, channel_block=None,
                      target_block_bytes=1 << 20):
    """CBAM SpatialAttention forward.

    x: (N, C, H, W); weight: (1, 2, K, K) in OIHW order; bias: (1,).
    Returns the (N, 1, H, W) attention map: sigmoid(conv7x7(cat[max_c, mean_c])).
    """
    N, C, H, W = x.shape
    K = KERNEL_SIZE
    HW = H * W
    itemsize = x.dtype.itemsize

    Nb, Cb = _choose_blocks(N, C, HW, itemsize, target_block_bytes)
    if batch_block is not None:
        Nb = batch_block
    if channel_block is not None:
        Cb = channel_block
    assert N % Nb == 0, (N, Nb)
    assert C % Cb == 0 and (Cb == C or Cb % 8 == 0), (C, Cb)
    G, CT = N // Nb, C // Cb

    # Flat zero-halo conv geometry: each batch element's padded map is a 1-D
    # lane strip with row stride W_slot, so every 7x7 tap is the static lane
    # offset dy*W_slot + dx of the same strip (no pad / reshape in the kernel).
    W_slot = W + 2 * PAD
    L_acc = _round_up((H - 1) * W_slot + W, 128)            # conv output lanes
    flatp = _round_up(max(L_acc + (K - 1) * (W_slot + 1),
                          (H + 2 * PAD) * W_slot), 128)     # halo-strip lanes

    x2 = x.reshape(N, C, HW)                                # free row-major reshape
    w_flat = weight.reshape(-1).astype(jnp.float32)         # (2*K*K,), OIHW
    b_flat = bias.reshape(-1).astype(jnp.float32)           # (1,)
    inv_c = 1.0 / C

    def kernel(w_ref, b_ref, x_ref, o_ref, mx_ref, sm_ref, pmap_ref):
        c_step = pl.program_id(1)

        # ---- fused single pass over this C tile: running max + f32 sum ----
        run_max = None
        run_sum = None
        for c0 in range(0, Cb, _C_CHUNK):
            ce = min(c0 + _C_CHUNK, Cb)
            sub = x_ref[:, c0:ce, :]                         # (Nb, <=8, HW)
            m = jnp.max(sub, axis=1)
            s = jnp.sum(sub.astype(jnp.float32), axis=1)
            run_max = m if run_max is None else jnp.maximum(run_max, m)
            run_sum = s if run_sum is None else run_sum + s
        run_max = run_max.astype(jnp.float32)

        @pl.when(c_step == 0)
        def _():
            mx_ref[...] = run_max
            sm_ref[...] = run_sum

        @pl.when(c_step > 0)
        def _():
            mx_ref[...] = jnp.maximum(mx_ref[...], run_max)
            sm_ref[...] = sm_ref[...] + run_sum

        # ---- last C step: pack zero-halo strips, 7x7 conv, sigmoid, store ----
        @pl.when(c_step == CT - 1)
        def _():
            mx = mx_ref[...]                                 # (Nb, HW) f32
            av = sm_ref[...] * inv_c                         # (Nb, HW) f32

            # Re-zero the halo scratch once per batch block (cheap, and correct
            # however the "parallel" axis is split across cores), then drop each
            # map row into its padded strip position: 2*H small stores total.
            pmap_ref[...] = jnp.zeros(pmap_ref.shape, jnp.float32)
            for h in range(H):
                off = (PAD + h) * W_slot + PAD
                pmap_ref[0, :, off:off + W] = mx[:, h * W:(h + 1) * W]
                pmap_ref[1, :, off:off + W] = av[:, h * W:(h + 1) * W]

            # 7x7 conv on the VPU: 98 taps, each a static lane-offset slice of
            # the flat strips; f32 accumulation; lane-dense (L_acc % 128 == 0).
            acc = jnp.full((Nb, L_acc), b_ref[0], dtype=jnp.float32)
            for ci in range(2):                              # 0 = max, 1 = mean
                wbase = ci * K * K
                for dy in range(K):
                    for dx in range(K):
                        shift = dy * W_slot + dx
                        tap = pmap_ref[ci, :, shift:shift + L_acc]
                        acc = acc + tap * w_ref[wbase + dy * K + dx]

            o_ref[...] = jax.nn.sigmoid(acc).astype(o_ref.dtype)

    # VMEM budget from the actual buffer sizes (double-buffered in/out blocks
    # plus scratch), with headroom; never below the 32 MiB scoped default.
    in_block = Nb * Cb * HW * itemsize
    out_block = Nb * L_acc * itemsize
    scratch_bytes = (2 * Nb * HW + 2 * Nb * flatp) * 4
    vmem_limit = int(min(100 << 20,
                         max(32 << 20,
                             4 * (in_block + out_block) + scratch_bytes + (2 << 20))))

    out_slab = pl.pallas_call(
        kernel,
        out_shape=jax.ShapeDtypeStruct((G, Nb, L_acc), x.dtype),
        grid=(G, CT),
        in_specs=[
            pl.BlockSpec(memory_space=pltpu.MemorySpace.SMEM),    # conv weights
            pl.BlockSpec(memory_space=pltpu.MemorySpace.SMEM),    # conv bias
            pl.BlockSpec((Nb, Cb, HW), lambda g, c: (g, c, 0)),   # lane-dense x
        ],
        out_specs=pl.BlockSpec((None, Nb, L_acc), lambda g, c: (g, 0, 0)),
        scratch_shapes=[
            pltpu.VMEM((Nb, HW), jnp.float32),        # running channel max
            pltpu.VMEM((Nb, HW), jnp.float32),        # running channel sum (f32)
            pltpu.VMEM((2, Nb, flatp), jnp.float32),  # zero-halo flat map strips
        ],
        compiler_params=pltpu.CompilerParams(
            dimension_semantics=("parallel", "arbitrary"),
            vmem_limit_bytes=vmem_limit),
    )(w_flat, b_flat, x2)

    # Unpack the flat strips -> (N, 1, H, W): one small slice/copy, no transpose.
    out = out_slab.reshape(N, L_acc)[:, :H * W_slot]
    out = out.reshape(N, H, W_slot)[:, :, :W]
    return out[:, None, :, :]


def spatial_attention_reference(x, weight, bias):
    mx = jnp.max(x, axis=1, keepdims=True)
    av = jnp.mean(x, axis=1, keepdims=True)
    r = jnp.concatenate([mx, av], axis=1)
    out = lax.conv_general_dilated(
        r, weight, window_strides=(1, 1),
        padding=((PAD, PAD), (PAD, PAD)),
        dimension_numbers=("NCHW", "OIHW", "NCHW"),
        precision=lax.Precision.HIGHEST)
    return jax.nn.sigmoid(out + bias.reshape(1, 1, 1, 1))


if __name__ == "__main__":
    key = jax.random.PRNGKey(0)
    kx, kw, kb, kx2 = jax.random.split(key, 4)

    # Deterministic synthetic conv params (nn.Conv2d(2, 1, 7, padding=3)),
    # PyTorch-style uniform(-1/sqrt(fan_in), 1/sqrt(fan_in)) init.
    fan_in = 2 * KERNEL_SIZE * KERNEL_SIZE
    bound = 1.0 / (fan_in ** 0.5)
    weight = jax.random.uniform(
        kw, (1, 2, KERNEL_SIZE, KERNEL_SIZE),
        minval=-bound, maxval=bound, dtype=jnp.float32)
    bias = jax.random.uniform(
        kb, (1,), minval=-bound, maxval=bound, dtype=jnp.float32)

    # Case 1: default block choice (Nb=4 -> 2 "parallel" batch steps, 1 C tile).
    N, C, H, W = 8, 4, 16, 16
    x = jax.random.normal(kx, (N, C, H, W), dtype=jnp.float32)
    out = jax.block_until_ready(spatial_attention(x, weight, bias))
    ref = spatial_attention_reference(x, weight, bias)
    assert out.shape == (N, 1, H, W), out.shape
    diff1 = jnp.max(jnp.abs(out - ref))
    assert jnp.allclose(out, ref, atol=1e-5, rtol=1e-5), f"case1 max abs diff: {diff1}"

    # Case 2: exercise the C-tiled reduction path (C=16 in two tiles of 8).
    N2, C2, H2, W2 = 4, 16, 8, 8
    x_b = jax.random.normal(kx2, (N2, C2, H2, W2), dtype=jnp.float32)
    out2 = jax.block_until_ready(
        spatial_attention(x_b, weight, bias, channel_block=8))
    ref2 = spatial_attention_reference(x_b, weight, bias)
    assert out2.shape == (N2, 1, H2, W2), out2.shape
    diff2 = jnp.max(jnp.abs(out2 - ref2))
    assert jnp.allclose(out2, ref2, atol=1e-5, rtol=1e-5), f"case2 max abs diff: {diff2}"

    print("KERNEL_OK")
</pallas_src>

<mosaic_0001>
module attributes {stable_mosaic.version = 11 : i64} {
  func.func @kernel(%arg0: i32, %arg1: i32, %arg2: memref<98xf32, #tpu.memory_space<smem>>, %arg3: memref<1xf32, #tpu.memory_space<smem>>, %arg4: memref<4x4x256xf32, #tpu.memory_space<vmem>>, %arg5: memref<1x4x384xf32, #tpu.memory_space<vmem>>, %arg6: memref<4x256xf32, #tpu.memory_space<vmem>>, %arg7: memref<4x256xf32, #tpu.memory_space<vmem>>, %arg8: memref<2x4x640xf32, #tpu.memory_space<vmem>>) attributes {dimension_semantics = [#tpu.dimension_semantics<parallel>, #tpu.dimension_semantics<arbitrary>], iteration_bounds = array<i64: 2, 1>, scalar_prefetch = 0 : i64, scratch_operands = 3 : i64, tpu.core_type = #tpu.core_type<tc>, window_params = [{transform_indices = @transform_0, window_bounds = array<i64: 98>}, {transform_indices = @transform_1, window_bounds = array<i64: 1>}, {transform_indices = @transform_2, window_bounds = array<i64: 4, 4, 256>}, {transform_indices = @transform_3, window_bounds = array<i64: 1, 4, 384>}]} {
    %c0 = arith.constant 0 : index
    %c0_0 = arith.constant 0 : index
    %c0_1 = arith.constant 0 : index
    %0 = vector.load %arg4[%c0, %c0_0, %c0_1] : memref<4x4x256xf32, #tpu.memory_space<vmem>>, vector<4x4x256xf32>
    %cst = arith.constant dense<0xFF800000> : vector<4x256xf32>
    %1 = vector.multi_reduction <maximumf>, %0, %cst [1] : vector<4x4x256xf32> to vector<4x256xf32>
    %cst_2 = arith.constant dense<0.000000e+00> : vector<4x256xf32>
    %2 = vector.multi_reduction <add>, %0, %cst_2 [1] : vector<4x4x256xf32> to vector<4x256xf32>
    %c0_i32 = arith.constant 0 : i32
    %3 = arith.cmpi eq, %arg1, %c0_i32 : i32
    %4 = arith.extui %3 : i1 to i32
    %c0_i32_3 = arith.constant 0 : i32
    %5 = arith.cmpi ne, %4, %c0_i32_3 : i32
    scf.if %5 {
      %c0_8 = arith.constant 0 : index
      %c0_9 = arith.constant 0 : index
      %12 = vector.load %arg6[%c0_8, %c0_9] : memref<4x256xf32, #tpu.memory_space<vmem>>, vector<4x256xf32>
      tpu.vector_store %arg6[%c0_8, %c0_9], %1 {strides = array<i32>} : memref<4x256xf32, #tpu.memory_space<vmem>>, vector<4x256xf32>,
      %c0_10 = arith.constant 0 : index
      %c0_11 = arith.constant 0 : index
      %13 = vector.load %arg7[%c0_10, %c0_11] : memref<4x256xf32, #tpu.memory_space<vmem>>, vector<4x256xf32>
      tpu.vector_store %arg7[%c0_10, %c0_11], %2 {strides = array<i32>} : memref<4x256xf32, #tpu.memory_space<vmem>>, vector<4x256xf32>,
    } else {
    }
    %c0_i32_4 = arith.constant 0 : i32
    %6 = arith.cmpi sgt, %arg1, %c0_i32_4 : i32
    %7 = arith.extui %6 : i1 to i32
    %c0_i32_5 = arith.constant 0 : i32
    %8 = arith.cmpi ne, %7, %c0_i32_5 : i32
    scf.if %8 {
      %c0_8 = arith.constant 0 : index
      %c0_9 = arith.constant 0 : index
      %12 = vector.load %arg6[%c0_8, %c0_9] : memref<4x256xf32, #tpu.memory_space<vmem>>, vector<4x256xf32>
      %13 = arith.maximumf %12, %1 : vector<4x256xf32>
      %c0_10 = arith.constant 0 : index
      %c0_11 = arith.constant 0 : index
      %14 = vector.load %arg6[%c0_10, %c0_11] : memref<4x256xf32, #tpu.memory_space<vmem>>, vector<4x256xf32>
      tpu.vector_store %arg6[%c0_10, %c0_11], %13 {strides = array<i32>} : memref<4x256xf32, #tpu.memory_space<vmem>>, vector<4x256xf32>,
      %c0_12 = arith.constant 0 : index
      %c0_13 = arith.constant 0 : index
      %15 = vector.load %arg7[%c0_12, %c0_13] : memref<4x256xf32, #tpu.memory_space<vmem>>, vector<4x256xf32>
      %16 = arith.addf %15, %2 : vector<4x256xf32>
      %c0_14 = arith.constant 0 : index
      %c0_15 = arith.constant 0 : index
      %17 = vector.load %arg7[%c0_14, %c0_15] : memref<4x256xf32, #tpu.memory_space<vmem>>, vector<4x256xf32>
      tpu.vector_store %arg7[%c0_14, %c0_15], %16 {strides = array<i32>} : memref<4x256xf32, #tpu.memory_space<vmem>>, vector<4x256xf32>,
    } else {
    }
    %c0_i32_6 = arith.constant 0 : i32
    %9 = arith.cmpi eq, %arg1, %c0_i32_6 : i32
    %10 = arith.extui %9 : i1 to i32
    %c0_i32_7 = arith.constant 0 : i32
    %11 = arith.cmpi ne, %10, %c0_i32_7 : i32
    scf.if %11 {
      %c0_8 = arith.constant 0 : index
      %c0_9 = arith.constant 0 : index
      %12 = vector.load %arg6[%c0_8, %c0_9] : memref<4x256xf32, #tpu.memory_space<vmem>>, vector<4x256xf32>
      %c0_10 = arith.constant 0 : index
      %c0_11 = arith.constant 0 : index
      %13 = vector.load %arg7[%c0_10, %c0_11] : memref<4x256xf32, #tpu.memory_space<vmem>>, vector<4x256xf32>
      %cst_12 = arith.constant 2.500000e-01 : f32
      %14 = vector.broadcast %cst_12 : f32 to vector<4x256xf32>
      %15 = arith.mulf %13, %14 : vector<4x256xf32>
      %cst_13 = arith.constant 0.000000e+00 : f32
      %16 = vector.broadcast %cst_13 : f32 to vector<2x4x640xf32>
      %c0_14 = arith.constant 0 : index
      %c0_15 = arith.constant 0 : index
      %c0_16 = arith.constant 0 : index
      %17 = vector.load %arg8[%c0_14, %c0_15, %c0_16] : memref<2x4x640xf32, #tpu.memory_space<vmem>>, vector<2x4x640xf32>
      tpu.vector_store %arg8[%c0_14, %c0_15, %c0_16], %16 {strides = array<i32>} : memref<2x4x640xf32, #tpu.memory_space<vmem>>, vector<2x4x640xf32>,
      %18 = vector.extract_strided_slice %12 {offsets = [0, 0], sizes = [4, 16], strides = [1, 1]} : vector<4x256xf32> to vector<4x16xf32>
      %c0_17 = arith.constant 0 : index
      %c0_18 = arith.constant 0 : index
      %c69 = arith.constant 69 : index
      %19 = vector.load %arg8[%c0_17, %c0_18, %c69] : memref<2x4x640xf32, #tpu.memory_space<vmem>>, vector<1x4x16xf32>
      %20 = vector.shape_cast %19 : vector<1x4x16xf32> to vector<4x16xf32>
      %21 = vector.shape_cast %18 : vector<4x16xf32> to vector<1x4x16xf32>
      tpu.vector_store %arg8[%c0_17, %c0_18, %c69], %21 {strides = array<i32>} : memref<2x4x640xf32, #tpu.memory_space<vmem>>, vector<1x4x16xf32>,
      %22 = vector.extract_strided_slice %15 {offsets = [0, 0], sizes = [4, 16], strides = [1, 1]} : vector<4x256xf32> to vector<4x16xf32>
      %c1 = arith.constant 1 : index
      %c0_19 = arith.constant 0 : index
      %c69_20 = arith.constant 69 : index
      %23 = vector.load %arg8[%c1, %c0_19, %c69_20] : memref<2x4x640xf32, #tpu.memory_space<vmem>>, vector<1x4x16xf32>
      %24 = vector.shape_cast %23 : vector<1x4x16xf32> to vector<4x16xf32>
      %25 = vector.shape_cast %22 : vector<4x16xf32> to vector<1x4x16xf32>
      tpu.vector_store %arg8[%c1, %c0_19, %c69_20], %25 {strides = array<i32>} : memref<2x4x640xf32, #tpu.memory_space<vmem>>, vector<1x4x16xf32>,
      %26 = vector.extract_strided_slice %12 {offsets = [0, 16], sizes = [4, 16], strides = [1, 1]} : vector<4x256xf32> to vector<4x16xf32>
      %c0_21 = arith.constant 0 : index
      %c0_22 = arith.constant 0 : index
      %c91 = arith.constant 91 : index
      %27 = vector.load %arg8[%c0_21, %c0_22, %c91] : memref<2x4x640xf32, #tpu.memory_space<vmem>>, vector<1x4x16xf32>
      %28 = vector.shape_cast %27 : vector<1x4x16xf32> to vector<4x16xf32>
      %29 = vector.shape_cast %26 : vector<4x16xf32> to vector<1x4x16xf32>
      tpu.vector_store %arg8[%c0_21, %c0_22, %c91], %29 {strides = array<i32>} : memref<2x4x640xf32, #tpu.memory_space<vmem>>, vector<1x4x16xf32>,
      %30 = vector.extract_strided_slice %15 {offsets = [0, 16], sizes = [4, 16], strides = [1, 1]} : vector<4x256xf32> to vector<4x16xf32>
      %c1_23 = arith.constant 1 : index
      %c0_24 = arith.constant 0 : index
      %c91_25 = arith.constant 91 : index
      %31 = vector.load %arg8[%c1_23, %c0_24, %c91_25] : memref<2x4x640xf32, #tpu.memory_space<vmem>>, vector<1x4x16xf32>
      %32 = vector.shape_cast %31 : vector<1x4x16xf32> to vector<4x16xf32>
      %33 = vector.shape_cast %30 : vector<4x16xf32> to vector<1x4x16xf32>
      tpu.vector_store %arg8[%c1_23, %c0_24, %c91_25], %33 {strides = array<i32>} : memref<2x4x640xf32, #tpu.memory_space<vmem>>, vector<1x4x16xf32>,
      %34 = vector.extract_strided_slice %12 {offsets = [0, 32], sizes = [4, 16], strides = [1, 1]} : vector<4x256xf32> to vector<4x16xf32>
      %c0_26 = arith.constant 0 : index
      %c0_27 = arith.constant 0 : index
      %c113 = arith.constant 113 : index
      %35 = vector.load %arg8[%c0_26, %c0_27, %c113] : memref<2x4x640xf32, #tpu.memory_space<vmem>>, vector<1x4x16xf32>
      %36 = vector.shape_cast %35 : vector<1x4x16xf32> to vector<4x16xf32>
      %37 = vector.shape_cast %34 : vector<4x16xf32> to vector<1x4x16xf32>
      tpu.vector_store %arg8[%c0_26, %c0_27, %c113], %37 {strides = array<i32>} : memref<2x4x640xf32, #tpu.memory_space<vmem>>, vector<1x4x16xf32>,
      %38 = vector.extract_strided_slice %15 {offsets = [0, 32], sizes = [4, 16], strides = [1, 1]} : vector<4x256xf32> to vector<4x16xf32>
      %c1_28 = arith.constant 1 : index
      %c0_29 = arith.constant 0 : index
      %c113_30 = arith.constant 113 : index
      %39 = vector.load %arg8[%c1_28, %c0_29, %c113_30] : memref<2x4x640xf32, #tpu.memory_space<vmem>>, vector<1x4x16xf32>
      %40 = vector.shape_cast %39 : vector<1x4x16xf32> to vector<4x16xf32>
      %41 = vector.shape_cast %38 : vector<4x16xf32> to vector<1x4x16xf32>
      tpu.vector_store %arg8[%c1_28, %c0_29, %c113_30], %41 {strides = array<i32>} : memref<2x4x640xf32, #tpu.memory_space<vmem>>, vector<1x4x16xf32>,
      %42 = vector.extract_strided_slice %12 {offsets = [0, 48], sizes = [4, 16], strides = [1, 1]} : vector<4x256xf32> to vector<4x16xf32>
      %c0_31 = arith.constant 0 : index
      %c0_32 = arith.constant 0 : index
      %c135 = arith.constant 135 : index
      %43 = vector.load %arg8[%c0_31, %c0_32, %c135] : memref<2x4x640xf32, #tpu.memory_space<vmem>>, vector<1x4x16xf32>
      %44 = vector.shape_cast %43 : vector<1x4x16xf32> to vector<4x16xf32>
      %45 = vector.shape_cast %42 : vector<4x16xf32> to vector<1x4x16xf32>
      tpu.vector_store %arg8[%c0_31, %c0_32, %c135], %45 {strides = array<i32>} : memref<2x4x640xf32, #tpu.memory_space<vmem>>, vector<1x4x16xf32>,
      %46 = vector.extract_strided_slice %15 {offsets = [0, 48], sizes = [4, 16], strides = [1, 1]} : vector<4x256xf32> to vector<4x16xf32>
      %c1_33 = arith.constant 1 : index
      %c0_34 = arith.constant 0 : index
      %c135_35 = arith.constant 135 : index
      %47 = vector.load %arg8[%c1_33, %c0_34, %c135_35] : memref<2x4x640xf32, #tpu.memory_space<vmem>>, vector<1x4x16xf32>
      %48 = vector.shape_cast %47 : vector<1x4x16xf32> to vector<4x16xf32>
      %49 = vector.shape_cast %46 : vector<4x16xf32> to vector<1x4x16xf32>
      tpu.vector_store %arg8[%c1_33, %c0_34, %c135_35], %49 {strides = array<i32>} : memref<2x4x640xf32, #tpu.memory_space<vmem>>, vector<1x4x16xf32>,
      %50 = vector.extract_strided_slice %12 {offsets = [0, 64], sizes = [4, 16], strides = [1, 1]} : vector<4x256xf32> to vector<4x16xf32>
      %c0_36 = arith.constant 0 : index
      %c0_37 = arith.constant 0 : index
      %c157 = arith.constant 157 : index
      %51 = vector.load %arg8[%c0_36, %c0_37, %c157] : memref<2x4x640xf32, #tpu.memory_space<vmem>>, vector<1x4x16xf32>
      %52 = vector.shape_cast %51 : vector<1x4x16xf32> to vector<4x16xf32>
      %53 = vector.shape_cast %50 : vector<4x16xf32> to vector<1x4x16xf32>
      tpu.vector_store %arg8[%c0_36, %c0_37, %c157], %53 {strides = array<i32>} : memref<2x4x640xf32, #tpu.memory_space<vmem>>, vector<1x4x16xf32>,
      %54 = vector.extract_strided_slice %15 {offsets = [0, 64], sizes = [4, 16], strides = [1, 1]} : vector<4x256xf32> to vector<4x16xf32>
      %c1_38 = arith.constant 1 : index
      %c0_39 = arith.constant 0 : index
      %c157_40 = arith.constant 157 : index
      %55 = vector.load %arg8[%c1_38, %c0_39, %c157_40] : memref<2x4x640xf32, #tpu.memory_space<vmem>>, vector<1x4x16xf32>
      %56 = vector.shape_cast %55 : vector<1x4x16xf32> to vector<4x16xf32>
      %57 = vector.shape_cast %54 : vector<4x16xf32> to vector<1x4x16xf32>
      tpu.vector_store %arg8[%c1_38, %c0_39, %c157_40], %57 {strides = array<i32>} : memref<2x4x640xf32, #tpu.memory_space<vmem>>, vector<1x4x16xf32>,
      %58 = vector.extract_strided_slice %12 {offsets = [0, 80], sizes = [4, 16], strides = [1, 1]} : vector<4x256xf32> to vector<4x16xf32>
      %c0_41 = arith.constant 0 : index
      %c0_42 = arith.constant 0 : index
      %c179 = arith.constant 179 : index
      %59 = vector.load %arg8[%c0_41, %c0_42, %c179] : memref<2x4x640xf32, #tpu.memory_space<vmem>>, vector<1x4x16xf32>
      %60 = vector.shape_cast %59 : vector<1x4x16xf32> to vector<4x16xf32>
      %61 = vector.shape_cast %58 : vector<4x16xf32> to vector<1x4x16xf32>
      tpu.vector_store %arg8[%c0_41, %c0_42, %c179], %61 {strides = array<i32>} : memref<2x4x640xf32, #tpu.memory_space<vmem>>, vector<1x4x16xf32>,
      %62 = vector.extract_strided_slice %15 {offsets = [0, 80], sizes = [4, 16], strides = [1, 1]} : vector<4x256xf32> to vector<4x16xf32>
      %c1_43 = arith.constant 1 : index
      %c0_44 = arith.constant 0 : index
      %c179_45 = arith.constant 179 : index
      %63 = vector.load %arg8[%c1_43, %c0_44, %c179_45] : memref<2x4x640xf32, #tpu.memory_space<vmem>>, vector<1x4x16xf32>
      %64 = vector.shape_cast %63 : vector<1x4x16xf32> to vector<4x16xf32>
      %65 = vector.shape_cast %62 : vector<4x16xf32> to vector<1x4x16xf32>
      tpu.vector_store %arg8[%c1_43, %c0_44, %c179_45], %65 {strides = array<i32>} : memref<2x4x640xf32, #tpu.memory_space<vmem>>, vector<1x4x16xf32>,
      %66 = vector.extract_strided_slice %12 {offsets = [0, 96], sizes = [4, 16], strides = [1, 1]} : vector<4x256xf32> to vector<4x16xf32>
      %c0_46 = arith.constant 0 : index
      %c0_47 = arith.constant 0 : index
      %c201 = arith.constant 201 : index
      %67 = vector.load %arg8[%c0_46, %c0_47, %c201] : memref<2x4x640xf32, #tpu.memory_space<vmem>>, vector<1x4x16xf32>
      %68 = vector.shape_cast %67 : vector<1x4x16xf32> to vector<4x16xf32>
      %69 = vector.shape_cast %66 : vector<4x16xf32> to vector<1x4x16xf32>
      tpu.vector_store %arg8[%c0_46, %c0_47, %c201], %69 {strides = array<i32>} : memref<2x4x640xf32, #tpu.memory_space<vmem>>, vector<1x4x16xf32>,
      %70 = vector.extract_strided_slice %15 {offsets = [0, 96], sizes = [4, 16], strides = [1, 1]} : vector<4x256xf32> to vector<4x16xf32>
      %c1_48 = arith.constant 1 : index
      %c0_49 = arith.constant 0 : index
      %c201_50 = arith.constant 201 : index
      %71 = vector.load %arg8[%c1_48, %c0_49, %c201_50] : memref<2x4x640xf32, #tpu.memory_space<vmem>>, vector<1x4x16xf32>
      %72 = vector.shape_cast %71 : vector<1x4x16xf32> to vector<4x16xf32>
      %73 = vector.shape_cast %70 : vector<4x16xf32> to vector<1x4x16xf32>
      tpu.vector_store %arg8[%c1_48, %c0_49, %c201_50], %73 {strides = array<i32>} : memref<2x4x640xf32, #tpu.memory_space<vmem>>, vector<1x4x16xf32>,
      %74 = vector.extract_strided_slice %12 {offsets = [0, 112], sizes = [4, 16], strides = [1, 1]} : vector<4x256xf32> to vector<4x16xf32>
      %c0_51 = arith.constant 0 : index
      %c0_52 = arith.constant 0 : index
      %c223 = arith.constant 223 : index
      %75 = vector.load %arg8[%c0_51, %c0_52, %c223] : memref<2x4x640xf32, #tpu.memory_space<vmem>>, vector<1x4x16xf32>
      %76 = vector.shape_cast %75 : vector<1x4x16xf32> to vector<4x16xf32>
      %77 = vector.shape_cast %74 : vector<4x16xf32> to vector<1x4x16xf32>
      tpu.vector_store %arg8[%c0_51, %c0_52, %c223], %77 {strides = array<i32>} : memref<2x4x640xf32, #tpu.memory_space<vmem>>, vector<1x4x16xf32>,
      %78 = vector.extract_strided_slice %15 {offsets = [0, 112], sizes = [4, 16], strides = [1, 1]} : vector<4x256xf32> to vector<4x16xf32>
      %c1_53 = arith.constant 1 : index
      %c0_54 = arith.constant 0 : index
      %c223_55 = arith.constant 223 : index
      %79 = vector.load %arg8[%c1_53, %c0_54, %c223_55] : memref<2x4x640xf32, #tpu.memory_space<vmem>>, vector<1x4x16xf32>
      %80 = vector.shape_cast %79 : vector<1x4x16xf32> to vector<4x16xf32>
      %81 = vector.shape_cast %78 : vector<4x16xf32> to vector<1x4x16xf32>
      tpu.vector_store %arg8[%c1_53, %c0_54, %c223_55], %81 {strides = array<i32>} : memref<2x4x640xf32, #tpu.memory_space<vmem>>, vector<1x4x16xf32>,
      %82 = vector.extract_strided_slice %12 {offsets = [0, 128], sizes = [4, 16], strides = [1, 1]} : vector<4x256xf32> to vector<4x16xf32>
      %c0_56 = arith.constant 0 : index
      %c0_57 = arith.constant 0 : index
      %c245 = arith.constant 245 : index
      %83 = vector.load %arg8[%c0_56, %c0_57, %c245] : memref<2x4x640xf32, #tpu.memory_space<vmem>>, vector<1x4x16xf32>
      %84 = vector.shape_cast %83 : vector<1x4x16xf32> to vector<4x16xf32>
      %85 = vector.shape_cast %82 : vector<4x16xf32> to vector<1x4x16xf32>
      tpu.vector_store %arg8[%c0_56, %c0_57, %c245], %85 {strides = array<i32>} : memref<2x4x640xf32, #tpu.memory_space<vmem>>, vector<1x4x16xf32>,
      %86 = vector.extract_strided_slice %15 {offsets = [0, 128], sizes = [4, 16], strides = [1, 1]} : vector<4x256xf32> to vector<4x16xf32>
      %c1_58 = arith.constant 1 : index
      %c0_59 = arith.constant 0 : index
      %c245_60 = arith.constant 245 : index
      %87 = vector.load %arg8[%c1_58, %c0_59, %c245_60] : memref<2x4x640xf32, #tpu.memory_space<vmem>>, vector<1x4x16xf32>
      %88 = vector.shape_cast %87 : vector<1x4x16xf32> to vector<4x16xf32>
      %89 = vector.shape_cast %86 : vector<4x16xf32> to vector<1x4x16xf32>
      tpu.vector_store %arg8[%c1_58, %c0_59, %c245_60], %89 {strides = array<i32>} : memref<2x4x640xf32, #tpu.memory_space<vmem>>, vector<1x4x16xf32>,
      %90 = vector.extract_strided_slice %12 {offsets = [0, 144], sizes = [4, 16], strides = [1, 1]} : vector<4x256xf32> to vector<4x16xf32>
      %c0_61 = arith.constant 0 : index
      %c0_62 = arith.constant 0 : index
      %c267 = arith.constant 267 : index
      %91 = vector.load %arg8[%c0_61, %c0_62, %c267] : memref<2x4x640xf32, #tpu.memory_space<vmem>>, vector<1x4x16xf32>
      %92 = vector.shape_cast %91 : vector<1x4x16xf32> to vector<4x16xf32>
      %93 = vector.shape_cast %90 : vector<4x16xf32> to vector<1x4x16xf32>
      tpu.vector_store %arg8[%c0_61, %c0_62, %c267], %93 {strides = array<i32>} : memref<2x4x640xf32, #tpu.memory_space<vmem>>, vector<1x4x16xf32>,
      %94 = vector.extract_strided_slice %15 {offsets = [0, 144], sizes = [4, 16], strides = [1, 1]} : vector<4x256xf32> to vector<4x16xf32>
      %c1_63 = arith.constant 1 : index
      %c0_64 = arith.constant 0 : index
      %c267_65 = arith.constant 267 : index
      %95 = vector.load %arg8[%c1_63, %c0_64, %c267_65] : memref<2x4x640xf32, #tpu.memory_space<vmem>>, vector<1x4x16xf32>
      %96 = vector.shape_cast %95 : vector<1x4x16xf32> to vector<4x16xf32>
      %97 = vector.shape_cast %94 : vector<4x16xf32> to vector<1x4x16xf32>
      tpu.vector_store %arg8[%c1_63, %c0_64, %c267_65], %97 {strides = array<i32>} : memref<2x4x640xf32, #tpu.memory_space<vmem>>, vector<1x4x16xf32>,
      %98 = vector.extract_strided_slice %12 {offsets = [0, 160], sizes = [4, 16], strides = [1, 1]} : vector<4x256xf32> to vector<4x16xf32>
      %c0_66 = arith.constant 0 : index
      %c0_67 = arith.constant 0 : index
      %c289 = arith.constant 289 : index
      %99 = vector.load %arg8[%c0_66, %c0_67, %c289] : memref<2x4x640xf32, #tpu.memory_space<vmem>>, vector<1x4x16xf32>
      %100 = vector.shape_cast %99 : vector<1x4x16xf32> to vector<4x16xf32>
      %101 = vector.shape_cast %98 : vector<4x16xf32> to vector<1x4x16xf32>
      tpu.vector_store %arg8[%c0_66, %c0_67, %c289], %101 {strides = array<i32>} : memref<2x4x640xf32, #tpu.memory_space<vmem>>, vector<1x4x16xf32>,
      %102 = vector.extract_strided_slice %15 {offsets = [0, 160], sizes = [4, 16], strides = [1, 1]} : vector<4x256xf32> to vector<4x16xf32>
      %c1_68 = arith.constant 1 : index
      %c0_69 = arith.constant 0 : index
      %c289_70 = arith.constant 289 : index
      %103 = vector.load %arg8[%c1_68, %c0_69, %c289_70] : memref<2x4x640xf32, #tpu.memory_space<vmem>>, vector<1x4x16xf32>
      %104 = vector.shape_cast %103 : vector<1x4x16xf32> to vector<4x16xf32>
      %105 = vector.shape_cast %102 : vector<4x16xf32> to vector<1x4x16xf32>
      tpu.vector_store %arg8[%c1_68, %c0_69, %c289_70], %105 {strides = array<i32>} : memref<2x4x640xf32, #tpu.memory_space<vmem>>, vector<1x4x16xf32>,
      %106 = vector.extract_strided_slice %12 {offsets = [0, 176], sizes = [4, 16], strides = [1, 1]} : vector<4x256xf32> to vector<4x16xf32>
      %c0_71 = arith.constant 0 : index
      %c0_72 = arith.constant 0 : index
      %c311 = arith.constant 311 : index
      %107 = vector.load %arg8[%c0_71, %c0_72, %c311] : memref<2x4x640xf32, #tpu.memory_space<vmem>>, vector<1x4x16xf32>
      %108 = vector.shape_cast %107 : vector<1x4x16xf32> to vector<4x16xf32>
      %109 = vector.shape_cast %106 : vector<4x16xf32> to vector<1x4x16xf32>
      tpu.vector_store %arg8[%c0_71, %c0_72, %c311], %109 {strides = array<i32>} : memref<2x4x640xf32, #tpu.memory_space<vmem>>, vector<1x4x16xf32>,
      %110 = vector.extract_strided_slice %15 {offsets = [0, 176], sizes = [4, 16], strides = [1, 1]} : vector<4x256xf32> to vector<4x16xf32>
      %c1_73 = arith.constant 1 : index
      %c0_74 = arith.constant 0 : index
      %c311_75 = arith.constant 311 : index
      %111 = vector.load %arg8[%c1_73, %c0_74, %c311_75] : memref<2x4x640xf32, #tpu.memory_space<vmem>>, vector<1x4x16xf32>
      %112 = vector.shape_cast %111 : vector<1x4x16xf32> to vector<4x16xf32>
      %113 = vector.shape_cast %110 : vector<4x16xf32> to vector<1x4x16xf32>
      tpu.vector_store %arg8[%c1_73, %c0_74, %c311_75], %113 {strides = array<i32>} : memref<2x4x640xf32, #tpu.memory_space<vmem>>, vector<1x4x16xf32>,
      %114 = vector.extract_strided_slice %12 {offsets = [0, 192], sizes = [4, 16], strides = [1, 1]} : vector<4x256xf32> to vector<4x16xf32>
      %c0_76 = arith.constant 0 : index
      %c0_77 = arith.constant 0 : index
      %c333 = arith.constant 333 : index
      %115 = vector.load %arg8[%c0_76, %c0_77, %c333] : memref<2x4x640xf32, #tpu.memory_space<vmem>>, vector<1x4x16xf32>
      %116 = vector.shape_cast %115 : vector<1x4x16xf32> to vector<4x16xf32>
      %117 = vector.shape_cast %114 : vector<4x16xf32> to vector<1x4x16xf32>
      tpu.vector_store %arg8[%c0_76, %c0_77, %c333], %117 {strides = array<i32>} : memref<2x4x640xf32, #tpu.memory_space<vmem>>, vector<1x4x16xf32>,
      %118 = vector.extract_strided_slice %15 {offsets = [0, 192], sizes = [4, 16], strides = [1, 1]} : vector<4x256xf32> to vector<4x16xf32>
      %c1_78 = arith.constant 1 : index
      %c0_79 = arith.constant 0 : index
      %c333_80 = arith.constant 333 : index
      %119 = vector.load %arg8[%c1_78, %c0_79, %c333_80] : memref<2x4x640xf32, #tpu.memory_space<vmem>>, vector<1x4x16xf32>
      %120 = vector.shape_cast %119 : vector<1x4x16xf32> to vector<4x16xf32>
      %121 = vector.shape_cast %118 : vector<4x16xf32> to vector<1x4x16xf32>
      tpu.vector_store %arg8[%c1_78, %c0_79, %c333_80], %121 {strides = array<i32>} : memref<2x4x640xf32, #tpu.memory_space<vmem>>, vector<1x4x16xf32>,
      %122 = vector.extract_strided_slice %12 {offsets = [0, 208], sizes = [4, 16], strides = [1, 1]} : vector<4x256xf32> to vector<4x16xf32>
      %c0_81 = arith.constant 0 : index
      %c0_82 = arith.constant 0 : index
      %c355 = arith.constant 355 : index
      %123 = vector.load %arg8[%c0_81, %c0_82, %c355] : memref<2x4x640xf32, #tpu.memory_space<vmem>>, vector<1x4x16xf32>
      %124 = vector.shape_cast %123 : vector<1x4x16xf32> to vector<4x16xf32>
      %125 = vector.shape_cast %122 : vector<4x16xf32> to vector<1x4x16xf32>
      tpu.vector_store %arg8[%c0_81, %c0_82, %c355], %125 {strides = array<i32>} : memref<2x4x640xf32, #tpu.memory_space<vmem>>, vector<1x4x16xf32>,
      %126 = vector.extract_strided_slice %15 {offsets = [0, 208], sizes = [4, 16], strides = [1, 1]} : vector<4x256xf32> to vector<4x16xf32>
      %c1_83 = arith.constant 1 : index
      %c0_84 = arith.constant 0 : index
      %c355_85 = arith.constant 355 : index
      %127 = vector.load %arg8[%c1_83, %c0_84, %c355_85] : memref<2x4x640xf32, #tpu.memory_space<vmem>>, vector<1x4x16xf32>
      %128 = vector.shape_cast %127 : vector<1x4x16xf32> to vector<4x16xf32>
      %129 = vector.shape_cast %126 : vector<4x16xf32> to vector<1x4x16xf32>
      tpu.vector_store %arg8[%c1_83, %c0_84, %c355_85], %129 {strides = array<i32>} : memref<2x4x640xf32, #tpu.memory_space<vmem>>, vector<1x4x16xf32>,
      %130 = vector.extract_strided_slice %12 {offsets = [0, 224], sizes = [4, 16], strides = [1, 1]} : vector<4x256xf32> to vector<4x16xf32>
      %c0_86 = arith.constant 0 : index
      %c0_87 = arith.constant 0 : index
      %c377 = arith.constant 377 : index
      %131 = vector.load %arg8[%c0_86, %c0_87, %c377] : memref<2x4x640xf32, #tpu.memory_space<vmem>>, vector<1x4x16xf32>
      %132 = vector.shape_cast %131 : vector<1x4x16xf32> to vector<4x16xf32>
      %133 = vector.shape_cast %130 : vector<4x16xf32> to vector<1x4x16xf32>
      tpu.vector_store %arg8[%c0_86, %c0_87, %c377], %133 {strides = array<i32>} : memref<2x4x640xf32, #tpu.memory_space<vmem>>, vector<1x4x16xf32>,
      %134 = vector.extract_strided_slice %15 {offsets = [0, 224], sizes = [4, 16], strides = [1, 1]} : vector<4x256xf32> to vector<4x16xf32>
      %c1_88 = arith.constant 1 : index
      %c0_89 = arith.constant 0 : index
      %c377_90 = arith.constant 377 : index
      %135 = vector.load %arg8[%c1_88, %c0_89, %c377_90] : memref<2x4x640xf32, #tpu.memory_space<vmem>>, vector<1x4x16xf32>
      %136 = vector.shape_cast %135 : vector<1x4x16xf32> to vector<4x16xf32>
      %137 = vector.shape_cast %134 : vector<4x16xf32> to vector<1x4x16xf32>
      tpu.vector_store %arg8[%c1_88, %c0_89, %c377_90], %137 {strides = array<i32>} : memref<2x4x640xf32, #tpu.memory_space<vmem>>, vector<1x4x16xf32>,
      %138 = vector.extract_strided_slice %12 {offsets = [0, 240], sizes = [4, 16], strides = [1, 1]} : vector<4x256xf32> to vector<4x16xf32>
      %c0_91 = arith.constant 0 : index
      %c0_92 = arith.constant 0 : index
      %c399 = arith.constant 399 : index
      %139 = vector.load %arg8[%c0_91, %c0_92, %c399] : memref<2x4x640xf32, #tpu.memory_space<vmem>>, vector<1x4x16xf32>
      %140 = vector.shape_cast %139 : vector<1x4x16xf32> to vector<4x16xf32>
      %141 = vector.shape_cast %138 : vector<4x16xf32> to vector<1x4x16xf32>
      tpu.vector_store %arg8[%c0_91, %c0_92, %c399], %141 {strides = array<i32>} : memref<2x4x640xf32, #tpu.memory_space<vmem>>, vector<1x4x16xf32>,
      %142 = vector.extract_strided_slice %15 {offsets = [0, 240], sizes = [4, 16], strides = [1, 1]} : vector<4x256xf32> to vector<4x16xf32>
      %c1_93 = arith.constant 1 : index
      %c0_94 = arith.constant 0 : index
      %c399_95 = arith.constant 399 : index
      %143 = vector.load %arg8[%c1_93, %c0_94, %c399_95] : memref<2x4x640xf32, #tpu.memory_space<vmem>>, vector<1x4x16xf32>
      %144 = vector.shape_cast %143 : vector<1x4x16xf32> to vector<4x16xf32>
      %145 = vector.shape_cast %142 : vector<4x16xf32> to vector<1x4x16xf32>
      tpu.vector_store %arg8[%c1_93, %c0_94, %c399_95], %145 {strides = array<i32>} : memref<2x4x640xf32, #tpu.memory_space<vmem>>, vector<1x4x16xf32>,
      %c0_96 = arith.constant 0 : index
      %146 = memref.load %arg3[%c0_96] : memref<1xf32, #tpu.memory_space<smem>>
      %147 = vector.broadcast %146 : f32 to vector<4x384xf32>
      %c0_97 = arith.constant 0 : index
      %c0_98 = arith.constant 0 : index
      %c0_99 = arith.constant 0 : index
      %148 = vector.load %arg8[%c0_97, %c0_98, %c0_99] : memref<2x4x640xf32, #tpu.memory_space<vmem>>, vector<1x4x384xf32>
      %149 = vector.shape_cast %148 : vector<1x4x384xf32> to vector<4x384xf32>
      %c0_100 = arith.constant 0 : index
      %150 = memref.load %arg2[%c0_100] : memref<98xf32, #tpu.memory_space<smem>>
      %151 = vector.broadcast %150 : f32 to vector<4x384xf32>
      %152 = arith.mulf %149, %151 : vector<4x384xf32>
      %153 = arith.addf %147, %152 : vector<4x384xf32>
      %c0_101 = arith.constant 0 : index
      %c0_102 = arith.constant 0 : index
      %c1_103 = arith.constant 1 : index
      %154 = vector.load %arg8[%c0_101, %c0_102, %c1_103] : memref<2x4x640xf32, #tpu.memory_space<vmem>>, vector<1x4x384xf32>
      %155 = vector.shape_cast %154 : vector<1x4x384xf32> to vector<4x384xf32>
      %c1_104 = arith.constant 1 : index
      %156 = memref.load %arg2[%c1_104] : memref<98xf32, #tpu.memory_space<smem>>
      %157 = vector.broadcast %156 : f32 to vector<4x384xf32>
      %158 = arith.mulf %155, %157 : vector<4x384xf32>
      %159 = arith.addf %153, %158 : vector<4x384xf32>
      %c0_105 = arith.constant 0 : index
      %c0_106 = arith.constant 0 : index
      %c2 = arith.constant 2 : index
      %160 = vector.load %arg8[%c0_105, %c0_106, %c2] : memref<2x4x640xf32, #tpu.memory_space<vmem>>, vector<1x4x384xf32>
      %161 = vector.shape_cast %160 : vector<1x4x384xf32> to vector<4x384xf32>
      %c2_107 = arith.constant 2 : index
      %162 = memref.load %arg2[%c2_107] : memref<98xf32, #tpu.memory_space<smem>>
      %163 = vector.broadcast %162 : f32 to vector<4x384xf32>
      %164 = arith.mulf %161, %163 : vector<4x384xf32>
      %165 = arith.addf %159, %164 : vector<4x384xf32>
      %c0_108 = arith.constant 0 : index
      %c0_109 = arith.constant 0 : index
      %c3 = arith.constant 3 : index
      %166 = vector.load %arg8[%c0_108, %c0_109, %c3] : memref<2x4x640xf32, #tpu.memory_space<vmem>>, vector<1x4x384xf32>
      %167 = vector.shape_cast %166 : vector<1x4x384xf32> to vector<4x384xf32>
      %c3_110 = arith.constant 3 : index
      %168 = memref.load %arg2[%c3_110] : memref<98xf32, #tpu.memory_space<smem>>
      %169 = vector.broadcast %168 : f32 to vector<4x384xf32>
      %170 = arith.mulf %167, %169 : vector<4x384xf32>
      %171 = arith.addf %165, %170 : vector<4x384xf32>
      %c0_111 = arith.constant 0 : index
      %c0_112 = arith.constant 0 : index
      %c4 = arith.constant 4 : index
      %172 = vector.load %arg8[%c0_111, %c0_112, %c4] : memref<2x4x640xf32, #tpu.memory_space<vmem>>, vector<1x4x384xf32>
      %173 = vector.shape_cast %172 : vector<1x4x384xf32> to vector<4x384xf32>
      %c4_113 = arith.constant 4 : index
      %174 = memref.load %arg2[%c4_113] : memref<98xf32, #tpu.memory_space<smem>>
      %175 = vector.broadcast %174 : f32 to vector<4x384xf32>
      %176 = arith.mulf %173, %175 : vector<4x384xf32>
      %177 = arith.addf %171, %176 : vector<4x384xf32>
      %c0_114 = arith.constant 0 : index
      %c0_115 = arith.constant 0 : index
      %c5 = arith.constant 5 : index
      %178 = vector.load %arg8[%c0_114, %c0_115, %c5] : memref<2x4x640xf32, #tpu.memory_space<vmem>>, vector<1x4x384xf32>
      %179 = vector.shape_cast %178 : vector<1x4x384xf32> to vector<4x384xf32>
      %c5_116 = arith.constant 5 : index
      %180 = memref.load %arg2[%c5_116] : memref<98xf32, #tpu.memory_space<smem>>
      %181 = vector.broadcast %180 : f32 to vector<4x384xf32>
      %182 = arith.mulf %179, %181 : vector<4x384xf32>
      %183 = arith.addf %177, %182 : vector<4x384xf32>
      %c0_117 = arith.constant 0 : index
      %c0_118 = arith.constant 0 : index
      %c6 = arith.constant 6 : index
      %184 = vector.load %arg8[%c0_117, %c0_118, %c6] : memref<2x4x640xf32, #tpu.memory_space<vmem>>, vector<1x4x384xf32>
      %185 = vector.shape_cast %184 : vector<1x4x384xf32> to vector<4x384xf32>
      %c6_119 = arith.constant 6 : index
      %186 = memref.load %arg2[%c6_119] : memref<98xf32, #tpu.memory_space<smem>>
      %187 = vector.broadcast %186 : f32 to vector<4x384xf32>
      %188 = arith.mulf %185, %187 : vector<4x384xf32>
      %189 = arith.addf %183, %188 : vector<4x384xf32>
      %c0_120 = arith.constant 0 : index
      %c0_121 = arith.constant 0 : index
      %c22 = arith.constant 22 : index
      %190 = vector.load %arg8[%c0_120, %c0_121, %c22] : memref<2x4x640xf32, #tpu.memory_space<vmem>>, vector<1x4x384xf32>
      %191 = vector.shape_cast %190 : vector<1x4x384xf32> to vector<4x384xf32>
      %c7 = arith.constant 7 : index
      %192 = memref.load %arg2[%c7] : memref<98xf32, #tpu.memory_space<smem>>
      %193 = vector.broadcast %192 : f32 to vector<4x384xf32>
      %194 = arith.mulf %191, %193 : vector<4x384xf32>
      %195 = arith.addf %189, %194 : vector<4x384xf32>
      %c0_122 = arith.constant 0 : index
      %c0_123 = arith.constant 0 : index
      %c23 = arith.constant 23 : index
      %196 = vector.load %arg8[%c0_122, %c0_123, %c23] : memref<2x4x640xf32, #tpu.memory_space<vmem>>, vector<1x4x384xf32>
      %197 = vector.shape_cast %196 : vector<1x4x384xf32> to vector<4x384xf32>
      %c8 = arith.constant 8 : index
      %198 = memref.load %arg2[%c8] : memref<98xf32, #tpu.memory_space<smem>>
      %199 = vector.broadcast %198 : f32 to vector<4x384xf32>
      %200 = arith.mulf %197, %199 : vector<4x384xf32>
      %201 = arith.addf %195, %200 : vector<4x384xf32>
      %c0_124 = arith.constant 0 : index
      %c0_125 = arith.constant 0 : index
      %c24 = arith.constant 24 : index
      %202 = vector.load %arg8[%c0_124, %c0_125, %c24] : memref<2x4x640xf32, #tpu.memory_space<vmem>>, vector<1x4x384xf32>
      %203 = vector.shape_cast %202 : vector<1x4x384xf32> to vector<4x384xf32>
      %c9 = arith.constant 9 : index
      %204 = memref.load %arg2[%c9] : memref<98xf32, #tpu.memory_space<smem>>
      %205 = vector.broadcast %204 : f32 to vector<4x384xf32>
      %206 = arith.mulf %203, %205 : vector<4x384xf32>
      %207 = arith.addf %201, %206 : vector<4x384xf32>
      %c0_126 = arith.constant 0 : index
      %c0_127 = arith.constant 0 : index
      %c25 = arith.constant 25 : index
      %208 = vector.load %arg8[%c0_126, %c0_127, %c25] : memref<2x4x640xf32, #tpu.memory_space<vmem>>, vector<1x4x384xf32>
      %209 = vector.shape_cast %208 : vector<1x4x384xf32> to vector<4x384xf32>
      %c10 = arith.constant 10 : index
      %210 = memref.load %arg2[%c10] : memref<98xf32, #tpu.memory_space<smem>>
      %211 = vector.broadcast %210 : f32 to vector<4x384xf32>
      %212 = arith.mulf %209, %211 : vector<4x384xf32>
      %213 = arith.addf %207, %212 : vector<4x384xf32>
      %c0_128 = arith.constant 0 : index
      %c0_129 = arith.constant 0 : index
      %c26 = arith.constant 26 : index
      %214 = vector.load %arg8[%c0_128, %c0_129, %c26] : memref<2x4x640xf32, #tpu.memory_space<vmem>>, vector<1x4x384xf32>
      %215 = vector.shape_cast %214 : vector<1x4x384xf32> to vector<4x384xf32>
      %c11 = arith.constant 11 : index
      %216 = memref.load %arg2[%c11] : memref<98xf32, #tpu.memory_space<smem>>
      %217 = vector.broadcast %216 : f32 to vector<4x384xf32>
      %218 = arith.mulf %215, %217 : vector<4x384xf32>
      %219 = arith.addf %213, %218 : vector<4x384xf32>
      %c0_130 = arith.constant 0 : index
      %c0_131 = arith.constant 0 : index
      %c27 = arith.constant 27 : index
      %220 = vector.load %arg8[%c0_130, %c0_131, %c27] : memref<2x4x640xf32, #tpu.memory_space<vmem>>, vector<1x4x384xf32>
      %221 = vector.shape_cast %220 : vector<1x4x384xf32> to vector<4x384xf32>
      %c12 = arith.constant 12 : index
      %222 = memref.load %arg2[%c12] : memref<98xf32, #tpu.memory_space<smem>>
      %223 = vector.broadcast %222 : f32 to vector<4x384xf32>
      %224 = arith.mulf %221, %223 : vector<4x384xf32>
      %225 = arith.addf %219, %224 : vector<4x384xf32>
      %c0_132 = arith.constant 0 : index
      %c0_133 = arith.constant 0 : index
      %c28 = arith.constant 28 : index
      %226 = vector.load %arg8[%c0_132, %c0_133, %c28] : memref<2x4x640xf32, #tpu.memory_space<vmem>>, vector<1x4x384xf32>
      %227 = vector.shape_cast %226 : vector<1x4x384xf32> to vector<4x384xf32>
      %c13 = arith.constant 13 : index
      %228 = memref.load %arg2[%c13] : memref<98xf32, #tpu.memory_space<smem>>
      %229 = vector.broadcast %228 : f32 to vector<4x384xf32>
      %230 = arith.mulf %227, %229 : vector<4x384xf32>
      %231 = arith.addf %225, %230 : vector<4x384xf32>
      %c0_134 = arith.constant 0 : index
      %c0_135 = arith.constant 0 : index
      %c44 = arith.constant 44 : index
      %232 = vector.load %arg8[%c0_134, %c0_135, %c44] : memref<2x4x640xf32, #tpu.memory_space<vmem>>, vector<1x4x384xf32>
      %233 = vector.shape_cast %232 : vector<1x4x384xf32> to vector<4x384xf32>
      %c14 = arith.constant 14 : index
      %234 = memref.load %arg2[%c14] : memref<98xf32, #tpu.memory_space<smem>>
      %235 = vector.broadcast %234 : f32 to vector<4x384xf32>
      %236 = arith.mulf %233, %235 : vector<4x384xf32>
      %237 = arith.addf %231, %236 : vector<4x384xf32>
      %c0_136 = arith.constant 0 : index
      %c0_137 = arith.constant 0 : index
      %c45 = arith.constant 45 : index
      %238 = vector.load %arg8[%c0_136, %c0_137, %c45] : memref<2x4x640xf32, #tpu.memory_space<vmem>>, vector<1x4x384xf32>
      %239 = vector.shape_cast %238 : vector<1x4x384xf32> to vector<4x384xf32>
      %c15 = arith.constant 15 : index
      %240 = memref.load %arg2[%c15] : memref<98xf32, #tpu.memory_space<smem>>
      %241 = vector.broadcast %240 : f32 to vector<4x384xf32>
      %242 = arith.mulf %239, %241 : vector<4x384xf32>
      %243 = arith.addf %237, %242 : vector<4x384xf32>
      %c0_138 = arith.constant 0 : index
      %c0_139 = arith.constant 0 : index
      %c46 = arith.constant 46 : index
      %244 = vector.load %arg8[%c0_138, %c0_139, %c46] : memref<2x4x640xf32, #tpu.memory_space<vmem>>, vector<1x4x384xf32>
      %245 = vector.shape_cast %244 : vector<1x4x384xf32> to vector<4x384xf32>
      %c16 = arith.constant 16 : index
      %246 = memref.load %arg2[%c16] : memref<98xf32, #tpu.memory_space<smem>>
      %247 = vector.broadcast %246 : f32 to vector<4x384xf32>
      %248 = arith.mulf %245, %247 : vector<4x384xf32>
      %249 = arith.addf %243, %248 : vector<4x384xf32>
      %c0_140 = arith.constant 0 : index
      %c0_141 = arith.constant 0 : index
      %c47 = arith.constant 47 : index
      %250 = vector.load %arg8[%c0_140, %c0_141, %c47] : memref<2x4x640xf32, #tpu.memory_space<vmem>>, vector<1x4x384xf32>
      %251 = vector.shape_cast %250 : vector<1x4x384xf32> to vector<4x384xf32>
      %c17 = arith.constant 17 : index
      %252 = memref.load %arg2[%c17] : memref<98xf32, #tpu.memory_space<smem>>
      %253 = vector.broadcast %252 : f32 to vector<4x384xf32>
      %254 = arith.mulf %251, %253 : vector<4x384xf32>
      %255 = arith.addf %249, %254 : vector<4x384xf32>
      %c0_142 = arith.constant 0 : index
      %c0_143 = arith.constant 0 : index
      %c48 = arith.constant 48 : index
      %256 = vector.load %arg8[%c0_142, %c0_143, %c48] : memref<2x4x640xf32, #tpu.memory_space<vmem>>, vector<1x4x384xf32>
      %257 = vector.shape_cast %256 : vector<1x4x384xf32> to vector<4x384xf32>
      %c18 = arith.constant 18 : index
      %258 = memref.load %arg2[%c18] : memref<98xf32, #tpu.memory_space<smem>>
      %259 = vector.broadcast %258 : f32 to vector<4x384xf32>
      %260 = arith.mulf %257, %259 : vector<4x384xf32>
      %261 = arith.addf %255, %260 : vector<4x384xf32>
      %c0_144 = arith.constant 0 : index
      %c0_145 = arith.constant 0 : index
      %c49 = arith.constant 49 : index
      %262 = vector.load %arg8[%c0_144, %c0_145, %c49] : memref<2x4x640xf32, #tpu.memory_space<vmem>>, vector<1x4x384xf32>
      %263 = vector.shape_cast %262 : vector<1x4x384xf32> to vector<4x384xf32>
      %c19 = arith.constant 19 : index
      %264 = memref.load %arg2[%c19] : memref<98xf32, #tpu.memory_space<smem>>
      %265 = vector.broadcast %264 : f32 to vector<4x384xf32>
      %266 = arith.mulf %263, %265 : vector<4x384xf32>
      %267 = arith.addf %261, %266 : vector<4x384xf32>
      %c0_146 = arith.constant 0 : index
      %c0_147 = arith.constant 0 : index
      %c50 = arith.constant 50 : index
      %268 = vector.load %arg8[%c0_146, %c0_147, %c50] : memref<2x4x640xf32, #tpu.memory_space<vmem>>, vector<1x4x384xf32>
      %269 = vector.shape_cast %268 : vector<1x4x384xf32> to vector<4x384xf32>
      %c20 = arith.constant 20 : index
      %270 = memref.load %arg2[%c20] : memref<98xf32, #tpu.memory_space<smem>>
      %271 = vector.broadcast %270 : f32 to vector<4x384xf32>
      %272 = arith.mulf %269, %271 : vector<4x384xf32>
      %273 = arith.addf %267, %272 : vector<4x384xf32>
      %c0_148 = arith.constant 0 : index
      %c0_149 = arith.constant 0 : index
      %c66 = arith.constant 66 : index
      %274 = vector.load %arg8[%c0_148, %c0_149, %c66] : memref<2x4x640xf32, #tpu.memory_space<vmem>>, vector<1x4x384xf32>
      %275 = vector.shape_cast %274 : vector<1x4x384xf32> to vector<4x384xf32>
      %c21 = arith.constant 21 : index
      %276 = memref.load %arg2[%c21] : memref<98xf32, #tpu.memory_space<smem>>
      %277 = vector.broadcast %276 : f32 to vector<4x384xf32>
      %278 = arith.mulf %275, %277 : vector<4x384xf32>
      %279 = arith.addf %273, %278 : vector<4x384xf32>
      %c0_150 = arith.constant 0 : index
      %c0_151 = arith.constant 0 : index
      %c67 = arith.constant 67 : index
      %280 = vector.load %arg8[%c0_150, %c0_151, %c67] : memref<2x4x640xf32, #tpu.memory_space<vmem>>, vector<1x4x384xf32>
      %281 = vector.shape_cast %280 : vector<1x4x384xf32> to vector<4x384xf32>
      %c22_152 = arith.constant 22 : index
      %282 = memref.load %arg2[%c22_152] : memref<98xf32, #tpu.memory_space<smem>>
      %283 = vector.broadcast %282 : f32 to vector<4x384xf32>
      %284 = arith.mulf %281, %283 : vector<4x384xf32>
      %285 = arith.addf %279, %284 : vector<4x384xf32>
      %c0_153 = arith.constant 0 : index
      %c0_154 = arith.constant 0 : index
      %c68 = arith.constant 68 : index
      %286 = vector.load %arg8[%c0_153, %c0_154, %c68] : memref<2x4x640xf32, #tpu.memory_space<vmem>>, vector<1x4x384xf32>
      %287 = vector.shape_cast %286 : vector<1x4x384xf32> to vector<4x384xf32>
      %c23_155 = arith.constant 23 : index
      %288 = memref.load %arg2[%c23_155] : memref<98xf32, #tpu.memory_space<smem>>
      %289 = vector.broadcast %288 : f32 to vector<4x384xf32>
      %290 = arith.mulf %287, %289 : vector<4x384xf32>
      %291 = arith.addf %285, %290 : vector<4x384xf32>
      %c0_156 = arith.constant 0 : index
      %c0_157 = arith.constant 0 : index
      %c69_158 = arith.constant 69 : index
      %292 = vector.load %arg8[%c0_156, %c0_157, %c69_158] : memref<2x4x640xf32, #tpu.memory_space<vmem>>, vector<1x4x384xf32>
      %293 = vector.shape_cast %292 : vector<1x4x384xf32> to vector<4x384xf32>
      %c24_159 = arith.constant 24 : index
      %294 = memref.load %arg2[%c24_159] : memref<98xf32, #tpu.memory_space<smem>>
      %295 = vector.broadcast %294 : f32 to vector<4x384xf32>
      %296 = arith.mulf %293, %295 : vector<4x384xf32>
      %297 = arith.addf %291, %296 : vector<4x384xf32>
      %c0_160 = arith.constant 0 : index
      %c0_161 = arith.constant 0 : index
      %c70 = arith.constant 70 : index
      %298 = vector.load %arg8[%c0_160, %c0_161, %c70] : memref<2x4x640xf32, #tpu.memory_space<vmem>>, vector<1x4x384xf32>
      %299 = vector.shape_cast %298 : vector<1x4x384xf32> to vector<4x384xf32>
      %c25_162 = arith.constant 25 : index
      %300 = memref.load %arg2[%c25_162] : memref<98xf32, #tpu.memory_space<smem>>
      %301 = vector.broadcast %300 : f32 to vector<4x384xf32>
      %302 = arith.mulf %299, %301 : vector<4x384xf32>
      %303 = arith.addf %297, %302 : vector<4x384xf32>
      %c0_163 = arith.constant 0 : index
      %c0_164 = arith.constant 0 : index
      %c71 = arith.constant 71 : index
      %304 = vector.load %arg8[%c0_163, %c0_164, %c71] : memref<2x4x640xf32, #tpu.memory_space<vmem>>, vector<1x4x384xf32>
      %305 = vector.shape_cast %304 : vector<1x4x384xf32> to vector<4x384xf32>
      %c26_165 = arith.constant 26 : index
      %306 = memref.load %arg2[%c26_165] : memref<98xf32, #tpu.memory_space<smem>>
      %307 = vector.broadcast %306 : f32 to vector<4x384xf32>
      %308 = arith.mulf %305, %307 : vector<4x384xf32>
      %309 = arith.addf %303, %308 : vector<4x384xf32>
      %c0_166 = arith.constant 0 : index
      %c0_167 = arith.constant 0 : index
      %c72 = arith.constant 72 : index
      %310 = vector.load %arg8[%c0_166, %c0_167, %c72] : memref<2x4x640xf32, #tpu.memory_space<vmem>>, vector<1x4x384xf32>
      %311 = vector.shape_cast %310 : vector<1x4x384xf32> to vector<4x384xf32>
      %c27_168 = arith.constant 27 : index
      %312 = memref.load %arg2[%c27_168] : memref<98xf32, #tpu.memory_space<smem>>
      %313 = vector.broadcast %312 : f32 to vector<4x384xf32>
      %314 = arith.mulf %311, %313 : vector<4x384xf32>
      %315 = arith.addf %309, %314 : vector<4x384xf32>
      %c0_169 = arith.constant 0 : index
      %c0_170 = arith.constant 0 : index
      %c88 = arith.constant 88 : index
      %316 = vector.load %arg8[%c0_169, %c0_170, %c88] : memref<2x4x640xf32, #tpu.memory_space<vmem>>, vector<1x4x384xf32>
      %317 = vector.shape_cast %316 : vector<1x4x384xf32> to vector<4x384xf32>
      %c28_171 = arith.constant 28 : index
      %318 = memref.load %arg2[%c28_171] : memref<98xf32, #tpu.memory_space<smem>>
      %319 = vector.broadcast %318 : f32 to vector<4x384xf32>
      %320 = arith.mulf %317, %319 : vector<4x384xf32>
      %321 = arith.addf %315, %320 : vector<4x384xf32>
      %c0_172 = arith.constant 0 : index
      %c0_173 = arith.constant 0 : index
      %c89 = arith.constant 89 : index
      %322 = vector.load %arg8[%c0_172, %c0_173, %c89] : memref<2x4x640xf32, #tpu.memory_space<vmem>>, vector<1x4x384xf32>
      %323 = vector.shape_cast %322 : vector<1x4x384xf32> to vector<4x384xf32>
      %c29 = arith.constant 29 : index
      %324 = memref.load %arg2[%c29] : memref<98xf32, #tpu.memory_space<smem>>
      %325 = vector.broadcast %324 : f32 to vector<4x384xf32>
      %326 = arith.mulf %323, %325 : vector<4x384xf32>
      %327 = arith.addf %321, %326 : vector<4x384xf32>
      %c0_174 = arith.constant 0 : index
      %c0_175 = arith.constant 0 : index
      %c90 = arith.constant 90 : index
      %328 = vector.load %arg8[%c0_174, %c0_175, %c90] : memref<2x4x640xf32, #tpu.memory_space<vmem>>, vector<1x4x384xf32>
      %329 = vector.shape_cast %328 : vector<1x4x384xf32> to vector<4x384xf32>
      %c30 = arith.constant 30 : index
      %330 = memref.load %arg2[%c30] : memref<98xf32, #tpu.memory_space<smem>>
      %331 = vector.broadcast %330 : f32 to vector<4x384xf32>
      %332 = arith.mulf %329, %331 : vector<4x384xf32>
      %333 = arith.addf %327, %332 : vector<4x384xf32>
      %c0_176 = arith.constant 0 : index
      %c0_177 = arith.constant 0 : index
      %c91_178 = arith.constant 91 : index
      %334 = vector.load %arg8[%c0_176, %c0_177, %c91_178] : memref<2x4x640xf32, #tpu.memory_space<vmem>>, vector<1x4x384xf32>
      %335 = vector.shape_cast %334 : vector<1x4x384xf32> to vector<4x384xf32>
      %c31 = arith.constant 31 : index
      %336 = memref.load %arg2[%c31] : memref<98xf32, #tpu.memory_space<smem>>
      %337 = vector.broadcast %336 : f32 to vector<4x384xf32>
      %338 = arith.mulf %335, %337 : vector<4x384xf32>
      %339 = arith.addf %333, %338 : vector<4x384xf32>
      %c0_179 = arith.constant 0 : index
      %c0_180 = arith.constant 0 : index
      %c92 = arith.constant 92 : index
      %340 = vector.load %arg8[%c0_179, %c0_180, %c92] : memref<2x4x640xf32, #tpu.memory_space<vmem>>, vector<1x4x384xf32>
      %341 = vector.shape_cast %340 : vector<1x4x384xf32> to vector<4x384xf32>
      %c32 = arith.constant 32 : index
      %342 = memref.load %arg2[%c32] : memref<98xf32, #tpu.memory_space<smem>>
      %343 = vector.broadcast %342 : f32 to vector<4x384xf32>
      %344 = arith.mulf %341, %343 : vector<4x384xf32>
      %345 = arith.addf %339, %344 : vector<4x384xf32>
      %c0_181 = arith.constant 0 : index
      %c0_182 = arith.constant 0 : index
      %c93 = arith.constant 93 : index
      %346 = vector.load %arg8[%c0_181, %c0_182, %c93] : memref<2x4x640xf32, #tpu.memory_space<vmem>>, vector<1x4x384xf32>
      %347 = vector.shape_cast %346 : vector<1x4x384xf32> to vector<4x384xf32>
      %c33 = arith.constant 33 : index
      %348 = memref.load %arg2[%c33] : memref<98xf32, #tpu.memory_space<smem>>
      %349 = vector.broadcast %348 : f32 to vector<4x384xf32>
      %350 = arith.mulf %347, %349 : vector<4x384xf32>
      %351 = arith.addf %345, %350 : vector<4x384xf32>
      %c0_183 = arith.constant 0 : index
      %c0_184 = arith.constant 0 : index
      %c94 = arith.constant 94 : index
      %352 = vector.load %arg8[%c0_183, %c0_184, %c94] : memref<2x4x640xf32, #tpu.memory_space<vmem>>, vector<1x4x384xf32>
      %353 = vector.shape_cast %352 : vector<1x4x384xf32> to vector<4x384xf32>
      %c34 = arith.constant 34 : index
      %354 = memref.load %arg2[%c34] : memref<98xf32, #tpu.memory_space<smem>>
      %355 = vector.broadcast %354 : f32 to vector<4x384xf32>
      %356 = arith.mulf %353, %355 : vector<4x384xf32>
      %357 = arith.addf %351, %356 : vector<4x384xf32>
      %c0_185 = arith.constant 0 : index
      %c0_186 = arith.constant 0 : index
      %c110 = arith.constant 110 : index
      %358 = vector.load %arg8[%c0_185, %c0_186, %c110] : memref<2x4x640xf32, #tpu.memory_space<vmem>>, vector<1x4x384xf32>
      %359 = vector.shape_cast %358 : vector<1x4x384xf32> to vector<4x384xf32>
      %c35 = arith.constant 35 : index
      %360 = memref.load %arg2[%c35] : memref<98xf32, #tpu.memory_space<smem>>
      %361 = vector.broadcast %360 : f32 to vector<4x384xf32>
      %362 = arith.mulf %359, %361 : vector<4x384xf32>
      %363 = arith.addf %357, %362 : vector<4x384xf32>
      %c0_187 = arith.constant 0 : index
      %c0_188 = arith.constant 0 : index
      %c111 = arith.constant 111 : index
      %364 = vector.load %arg8[%c0_187, %c0_188, %c111] : memref<2x4x640xf32, #tpu.memory_space<vmem>>, vector<1x4x384xf32>
      %365 = vector.shape_cast %364 : vector<1x4x384xf32> to vector<4x384xf32>
      %c36 = arith.constant 36 : index
      %366 = memref.load %arg2[%c36] : memref<98xf32, #tpu.memory_space<smem>>
      %367 = vector.broadcast %366 : f32 to vector<4x384xf32>
      %368 = arith.mulf %365, %367 : vector<4x384xf32>
      %369 = arith.addf %363, %368 : vector<4x384xf32>
      %c0_189 = arith.constant 0 : index
      %c0_190 = arith.constant 0 : index
      %c112 = arith.constant 112 : index
      %370 = vector.load %arg8[%c0_189, %c0_190, %c112] : memref<2x4x640xf32, #tpu.memory_space<vmem>>, vector<1x4x384xf32>
      %371 = vector.shape_cast %370 : vector<1x4x384xf32> to vector<4x384xf32>
      %c37 = arith.constant 37 : index
      %372 = memref.load %arg2[%c37] : memref<98xf32, #tpu.memory_space<smem>>
      %373 = vector.broadcast %372 : f32 to vector<4x384xf32>
      %374 = arith.mulf %371, %373 : vector<4x384xf32>
      %375 = arith.addf %369, %374 : vector<4x384xf32>
      %c0_191 = arith.constant 0 : index
      %c0_192 = arith.constant 0 : index
      %c113_193 = arith.constant 113 : index
      %376 = vector.load %arg8[%c0_191, %c0_192, %c113_193] : memref<2x4x640xf32, #tpu.memory_space<vmem>>, vector<1x4x384xf32>
      %377 = vector.shape_cast %376 : vector<1x4x384xf32> to vector<4x384xf32>
      %c38 = arith.constant 38 : index
      %378 = memref.load %arg2[%c38] : memref<98xf32, #tpu.memory_space<smem>>
      %379 = vector.broadcast %378 : f32 to vector<4x384xf32>
      %380 = arith.mulf %377, %379 : vector<4x384xf32>
      %381 = arith.addf %375, %380 : vector<4x384xf32>
      %c0_194 = arith.constant 0 : index
      %c0_195 = arith.constant 0 : index
      %c114 = arith.constant 114 : index
      %382 = vector.load %arg8[%c0_194, %c0_195, %c114] : memref<2x4x640xf32, #tpu.memory_space<vmem>>, vector<1x4x384xf32>
      %383 = vector.shape_cast %382 : vector<1x4x384xf32> to vector<4x384xf32>
      %c39 = arith.constant 39 : index
      %384 = memref.load %arg2[%c39] : memref<98xf32, #tpu.memory_space<smem>>
      %385 = vector.broadcast %384 : f32 to vector<4x384xf32>
      %386 = arith.mulf %383, %385 : vector<4x384xf32>
      %387 = arith.addf %381, %386 : vector<4x384xf32>
      %c0_196 = arith.constant 0 : index
      %c0_197 = arith.constant 0 : index
      %c115 = arith.constant 115 : index
      %388 = vector.load %arg8[%c0_196, %c0_197, %c115] : memref<2x4x640xf32, #tpu.memory_space<vmem>>, vector<1x4x384xf32>
      %389 = vector.shape_cast %388 : vector<1x4x384xf32> to vector<4x384xf32>
      %c40 = arith.constant 40 : index
      %390 = memref.load %arg2[%c40] : memref<98xf32, #tpu.memory_space<smem>>
      %391 = vector.broadcast %390 : f32 to vector<4x384xf32>
      %392 = arith.mulf %389, %391 : vector<4x384xf32>
      %393 = arith.addf %387, %392 : vector<4x384xf32>
      %c0_198 = arith.constant 0 : index
      %c0_199 = arith.constant 0 : index
      %c116 = arith.constant 116 : index
      %394 = vector.load %arg8[%c0_198, %c0_199, %c116] : memref<2x4x640xf32, #tpu.memory_space<vmem>>, vector<1x4x384xf32>
      %395 = vector.shape_cast %394 : vector<1x4x384xf32> to vector<4x384xf32>
      %c41 = arith.constant 41 : index
      %396 = memref.load %arg2[%c41] : memref<98xf32, #tpu.memory_space<smem>>
      %397 = vector.broadcast %396 : f32 to vector<4x384xf32>
      %398 = arith.mulf %395, %397 : vector<4x384xf32>
      %399 = arith.addf %393, %398 : vector<4x384xf32>
      %c0_200 = arith.constant 0 : index
      %c0_201 = arith.constant 0 : index
      %c132 = arith.constant 132 : index
      %400 = vector.load %arg8[%c0_200, %c0_201, %c132] : memref<2x4x640xf32, #tpu.memory_space<vmem>>, vector<1x4x384xf32>
      %401 = vector.shape_cast %400 : vector<1x4x384xf32> to vector<4x384xf32>
      %c42 = arith.constant 42 : index
      %402 = memref.load %arg2[%c42] : memref<98xf32, #tpu.memory_space<smem>>
      %403 = vector.broadcast %402 : f32 to vector<4x384xf32>
      %404 = arith.mulf %401, %403 : vector<4x384xf32>
      %405 = arith.addf %399, %404 : vector<4x384xf32>
      %c0_202 = arith.constant 0 : index
      %c0_203 = arith.constant 0 : index
      %c133 = arith.constant 133 : index
      %406 = vector.load %arg8[%c0_202, %c0_203, %c133] : memref<2x4x640xf32, #tpu.memory_space<vmem>>, vector<1x4x384xf32>
      %407 = vector.shape_cast %406 : vector<1x4x384xf32> to vector<4x384xf32>
      %c43 = arith.constant 43 : index
      %408 = memref.load %arg2[%c43] : memref<98xf32, #tpu.memory_space<smem>>
      %409 = vector.broadcast %408 : f32 to vector<4x384xf32>
      %410 = arith.mulf %407, %409 : vector<4x384xf32>
      %411 = arith.addf %405, %410 : vector<4x384xf32>
      %c0_204 = arith.constant 0 : index
      %c0_205 = arith.constant 0 : index
      %c134 = arith.constant 134 : index
      %412 = vector.load %arg8[%c0_204, %c0_205, %c134] : memref<2x4x640xf32, #tpu.memory_space<vmem>>, vector<1x4x384xf32>
      %413 = vector.shape_cast %412 : vector<1x4x384xf32> to vector<4x384xf32>
      %c44_206 = arith.constant 44 : index
      %414 = memref.load %arg2[%c44_206] : memref<98xf32, #tpu.memory_space<smem>>
      %415 = vector.broadcast %414 : f32 to vector<4x384xf32>
      %416 = arith.mulf %413, %415 : vector<4x384xf32>
      %417 = arith.addf %411, %416 : vector<4x384xf32>
      %c0_207 = arith.constant 0 : index
      %c0_208 = arith.constant 0 : index
      %c135_209 = arith.constant 135 : index
      %418 = vector.load %arg8[%c0_207, %c0_208, %c135_209] : memref<2x4x640xf32, #tpu.memory_space<vmem>>, vector<1x4x384xf32>
      %419 = vector.shape_cast %418 : vector<1x4x384xf32> to vector<4x384xf32>
      %c45_210 = arith.constant 45 : index
      %420 = memref.load %arg2[%c45_210] : memref<98xf32, #tpu.memory_space<smem>>
      %421 = vector.broadcast %420 : f32 to vector<4x384xf32>
      %422 = arith.mulf %419, %421 : vector<4x384xf32>
      %423 = arith.addf %417, %422 : vector<4x384xf32>
      %c0_211 = arith.constant 0 : index
      %c0_212 = arith.constant 0 : index
      %c136 = arith.constant 136 : index
      %424 = vector.load %arg8[%c0_211, %c0_212, %c136] : memref<2x4x640xf32, #tpu.memory_space<vmem>>, vector<1x4x384xf32>
      %425 = vector.shape_cast %424 : vector<1x4x384xf32> to vector<4x384xf32>
      %c46_213 = arith.constant 46 : index
      %426 = memref.load %arg2[%c46_213] : memref<98xf32, #tpu.memory_space<smem>>
      %427 = vector.broadcast %426 : f32 to vector<4x384xf32>
      %428 = arith.mulf %425, %427 : vector<4x384xf32>
      %429 = arith.addf %423, %428 : vector<4x384xf32>
      %c0_214 = arith.constant 0 : index
      %c0_215 = arith.constant 0 : index
      %c137 = arith.constant 137 : index
      %430 = vector.load %arg8[%c0_214, %c0_215, %c137] : memref<2x4x640xf32, #tpu.memory_space<vmem>>, vector<1x4x384xf32>
      %431 = vector.shape_cast %430 : vector<1x4x384xf32> to vector<4x384xf32>
      %c47_216 = arith.constant 47 : index
      %432 = memref.load %arg2[%c47_216] : memref<98xf32, #tpu.memory_space<smem>>
      %433 = vector.broadcast %432 : f32 to vector<4x384xf32>
      %434 = arith.mulf %431, %433 : vector<4x384xf32>
      %435 = arith.addf %429, %434 : vector<4x384xf32>
      %c0_217 = arith.constant 0 : index
      %c0_218 = arith.constant 0 : index
      %c138 = arith.constant 138 : index
      %436 = vector.load %arg8[%c0_217, %c0_218, %c138] : memref<2x4x640xf32, #tpu.memory_space<vmem>>, vector<1x4x384xf32>
      %437 = vector.shape_cast %436 : vector<1x4x384xf32> to vector<4x384xf32>
      %c48_219 = arith.constant 48 : index
      %438 = memref.load %arg2[%c48_219] : memref<98xf32, #tpu.memory_space<smem>>
      %439 = vector.broadcast %438 : f32 to vector<4x384xf32>
      %440 = arith.mulf %437, %439 : vector<4x384xf32>
      %441 = arith.addf %435, %440 : vector<4x384xf32>
      %c1_220 = arith.constant 1 : index
      %c0_221 = arith.constant 0 : index
      %c0_222 = arith.constant 0 : index
      %442 = vector.load %arg8[%c1_220, %c0_221, %c0_222] : memref<2x4x640xf32, #tpu.memory_space<vmem>>, vector<1x4x384xf32>
      %443 = vector.shape_cast %442 : vector<1x4x384xf32> to vector<4x384xf32>
      %c49_223 = arith.constant 49 : index
      %444 = memref.load %arg2[%c49_223] : memref<98xf32, #tpu.memory_space<smem>>
      %445 = vector.broadcast %444 : f32 to vector<4x384xf32>
      %446 = arith.mulf %443, %445 : vector<4x384xf32>
      %447 = arith.addf %441, %446 : vector<4x384xf32>
      %c1_224 = arith.constant 1 : index
      %c0_225 = arith.constant 0 : index
      %c1_226 = arith.constant 1 : index
      %448 = vector.load %arg8[%c1_224, %c0_225, %c1_226] : memref<2x4x640xf32, #tpu.memory_space<vmem>>, vector<1x4x384xf32>
      %449 = vector.shape_cast %448 : vector<1x4x384xf32> to vector<4x384xf32>
      %c50_227 = arith.constant 50 : index
      %450 = memref.load %arg2[%c50_227] : memref<98xf32, #tpu.memory_space<smem>>
      %451 = vector.broadcast %450 : f32 to vector<4x384xf32>
      %452 = arith.mulf %449, %451 : vector<4x384xf32>
      %453 = arith.addf %447, %452 : vector<4x384xf32>
      %c1_228 = arith.constant 1 : index
      %c0_229 = arith.constant 0 : index
      %c2_230 = arith.constant 2 : index
      %454 = vector.load %arg8[%c1_228, %c0_229, %c2_230] : memref<2x4x640xf32, #tpu.memory_space<vmem>>, vector<1x4x384xf32>
      %455 = vector.shape_cast %454 : vector<1x4x384xf32> to vector<4x384xf32>
      %c51 = arith.constant 51 : index
      %456 = memref.load %arg2[%c51] : memref<98xf32, #tpu.memory_space<smem>>
      %457 = vector.broadcast %456 : f32 to vector<4x384xf32>
      %458 = arith.mulf %455, %457 : vector<4x384xf32>
      %459 = arith.addf %453, %458 : vector<4x384xf32>
      %c1_231 = arith.constant 1 : index
      %c0_232 = arith.constant 0 : index
      %c3_233 = arith.constant 3 : index
      %460 = vector.load %arg8[%c1_231, %c0_232, %c3_233] : memref<2x4x640xf32, #tpu.memory_space<vmem>>, vector<1x4x384xf32>
      %461 = vector.shape_cast %460 : vector<1x4x384xf32> to vector<4x384xf32>
      %c52 = arith.constant 52 : index
      %462 = memref.load %arg2[%c52] : memref<98xf32, #tpu.memory_space<smem>>
      %463 = vector.broadcast %462 : f32 to vector<4x384xf32>
      %464 = arith.mulf %461, %463 : vector<4x384xf32>
      %465 = arith.addf %459, %464 : vector<4x384xf32>
      %c1_234 = arith.constant 1 : index
      %c0_235 = arith.constant 0 : index
      %c4_236 = arith.constant 4 : index
      %466 = vector.load %arg8[%c1_234, %c0_235, %c4_236] : memref<2x4x640xf32, #tpu.memory_space<vmem>>, vector<1x4x384xf32>
      %467 = vector.shape_cast %466 : vector<1x4x384xf32> to vector<4x384xf32>
      %c53 = arith.constant 53 : index
      %468 = memref.load %arg2[%c53] : memref<98xf32, #tpu.memory_space<smem>>
      %469 = vector.broadcast %468 : f32 to vector<4x384xf32>
      %470 = arith.mulf %467, %469 : vector<4x384xf32>
      %471 = arith.addf %465, %470 : vector<4x384xf32>
      %c1_237 = arith.constant 1 : index
      %c0_238 = arith.constant 0 : index
      %c5_239 = arith.constant 5 : index
      %472 = vector.load %arg8[%c1_237, %c0_238, %c5_239] : memref<2x4x640xf32, #tpu.memory_space<vmem>>, vector<1x4x384xf32>
      %473 = vector.shape_cast %472 : vector<1x4x384xf32> to vector<4x384xf32>
      %c54 = arith.constant 54 : index
      %474 = memref.load %arg2[%c54] : memref<98xf32, #tpu.memory_space<smem>>
      %475 = vector.broadcast %474 : f32 to vector<4x384xf32>
      %476 = arith.mulf %473, %475 : vector<4x384xf32>
      %477 = arith.addf %471, %476 : vector<4x384xf32>
      %c1_240 = arith.constant 1 : index
      %c0_241 = arith.constant 0 : index
      %c6_242 = arith.constant 6 : index
      %478 = vector.load %arg8[%c1_240, %c0_241, %c6_242] : memref<2x4x640xf32, #tpu.memory_space<vmem>>, vector<1x4x384xf32>
      %479 = vector.shape_cast %478 : vector<1x4x384xf32> to vector<4x384xf32>
      %c55 = arith.constant 55 : index
      %480 = memref.load %arg2[%c55] : memref<98xf32, #tpu.memory_space<smem>>
      %481 = vector.broadcast %480 : f32 to vector<4x384xf32>
      %482 = arith.mulf %479, %481 : vector<4x384xf32>
      %483 = arith.addf %477, %482 : vector<4x384xf32>
      %c1_243 = arith.constant 1 : index
      %c0_244 = arith.constant 0 : index
      %c22_245 = arith.constant 22 : index
      %484 = vector.load %arg8[%c1_243, %c0_244, %c22_245] : memref<2x4x640xf32, #tpu.memory_space<vmem>>, vector<1x4x384xf32>
      %485 = vector.shape_cast %484 : vector<1x4x384xf32> to vector<4x384xf32>
      %c56 = arith.constant 56 : index
      %486 = memref.load %arg2[%c56] : memref<98xf32, #tpu.memory_space<smem>>
      %487 = vector.broadcast %486 : f32 to vector<4x384xf32>
      %488 = arith.mulf %485, %487 : vector<4x384xf32>
      %489 = arith.addf %483, %488 : vector<4x384xf32>
      %c1_246 = arith.constant 1 : index
      %c0_247 = arith.constant 0 : index
      %c23_248 = arith.constant 23 : index
      %490 = vector.load %arg8[%c1_246, %c0_247, %c23_248] : memref<2x4x640xf32, #tpu.memory_space<vmem>>, vector<1x4x384xf32>
      %491 = vector.shape_cast %490 : vector<1x4x384xf32> to vector<4x384xf32>
      %c57 = arith.constant 57 : index
      %492 = memref.load %arg2[%c57] : memref<98xf32, #tpu.memory_space<smem>>
      %493 = vector.broadcast %492 : f32 to vector<4x384xf32>
      %494 = arith.mulf %491, %493 : vector<4x384xf32>
      %495 = arith.addf %489, %494 : vector<4x384xf32>
      %c1_249 = arith.constant 1 : index
      %c0_250 = arith.constant 0 : index
      %c24_251 = arith.constant 24 : index
      %496 = vector.load %arg8[%c1_249, %c0_250, %c24_251] : memref<2x4x640xf32, #tpu.memory_space<vmem>>, vector<1x4x384xf32>
      %497 = vector.shape_cast %496 : vector<1x4x384xf32> to vector<4x384xf32>
      %c58 = arith.constant 58 : index
      %498 = memref.load %arg2[%c58] : memref<98xf32, #tpu.memory_space<smem>>
      %499 = vector.broadcast %498 : f32 to vector<4x384xf32>
      %500 = arith.mulf %497, %499 : vector<4x384xf32>
      %501 = arith.addf %495, %500 : vector<4x384xf32>
      %c1_252 = arith.constant 1 : index
      %c0_253 = arith.constant 0 : index
      %c25_254 = arith.constant 25 : index
      %502 = vector.load %arg8[%c1_252, %c0_253, %c25_254] : memref<2x4x640xf32, #tpu.memory_space<vmem>>, vector<1x4x384xf32>
      %503 = vector.shape_cast %502 : vector<1x4x384xf32> to vector<4x384xf32>
      %c59 = arith.constant 59 : index
      %504 = memref.load %arg2[%c59] : memref<98xf32, #tpu.memory_space<smem>>
      %505 = vector.broadcast %504 : f32 to vector<4x384xf32>
      %506 = arith.mulf %503, %505 : vector<4x384xf32>
      %507 = arith.addf %501, %506 : vector<4x384xf32>
      %c1_255 = arith.constant 1 : index
      %c0_256 = arith.constant 0 : index
      %c26_257 = arith.constant 26 : index
      %508 = vector.load %arg8[%c1_255, %c0_256, %c26_257] : memref<2x4x640xf32, #tpu.memory_space<vmem>>, vector<1x4x384xf32>
      %509 = vector.shape_cast %508 : vector<1x4x384xf32> to vector<4x384xf32>
      %c60 = arith.constant 60 : index
      %510 = memref.load %arg2[%c60] : memref<98xf32, #tpu.memory_space<smem>>
      %511 = vector.broadcast %510 : f32 to vector<4x384xf32>
      %512 = arith.mulf %509, %511 : vector<4x384xf32>
      %513 = arith.addf %507, %512 : vector<4x384xf32>
      %c1_258 = arith.constant 1 : index
      %c0_259 = arith.constant 0 : index
      %c27_260 = arith.constant 27 : index
      %514 = vector.load %arg8[%c1_258, %c0_259, %c27_260] : memref<2x4x640xf32, #tpu.memory_space<vmem>>, vector<1x4x384xf32>
      %515 = vector.shape_cast %514 : vector<1x4x384xf32> to vector<4x384xf32>
      %c61 = arith.constant 61 : index
      %516 = memref.load %arg2[%c61] : memref<98xf32, #tpu.memory_space<smem>>
      %517 = vector.broadcast %516 : f32 to vector<4x384xf32>
      %518 = arith.mulf %515, %517 : vector<4x384xf32>
      %519 = arith.addf %513, %518 : vector<4x384xf32>
      %c1_261 = arith.constant 1 : index
      %c0_262 = arith.constant 0 : index
      %c28_263 = arith.constant 28 : index
      %520 = vector.load %arg8[%c1_261, %c0_262, %c28_263] : memref<2x4x640xf32, #tpu.memory_space<vmem>>, vector<1x4x384xf32>
      %521 = vector.shape_cast %520 : vector<1x4x384xf32> to vector<4x384xf32>
      %c62 = arith.constant 62 : index
      %522 = memref.load %arg2[%c62] : memref<98xf32, #tpu.memory_space<smem>>
      %523 = vector.broadcast %522 : f32 to vector<4x384xf32>
      %524 = arith.mulf %521, %523 : vector<4x384xf32>
      %525 = arith.addf %519, %524 : vector<4x384xf32>
      %c1_264 = arith.constant 1 : index
      %c0_265 = arith.constant 0 : index
      %c44_266 = arith.constant 44 : index
      %526 = vector.load %arg8[%c1_264, %c0_265, %c44_266] : memref<2x4x640xf32, #tpu.memory_space<vmem>>, vector<1x4x384xf32>
      %527 = vector.shape_cast %526 : vector<1x4x384xf32> to vector<4x384xf32>
      %c63 = arith.constant 63 : index
      %528 = memref.load %arg2[%c63] : memref<98xf32, #tpu.memory_space<smem>>
      %529 = vector.broadcast %528 : f32 to vector<4x384xf32>
      %530 = arith.mulf %527, %529 : vector<4x384xf32>
      %531 = arith.addf %525, %530 : vector<4x384xf32>
      %c1_267 = arith.constant 1 : index
      %c0_268 = arith.constant 0 : index
      %c45_269 = arith.constant 45 : index
      %532 = vector.load %arg8[%c1_267, %c0_268, %c45_269] : memref<2x4x640xf32, #tpu.memory_space<vmem>>, vector<1x4x384xf32>
      %533 = vector.shape_cast %532 : vector<1x4x384xf32> to vector<4x384xf32>
      %c64 = arith.constant 64 : index
      %534 = memref.load %arg2[%c64] : memref<98xf32, #tpu.memory_space<smem>>
      %535 = vector.broadcast %534 : f32 to vector<4x384xf32>
      %536 = arith.mulf %533, %535 : vector<4x384xf32>
      %537 = arith.addf %531, %536 : vector<4x384xf32>
      %c1_270 = arith.constant 1 : index
      %c0_271 = arith.constant 0 : index
      %c46_272 = arith.constant 46 : index
      %538 = vector.load %arg8[%c1_270, %c0_271, %c46_272] : memref<2x4x640xf32, #tpu.memory_space<vmem>>, vector<1x4x384xf32>
      %539 = vector.shape_cast %538 : vector<1x4x384xf32> to vector<4x384xf32>
      %c65 = arith.constant 65 : index
      %540 = memref.load %arg2[%c65] : memref<98xf32, #tpu.memory_space<smem>>
      %541 = vector.broadcast %540 : f32 to vector<4x384xf32>
      %542 = arith.mulf %539, %541 : vector<4x384xf32>
      %543 = arith.addf %537, %542 : vector<4x384xf32>
      %c1_273 = arith.constant 1 : index
      %c0_274 = arith.constant 0 : index
      %c47_275 = arith.constant 47 : index
      %544 = vector.load %arg8[%c1_273, %c0_274, %c47_275] : memref<2x4x640xf32, #tpu.memory_space<vmem>>, vector<1x4x384xf32>
      %545 = vector.shape_cast %544 : vector<1x4x384xf32> to vector<4x384xf32>
      %c66_276 = arith.constant 66 : index
      %546 = memref.load %arg2[%c66_276] : memref<98xf32, #tpu.memory_space<smem>>
      %547 = vector.broadcast %546 : f32 to vector<4x384xf32>
      %548 = arith.mulf %545, %547 : vector<4x384xf32>
      %549 = arith.addf %543, %548 : vector<4x384xf32>
      %c1_277 = arith.constant 1 : index
      %c0_278 = arith.constant 0 : index
      %c48_279 = arith.constant 48 : index
      %550 = vector.load %arg8[%c1_277, %c0_278, %c48_279] : memref<2x4x640xf32, #tpu.memory_space<vmem>>, vector<1x4x384xf32>
      %551 = vector.shape_cast %550 : vector<1x4x384xf32> to vector<4x384xf32>
      %c67_280 = arith.constant 67 : index
      %552 = memref.load %arg2[%c67_280] : memref<98xf32, #tpu.memory_space<smem>>
      %553 = vector.broadcast %552 : f32 to vector<4x384xf32>
      %554 = arith.mulf %551, %553 : vector<4x384xf32>
      %555 = arith.addf %549, %554 : vector<4x384xf32>
      %c1_281 = arith.constant 1 : index
      %c0_282 = arith.constant 0 : index
      %c49_283 = arith.constant 49 : index
      %556 = vector.load %arg8[%c1_281, %c0_282, %c49_283] : memref<2x4x640xf32, #tpu.memory_space<vmem>>, vector<1x4x384xf32>
      %557 = vector.shape_cast %556 : vector<1x4x384xf32> to vector<4x384xf32>
      %c68_284 = arith.constant 68 : index
      %558 = memref.load %arg2[%c68_284] : memref<98xf32, #tpu.memory_space<smem>>
      %559 = vector.broadcast %558 : f32 to vector<4x384xf32>
      %560 = arith.mulf %557, %559 : vector<4x384xf32>
      %561 = arith.addf %555, %560 : vector<4x384xf32>
      %c1_285 = arith.constant 1 : index
      %c0_286 = arith.constant 0 : index
      %c50_287 = arith.constant 50 : index
      %562 = vector.load %arg8[%c1_285, %c0_286, %c50_287] : memref<2x4x640xf32, #tpu.memory_space<vmem>>, vector<1x4x384xf32>
      %563 = vector.shape_cast %562 : vector<1x4x384xf32> to vector<4x384xf32>
      %c69_288 = arith.constant 69 : index
      %564 = memref.load %arg2[%c69_288] : memref<98xf32, #tpu.memory_space<smem>>
      %565 = vector.broadcast %564 : f32 to vector<4x384xf32>
      %566 = arith.mulf %563, %565 : vector<4x384xf32>
      %567 = arith.addf %561, %566 : vector<4x384xf32>
      %c1_289 = arith.constant 1 : index
      %c0_290 = arith.constant 0 : index
      %c66_291 = arith.constant 66 : index
      %568 = vector.load %arg8[%c1_289, %c0_290, %c66_291] : memref<2x4x640xf32, #tpu.memory_space<vmem>>, vector<1x4x384xf32>
      %569 = vector.shape_cast %568 : vector<1x4x384xf32> to vector<4x384xf32>
      %c70_292 = arith.constant 70 : index
      %570 = memref.load %arg2[%c70_292] : memref<98xf32, #tpu.memory_space<smem>>
      %571 = vector.broadcast %570 : f32 to vector<4x384xf32>
      %572 = arith.mulf %569, %571 : vector<4x384xf32>
      %573 = arith.addf %567, %572 : vector<4x384xf32>
      %c1_293 = arith.constant 1 : index
      %c0_294 = arith.constant 0 : index
      %c67_295 = arith.constant 67 : index
      %574 = vector.load %arg8[%c1_293, %c0_294, %c67_295] : memref<2x4x640xf32, #tpu.memory_space<vmem>>, vector<1x4x384xf32>
      %575 = vector.shape_cast %574 : vector<1x4x384xf32> to vector<4x384xf32>
      %c71_296 = arith.constant 71 : index
      %576 = memref.load %arg2[%c71_296] : memref<98xf32, #tpu.memory_space<smem>>
      %577 = vector.broadcast %576 : f32 to vector<4x384xf32>
      %578 = arith.mulf %575, %577 : vector<4x384xf32>
      %579 = arith.addf %573, %578 : vector<4x384xf32>
      %c1_297 = arith.constant 1 : index
      %c0_298 = arith.constant 0 : index
      %c68_299 = arith.constant 68 : index
      %580 = vector.load %arg8[%c1_297, %c0_298, %c68_299] : memref<2x4x640xf32, #tpu.memory_space<vmem>>, vector<1x4x384xf32>
      %581 = vector.shape_cast %580 : vector<1x4x384xf32> to vector<4x384xf32>
      %c72_300 = arith.constant 72 : index
      %582 = memref.load %arg2[%c72_300] : memref<98xf32, #tpu.memory_space<smem>>
      %583 = vector.broadcast %582 : f32 to vector<4x384xf32>
      %584 = arith.mulf %581, %583 : vector<4x384xf32>
      %585 = arith.addf %579, %584 : vector<4x384xf32>
      %c1_301 = arith.constant 1 : index
      %c0_302 = arith.constant 0 : index
      %c69_303 = arith.constant 69 : index
      %586 = vector.load %arg8[%c1_301, %c0_302, %c69_303] : memref<2x4x640xf32, #tpu.memory_space<vmem>>, vector<1x4x384xf32>
      %587 = vector.shape_cast %586 : vector<1x4x384xf32> to vector<4x384xf32>
      %c73 = arith.constant 73 : index
      %588 = memref.load %arg2[%c73] : memref<98xf32, #tpu.memory_space<smem>>
      %589 = vector.broadcast %588 : f32 to vector<4x384xf32>
      %590 = arith.mulf %587, %589 : vector<4x384xf32>
      %591 = arith.addf %585, %590 : vector<4x384xf32>
      %c1_304 = arith.constant 1 : index
      %c0_305 = arith.constant 0 : index
      %c70_306 = arith.constant 70 : index
      %592 = vector.load %arg8[%c1_304, %c0_305, %c70_306] : memref<2x4x640xf32, #tpu.memory_space<vmem>>, vector<1x4x384xf32>
      %593 = vector.shape_cast %592 : vector<1x4x384xf32> to vector<4x384xf32>
      %c74 = arith.constant 74 : index
      %594 = memref.load %arg2[%c74] : memref<98xf32, #tpu.memory_space<smem>>
      %595 = vector.broadcast %594 : f32 to vector<4x384xf32>
      %596 = arith.mulf %593, %595 : vector<4x384xf32>
      %597 = arith.addf %591, %596 : vector<4x384xf32>
      %c1_307 = arith.constant 1 : index
      %c0_308 = arith.constant 0 : index
      %c71_309 = arith.constant 71 : index
      %598 = vector.load %arg8[%c1_307, %c0_308, %c71_309] : memref<2x4x640xf32, #tpu.memory_space<vmem>>, vector<1x4x384xf32>
      %599 = vector.shape_cast %598 : vector<1x4x384xf32> to vector<4x384xf32>
      %c75 = arith.constant 75 : index
      %600 = memref.load %arg2[%c75] : memref<98xf32, #tpu.memory_space<smem>>
      %601 = vector.broadcast %600 : f32 to vector<4x384xf32>
      %602 = arith.mulf %599, %601 : vector<4x384xf32>
      %603 = arith.addf %597, %602 : vector<4x384xf32>
      %c1_310 = arith.constant 1 : index
      %c0_311 = arith.constant 0 : index
      %c72_312 = arith.constant 72 : index
      %604 = vector.load %arg8[%c1_310, %c0_311, %c72_312] : memref<2x4x640xf32, #tpu.memory_space<vmem>>, vector<1x4x384xf32>
      %605 = vector.shape_cast %604 : vector<1x4x384xf32> to vector<4x384xf32>
      %c76 = arith.constant 76 : index
      %606 = memref.load %arg2[%c76] : memref<98xf32, #tpu.memory_space<smem>>
      %607 = vector.broadcast %606 : f32 to vector<4x384xf32>
      %608 = arith.mulf %605, %607 : vector<4x384xf32>
      %609 = arith.addf %603, %608 : vector<4x384xf32>
      %c1_313 = arith.constant 1 : index
      %c0_314 = arith.constant 0 : index
      %c88_315 = arith.constant 88 : index
      %610 = vector.load %arg8[%c1_313, %c0_314, %c88_315] : memref<2x4x640xf32, #tpu.memory_space<vmem>>, vector<1x4x384xf32>
      %611 = vector.shape_cast %610 : vector<1x4x384xf32> to vector<4x384xf32>
      %c77 = arith.constant 77 : index
      %612 = memref.load %arg2[%c77] : memref<98xf32, #tpu.memory_space<smem>>
      %613 = vector.broadcast %612 : f32 to vector<4x384xf32>
      %614 = arith.mulf %611, %613 : vector<4x384xf32>
      %615 = arith.addf %609, %614 : vector<4x384xf32>
      %c1_316 = arith.constant 1 : index
      %c0_317 = arith.constant 0 : index
      %c89_318 = arith.constant 89 : index
      %616 = vector.load %arg8[%c1_316, %c0_317, %c89_318] : memref<2x4x640xf32, #tpu.memory_space<vmem>>, vector<1x4x384xf32>
      %617 = vector.shape_cast %616 : vector<1x4x384xf32> to vector<4x384xf32>
      %c78 = arith.constant 78 : index
      %618 = memref.load %arg2[%c78] : memref<98xf32, #tpu.memory_space<smem>>
      %619 = vector.broadcast %618 : f32 to vector<4x384xf32>
      %620 = arith.mulf %617, %619 : vector<4x384xf32>
      %621 = arith.addf %615, %620 : vector<4x384xf32>
      %c1_319 = arith.constant 1 : index
      %c0_320 = arith.constant 0 : index
      %c90_321 = arith.constant 90 : index
      %622 = vector.load %arg8[%c1_319, %c0_320, %c90_321] : memref<2x4x640xf32, #tpu.memory_space<vmem>>, vector<1x4x384xf32>
      %623 = vector.shape_cast %622 : vector<1x4x384xf32> to vector<4x384xf32>
      %c79 = arith.constant 79 : index
      %624 = memref.load %arg2[%c79] : memref<98xf32, #tpu.memory_space<smem>>
      %625 = vector.broadcast %624 : f32 to vector<4x384xf32>
      %626 = arith.mulf %623, %625 : vector<4x384xf32>
      %627 = arith.addf %621, %626 : vector<4x384xf32>
      %c1_322 = arith.constant 1 : index
      %c0_323 = arith.constant 0 : index
      %c91_324 = arith.constant 91 : index
      %628 = vector.load %arg8[%c1_322, %c0_323, %c91_324] : memref<2x4x640xf32, #tpu.memory_space<vmem>>, vector<1x4x384xf32>
      %629 = vector.shape_cast %628 : vector<1x4x384xf32> to vector<4x384xf32>
      %c80 = arith.constant 80 : index
      %630 = memref.load %arg2[%c80] : memref<98xf32, #tpu.memory_space<smem>>
      %631 = vector.broadcast %630 : f32 to vector<4x384xf32>
      %632 = arith.mulf %629, %631 : vector<4x384xf32>
      %633 = arith.addf %627, %632 : vector<4x384xf32>
      %c1_325 = arith.constant 1 : index
      %c0_326 = arith.constant 0 : index
      %c92_327 = arith.constant 92 : index
      %634 = vector.load %arg8[%c1_325, %c0_326, %c92_327] : memref<2x4x640xf32, #tpu.memory_space<vmem>>, vector<1x4x384xf32>
      %635 = vector.shape_cast %634 : vector<1x4x384xf32> to vector<4x384xf32>
      %c81 = arith.constant 81 : index
      %636 = memref.load %arg2[%c81] : memref<98xf32, #tpu.memory_space<smem>>
      %637 = vector.broadcast %636 : f32 to vector<4x384xf32>
      %638 = arith.mulf %635, %637 : vector<4x384xf32>
      %639 = arith.addf %633, %638 : vector<4x384xf32>
      %c1_328 = arith.constant 1 : index
      %c0_329 = arith.constant 0 : index
      %c93_330 = arith.constant 93 : index
      %640 = vector.load %arg8[%c1_328, %c0_329, %c93_330] : memref<2x4x640xf32, #tpu.memory_space<vmem>>, vector<1x4x384xf32>
      %641 = vector.shape_cast %640 : vector<1x4x384xf32> to vector<4x384xf32>
      %c82 = arith.constant 82 : index
      %642 = memref.load %arg2[%c82] : memref<98xf32, #tpu.memory_space<smem>>
      %643 = vector.broadcast %642 : f32 to vector<4x384xf32>
      %644 = arith.mulf %641, %643 : vector<4x384xf32>
      %645 = arith.addf %639, %644 : vector<4x384xf32>
      %c1_331 = arith.constant 1 : index
      %c0_332 = arith.constant 0 : index
      %c94_333 = arith.constant 94 : index
      %646 = vector.load %arg8[%c1_331, %c0_332, %c94_333] : memref<2x4x640xf32, #tpu.memory_space<vmem>>, vector<1x4x384xf32>
      %647 = vector.shape_cast %646 : vector<1x4x384xf32> to vector<4x384xf32>
      %c83 = arith.constant 83 : index
      %648 = memref.load %arg2[%c83] : memref<98xf32, #tpu.memory_space<smem>>
      %649 = vector.broadcast %648 : f32 to vector<4x384xf32>
      %650 = arith.mulf %647, %649 : vector<4x384xf32>
      %651 = arith.addf %645, %650 : vector<4x384xf32>
      %c1_334 = arith.constant 1 : index
      %c0_335 = arith.constant 0 : index
      %c110_336 = arith.constant 110 : index
      %652 = vector.load %arg8[%c1_334, %c0_335, %c110_336] : memref<2x4x640xf32, #tpu.memory_space<vmem>>, vector<1x4x384xf32>
      %653 = vector.shape_cast %652 : vector<1x4x384xf32> to vector<4x384xf32>
      %c84 = arith.constant 84 : index
      %654 = memref.load %arg2[%c84] : memref<98xf32, #tpu.memory_space<smem>>
      %655 = vector.broadcast %654 : f32 to vector<4x384xf32>
      %656 = arith.mulf %653, %655 : vector<4x384xf32>
      %657 = arith.addf %651, %656 : vector<4x384xf32>
      %c1_337 = arith.constant 1 : index
      %c0_338 = arith.constant 0 : index
      %c111_339 = arith.constant 111 : index
      %658 = vector.load %arg8[%c1_337, %c0_338, %c111_339] : memref<2x4x640xf32, #tpu.memory_space<vmem>>, vector<1x4x384xf32>
      %659 = vector.shape_cast %658 : vector<1x4x384xf32> to vector<4x384xf32>
      %c85 = arith.constant 85 : index
      %660 = memref.load %arg2[%c85] : memref<98xf32, #tpu.memory_space<smem>>
      %661 = vector.broadcast %660 : f32 to vector<4x384xf32>
      %662 = arith.mulf %659, %661 : vector<4x384xf32>
      %663 = arith.addf %657, %662 : vector<4x384xf32>
      %c1_340 = arith.constant 1 : index
      %c0_341 = arith.constant 0 : index
      %c112_342 = arith.constant 112 : index
      %664 = vector.load %arg8[%c1_340, %c0_341, %c112_342] : memref<2x4x640xf32, #tpu.memory_space<vmem>>, vector<1x4x384xf32>
      %665 = vector.shape_cast %664 : vector<1x4x384xf32> to vector<4x384xf32>
      %c86 = arith.constant 86 : index
      %666 = memref.load %arg2[%c86] : memref<98xf32, #tpu.memory_space<smem>>
      %667 = vector.broadcast %666 : f32 to vector<4x384xf32>
      %668 = arith.mulf %665, %667 : vector<4x384xf32>
      %669 = arith.addf %663, %668 : vector<4x384xf32>
      %c1_343 = arith.constant 1 : index
      %c0_344 = arith.constant 0 : index
      %c113_345 = arith.constant 113 : index
      %670 = vector.load %arg8[%c1_343, %c0_344, %c113_345] : memref<2x4x640xf32, #tpu.memory_space<vmem>>, vector<1x4x384xf32>
      %671 = vector.shape_cast %670 : vector<1x4x384xf32> to vector<4x384xf32>
      %c87 = arith.constant 87 : index
      %672 = memref.load %arg2[%c87] : memref<98xf32, #tpu.memory_space<smem>>
      %673 = vector.broadcast %672 : f32 to vector<4x384xf32>
      %674 = arith.mulf %671, %673 : vector<4x384xf32>
      %675 = arith.addf %669, %674 : vector<4x384xf32>
      %c1_346 = arith.constant 1 : index
      %c0_347 = arith.constant 0 : index
      %c114_348 = arith.constant 114 : index
      %676 = vector.load %arg8[%c1_346, %c0_347, %c114_348] : memref<2x4x640xf32, #tpu.memory_space<vmem>>, vector<1x4x384xf32>
      %677 = vector.shape_cast %676 : vector<1x4x384xf32> to vector<4x384xf32>
      %c88_349 = arith.constant 88 : index
      %678 = memref.load %arg2[%c88_349] : memref<98xf32, #tpu.memory_space<smem>>
      %679 = vector.broadcast %678 : f32 to vector<4x384xf32>
      %680 = arith.mulf %677, %679 : vector<4x384xf32>
      %681 = arith.addf %675, %680 : vector<4x384xf32>
      %c1_350 = arith.constant 1 : index
      %c0_351 = arith.constant 0 : index
      %c115_352 = arith.constant 115 : index
      %682 = vector.load %arg8[%c1_350, %c0_351, %c115_352] : memref<2x4x640xf32, #tpu.memory_space<vmem>>, vector<1x4x384xf32>
      %683 = vector.shape_cast %682 : vector<1x4x384xf32> to vector<4x384xf32>
      %c89_353 = arith.constant 89 : index
      %684 = memref.load %arg2[%c89_353] : memref<98xf32, #tpu.memory_space<smem>>
      %685 = vector.broadcast %684 : f32 to vector<4x384xf32>
      %686 = arith.mulf %683, %685 : vector<4x384xf32>
      %687 = arith.addf %681, %686 : vector<4x384xf32>
      %c1_354 = arith.constant 1 : index
      %c0_355 = arith.constant 0 : index
      %c116_356 = arith.constant 116 : index
      %688 = vector.load %arg8[%c1_354, %c0_355, %c116_356] : memref<2x4x640xf32, #tpu.memory_space<vmem>>, vector<1x4x384xf32>
      %689 = vector.shape_cast %688 : vector<1x4x384xf32> to vector<4x384xf32>
      %c90_357 = arith.constant 90 : index
      %690 = memref.load %arg2[%c90_357] : memref<98xf32, #tpu.memory_space<smem>>
      %691 = vector.broadcast %690 : f32 to vector<4x384xf32>
      %692 = arith.mulf %689, %691 : vector<4x384xf32>
      %693 = arith.addf %687, %692 : vector<4x384xf32>
      %c1_358 = arith.constant 1 : index
      %c0_359 = arith.constant 0 : index
      %c132_360 = arith.constant 132 : index
      %694 = vector.load %arg8[%c1_358, %c0_359, %c132_360] : memref<2x4x640xf32, #tpu.memory_space<vmem>>, vector<1x4x384xf32>
      %695 = vector.shape_cast %694 : vector<1x4x384xf32> to vector<4x384xf32>
      %c91_361 = arith.constant 91 : index
      %696 = memref.load %arg2[%c91_361] : memref<98xf32, #tpu.memory_space<smem>>
      %697 = vector.broadcast %696 : f32 to vector<4x384xf32>
      %698 = arith.mulf %695, %697 : vector<4x384xf32>
      %699 = arith.addf %693, %698 : vector<4x384xf32>
      %c1_362 = arith.constant 1 : index
      %c0_363 = arith.constant 0 : index
      %c133_364 = arith.constant 133 : index
      %700 = vector.load %arg8[%c1_362, %c0_363, %c133_364] : memref<2x4x640xf32, #tpu.memory_space<vmem>>, vector<1x4x384xf32>
      %701 = vector.shape_cast %700 : vector<1x4x384xf32> to vector<4x384xf32>
      %c92_365 = arith.constant 92 : index
      %702 = memref.load %arg2[%c92_365] : memref<98xf32, #tpu.memory_space<smem>>
      %703 = vector.broadcast %702 : f32 to vector<4x384xf32>
      %704 = arith.mulf %701, %703 : vector<4x384xf32>
      %705 = arith.addf %699, %704 : vector<4x384xf32>
      %c1_366 = arith.constant 1 : index
      %c0_367 = arith.constant 0 : index
      %c134_368 = arith.constant 134 : index
      %706 = vector.load %arg8[%c1_366, %c0_367, %c134_368] : memref<2x4x640xf32, #tpu.memory_space<vmem>>, vector<1x4x384xf32>
      %707 = vector.shape_cast %706 : vector<1x4x384xf32> to vector<4x384xf32>
      %c93_369 = arith.constant 93 : index
      %708 = memref.load %arg2[%c93_369] : memref<98xf32, #tpu.memory_space<smem>>
      %709 = vector.broadcast %708 : f32 to vector<4x384xf32>
      %710 = arith.mulf %707, %709 : vector<4x384xf32>
      %711 = arith.addf %705, %710 : vector<4x384xf32>
      %c1_370 = arith.constant 1 : index
      %c0_371 = arith.constant 0 : index
      %c135_372 = arith.constant 135 : index
      %712 = vector.load %arg8[%c1_370, %c0_371, %c135_372] : memref<2x4x640xf32, #tpu.memory_space<vmem>>, vector<1x4x384xf32>
      %713 = vector.shape_cast %712 : vector<1x4x384xf32> to vector<4x384xf32>
      %c94_373 = arith.constant 94 : index
      %714 = memref.load %arg2[%c94_373] : memref<98xf32, #tpu.memory_space<smem>>
      %715 = vector.broadcast %714 : f32 to vector<4x384xf32>
      %716 = arith.mulf %713, %715 : vector<4x384xf32>
      %717 = arith.addf %711, %716 : vector<4x384xf32>
      %c1_374 = arith.constant 1 : index
      %c0_375 = arith.constant 0 : index
      %c136_376 = arith.constant 136 : index
      %718 = vector.load %arg8[%c1_374, %c0_375, %c136_376] : memref<2x4x640xf32, #tpu.memory_space<vmem>>, vector<1x4x384xf32>
      %719 = vector.shape_cast %718 : vector<1x4x384xf32> to vector<4x384xf32>
      %c95 = arith.constant 95 : index
      %720 = memref.load %arg2[%c95] : memref<98xf32, #tpu.memory_space<smem>>
      %721 = vector.broadcast %720 : f32 to vector<4x384xf32>
      %722 = arith.mulf %719, %721 : vector<4x384xf32>
      %723 = arith.addf %717, %722 : vector<4x384xf32>
      %c1_377 = arith.constant 1 : index
      %c0_378 = arith.constant 0 : index
      %c137_379 = arith.constant 137 : index
      %724 = vector.load %arg8[%c1_377, %c0_378, %c137_379] : memref<2x4x640xf32, #tpu.memory_space<vmem>>, vector<1x4x384xf32>
      %725 = vector.shape_cast %724 : vector<1x4x384xf32> to vector<4x384xf32>
      %c96 = arith.constant 96 : index
      %726 = memref.load %arg2[%c96] : memref<98xf32, #tpu.memory_space<smem>>
      %727 = vector.broadcast %726 : f32 to vector<4x384xf32>
      %728 = arith.mulf %725, %727 : vector<4x384xf32>
      %729 = arith.addf %723, %728 : vector<4x384xf32>
      %c1_380 = arith.constant 1 : index
      %c0_381 = arith.constant 0 : index
      %c138_382 = arith.constant 138 : index
      %730 = vector.load %arg8[%c1_380, %c0_381, %c138_382] : memref<2x4x640xf32, #tpu.memory_space<vmem>>, vector<1x4x384xf32>
      %731 = vector.shape_cast %730 : vector<1x4x384xf32> to vector<4x384xf32>
      %c97 = arith.constant 97 : index
      %732 = memref.load %arg2[%c97] : memref<98xf32, #tpu.memory_space<smem>>
      %733 = vector.broadcast %732 : f32 to vector<4x384xf32>
      %734 = arith.mulf %731, %733 : vector<4x384xf32>
      %735 = arith.addf %729, %734 : vector<4x384xf32>
      %736 = arith.negf %735 : vector<4x384xf32>
      %737 = math.exp %736 : vector<4x384xf32>
      %cst_383 = arith.constant 1.000000e+00 : f32
      %738 = vector.broadcast %cst_383 : f32 to vector<4x384xf32>
      %739 = arith.addf %738, %737 : vector<4x384xf32>
      %740 = arith.divf %738, %739 : vector<4x384xf32>
      %c0_384 = arith.constant 0 : index
      %c0_385 = arith.constant 0 : index
      %c0_386 = arith.constant 0 : index
      %741 = vector.load %arg5[%c0_384, %c0_385, %c0_386] : memref<1x4x384xf32, #tpu.memory_space<vmem>>, vector<1x4x384xf32>
      %742 = vector.shape_cast %741 : vector<1x4x384xf32> to vector<4x384xf32>
      %743 = vector.shape_cast %740 : vector<4x384xf32> to vector<1x4x384xf32>
      tpu.vector_store %arg5[%c0_384, %c0_385, %c0_386], %743 {strides = array<i32>} : memref<1x4x384xf32, #tpu.memory_space<vmem>>, vector<1x4x384xf32>,
    } else {
    }
    return
  }
  func.func @transform_0(%arg0: i32, %arg1: i32) -> i32 {
    %c0_i32 = arith.constant 0 : i32
    %c0_i32_0 = arith.constant 0 : i32
    return %c0_i32 : i32
  }
  func.func @transform_1(%arg0: i32, %arg1: i32) -> i32 {
    %c0_i32 = arith.constant 0 : i32
    %c0_i32_0 = arith.constant 0 : i32
    return %c0_i32 : i32
  }
  func.func @transform_2(%arg0: i32, %arg1: i32) -> (i32, i32, i32) {
    %c0_i32 = arith.constant 0 : i32
    %c0_i32_0 = arith.constant 0 : i32
    return %arg0, %arg1, %c0_i32 : i32, i32, i32
  }
  func.func @transform_3(%arg0: i32, %arg1: i32) -> (i32, i32, i32) {
    %c0_i32 = arith.constant 0 : i32
    %c0_i32_0 = arith.constant 0 : i32
    %c0_i32_1 = arith.constant 0 : i32
    return %arg0, %c0_i32, %c0_i32_0 : i32, i32, i32
  }
}

</mosaic_0001>

<llo_original>
// kernel: tpu_custom_call.1
$region0: #{tpu_custom_call.1}
  #allocation0 [shape = 'u32[]', space=smem, size = 0x4, offset = 0x4, fixed_abs, tag = 'smem constant byte address 0x4 - core index']
  #allocation1 [shape = 'u32[144,128]{1,0:T(1,128)}', space=vmem, size = 0x12000, scoped, tag = 'internal scratch']
  #allocation2 [shape = 'f32[4,256]{1,0:T(4,128)}', space=vmem, size = 0x1000, scoped, tag = 'scratch operand']
  #allocation3 [shape = 'f32[4,256]{1,0:T(4,128)}', space=vmem, size = 0x1000, scoped, tag = 'scratch operand']
  #allocation4 [shape = 'f32[2,4,640]{2,1,0:T(4,128)}', space=vmem, size = 0x5000, scoped, tag = 'scratch operand']
  #allocation5 [shape = 'f32[1]{0:T(128)S(6)}', space=smem, size = 0x200, scoped, tag = 'scoped memory for tpu_custom_call.1']
  %s0 = inlined_call_operand.vmem [shape: f32[98], index: 0, kind: input, shape index: {}]
  %s1 = inlined_call_operand.<no memory space> [shape: f32[1], index: 1, kind: input, shape index: {}]
  %s2 = inlined_call_operand.hbm [shape: f32[8,4,256], index: 2, kind: input, shape index: {}]
  %s3 = inlined_call_operand.hbm [shape: f32[2,4,384], index: 3, kind: output, shape index: {}]
  %s4 = sld [smem:[#allocation0]]
  $region65: #{tpu_custom_call.1} parent=0
    _
  %s6 = ssub.s32 1, %s4
  %s7 = scalar_select 0, %s6, %s4
  %8 = sst [smem:[#allocation5]] %s1
  $region1: #{tpu_custom_call.1} parent=0
    #allocation6 [shape = 'u8[512]{0}', space=smem, size = 0x200, scoped, tag = 'input window, operand 0, single buffered']
    #allocation7 [shape = 's32[2]{0}', space=sflag, size = 0x8, scoped, tag = 'scoped memory for tpu_custom_call.1']
    #allocation8 [shape = 's32[2]{0}', space=sflag, size = 0x8, scoped, tag = 'scoped memory for tpu_custom_call.1']
    #allocation9 [shape = 's32[2]{0}', space=sflag, size = 0x8, scoped, tag = 'scoped memory for tpu_custom_call.1']
    #allocation10 [shape = 'u8[32768]{0}', space=vmem, size = 0x8000, scoped, tag = 'input window, operand 2']
    #allocation11 [shape = 'u8[12288]{0}', space=vmem, size = 0x3000, scoped, tag = 'output window, operand 0']
    %9 = vsyncpa [#allocation9], 0
    %10 = vsyncpa [#allocation7], 0
    %s11 = scalar_lea.sflag [#allocation7], 1
    %12 = vsyncpa %s11, 0
    %13 = vsyncpa [#allocation8], 0
    %s14 = scalar_lea.sflag [#allocation8], 1
    %15 = vsyncpa %s14, 0
    loop: start=0, step=1, limit=4
    $region2: #{tpu_custom_call.1} parent=1 // loop_pre_header
      _
    $region3: #{tpu_custom_call.1} parent=1 // loop_header
      %s17 = sphi 0, %s21
      %p18 = scmp.ge.s32.totalorder %s17, 4
      %s24 = sphi 0, %s36
      %s25 = sphi 0, %s32
      %s26 = sphi 0, %s24
      %s27 = sphi 0, %s25
      %s28 = sphi 0, %s26
      %s29 = sphi 0, %s27
      %s37 = sphi 0, %s37
      %s39 = sphi 0, %s37
      %s40 = sphi 0, %s39
      %s54 = sphi 0, %s40
      %s58 = sphi 0, %s58
      %s60 = sphi 0, %s58
      %s61 = sphi 0, %s60
      %s75 = sphi 0, %s61
      %s83 = sphi 0, %s85
      %s86 = sphi 0, %s83
      %s87 = sphi 0, %s86
      %s103 = sphi 0, %s87
      %s109 = sphi 0, %s111
      %s112 = sphi 0, %s109
      %s113 = sphi 0, %s112
      %s129 = sphi 0, %s113
    $region4: #{tpu_custom_call.1} parent=1 // loop_header_branch
      %20 = sbr.rel (%p18) target = $region8
    $region5: #{tpu_custom_call.1} parent=1 // loop_body
      %s22 = ssub.s32 %s17, 1
      %s23 = ssub.s32 %s17, 2
      %s30 = sadd.s32 1, %s25
      %p31 = scmp.ge.s32.totalorder %s30, 1
      %s32 = scalar_select %p31, 0, %s30
      %s33 = sadd.s32 1, %s24
      %s34 = scalar_select %p31, %s33, %s24
      %p35 = scmp.ge.s32.totalorder %s34, 2
      %s36 = scalar_select %p35, 0, %s34
      %s38 = sadd.s32 %s37, 1
      %p41 = scmp.eq.s32.totalorder %s17, 1
      %p42 = scmp.ne.s32.totalorder %s37, %s39
      %p43 = scmp.eq.s32.totalorder %s17, 0
      %p44 = por %p42, %p43
      %p45 = scmp.ne.s32.totalorder %s37, %s39
      %p46 = scmp.eq.s32.totalorder %s22, 1
      %p47 = por %p45, %p46
      %p48 = scmp.ne.s32.totalorder %s39, %s40
      %p49 = scmp.eq.s32.totalorder %s22, 0
      %p50 = por %p48, %p49
      %p51 = scmp.ne.s32.totalorder %s39, %s40
      %p52 = scmp.eq.s32.totalorder %s23, 1
      %p53 = por %p51, %p52
      %p55 = scmp.ne.s32.totalorder %s40, %s54
      %p56 = scmp.eq.s32.totalorder %s23, 0
      %p57 = por %p55, %p56
      %s59 = sadd.s32 %s58, 1
      %p62 = scmp.eq.s32.totalorder %s17, 1
      %p63 = scmp.ne.s32.totalorder %s58, %s60
      %p64 = scmp.eq.s32.totalorder %s17, 0
      %p65 = por %p63, %p64
      %p66 = scmp.ne.s32.totalorder %s58, %s60
      %p67 = scmp.eq.s32.totalorder %s22, 1
      %p68 = por %p66, %p67
      %p69 = scmp.ne.s32.totalorder %s60, %s61
      %p70 = scmp.eq.s32.totalorder %s22, 0
      %p71 = por %p69, %p70
      %p72 = scmp.ne.s32.totalorder %s60, %s61
      %p73 = scmp.eq.s32.totalorder %s23, 1
      %p74 = por %p72, %p73
      %p76 = scmp.ne.s32.totalorder %s61, %s75
      %p77 = scmp.eq.s32.totalorder %s23, 0
      %p78 = por %p76, %p77
      %s79 = ssub.s32 %s24, %s36
      %s80 = ssub.s32 %s25, %s32
      %s81 = sor.u32 %s79, %s80
      %p82 = scmp.eq.s32.totalorder %s81, 0
      %s84 = sadd.s32 %s83, 1
      %s85 = scalar_select %p82, %s83, %s84
      %p88 = pneg %p82
      %p89 = scmp.eq.s32.totalorder %s17, 1
      %p90 = por %p88, %p89
      %p91 = scmp.ne.s32.totalorder %s83, %s86
      %p92 = scmp.eq.s32.totalorder %s17, 0
      %p93 = por %p91, %p92
      %p94 = scmp.ne.s32.totalorder %s83, %s86
      %p95 = scmp.eq.s32.totalorder %s22, 1
      %p96 = por %p94, %p95
      %p97 = scmp.ne.s32.totalorder %s86, %s87
      %p98 = scmp.eq.s32.totalorder %s22, 0
      %p99 = por %p97, %p98
      %p100 = scmp.ne.s32.totalorder %s86, %s87
      %p101 = scmp.eq.s32.totalorder %s23, 1
      %p102 = por %p100, %p101
      %p104 = scmp.ne.s32.totalorder %s87, %s103
      %p105 = scmp.eq.s32.totalorder %s23, 0
      %p106 = por %p104, %p105
      %s107 = ssub.s32 %s24, %s36
      %p108 = scmp.eq.s32.totalorder %s107, 0
      %s110 = sadd.s32 %s109, 1
      %s111 = scalar_select %p108, %s109, %s110
      %p114 = pneg %p108
      %p115 = scmp.eq.s32.totalorder %s17, 1
      %p116 = por %p114, %p115
      %p117 = scmp.ne.s32.totalorder %s109, %s112
      %p118 = scmp.eq.s32.totalorder %s17, 0
      %p119 = por %p117, %p118
      %p120 = scmp.ne.s32.totalorder %s109, %s112
      %p121 = scmp.eq.s32.totalorder %s22, 1
      %p122 = por %p120, %p121
      %p123 = scmp.ne.s32.totalorder %s112, %s113
      %p124 = scmp.eq.s32.totalorder %s22, 0
      %p125 = por %p123, %p124
      %p126 = scmp.ne.s32.totalorder %s112, %s113
      %p127 = scmp.eq.s32.totalorder %s23, 1
      %p128 = por %p126, %p127
      %p130 = scmp.ne.s32.totalorder %s113, %s129
      %p131 = scmp.eq.s32.totalorder %s23, 0
      %p132 = por %p130, %p131
      %p133 = scmp.le.s32.totalorder 1, %s17
      %p134 = scmp.lt.s32.totalorder %s17, 3
      %p135 = pnand %p133, %p134
      %p136 = pneg %p135
      // Predicated region
      $region9: #{tpu_custom_call.1} parent=5 // pred_check
        _
      $region10: #{tpu_custom_call.1} parent=5 // pred_check_branch
        %138 = sbr.rel (%p135) target = $region12
      $region11: #{tpu_custom_call.1} parent=5 // pred_region
        %s139 = ssub.s32 %s17, 1
        // Predicated region
        $region13: #{tpu_custom_call.1} parent=11 // pred_check
          %p140 = pneg %p50
        $region14: #{tpu_custom_call.1} parent=11 // pred_check_branch
          %142 = sbr.rel (%p140) target = $region16
        $region15: #{tpu_custom_call.1} parent=11 // pred_region
          %s144 = ssub.s32 16, 16
          %145 = vsyncadd [#allocation9], %s144
          %s147 = sshll.u32 %s0, 4
          %s148 = int_to_ptr.vmem [resolvable:$true] %s147
          %150 = dma.vmem_to_smem %s148, 16, [#allocation6], [#allocation9]
        $region16: #{tpu_custom_call.1} parent=11 // pred_fallthru
          _
        // Predicated region
        $region17: #{tpu_custom_call.1} parent=11 // pred_check
          %p151 = pneg %p71
        $region18: #{tpu_custom_call.1} parent=11 // pred_check_branch
          %153 = sbr.rel (%p151) target = $region20
        $region19: #{tpu_custom_call.1} parent=11 // pred_region
          _
        $region20: #{tpu_custom_call.1} parent=11 // pred_fallthru
          _
      $region12: #{tpu_custom_call.1} parent=5 // pred_fallthru
        _
      %p154 = scmp.lt.s32.totalorder %s17, 2
      // Predicated region
      $region21: #{tpu_custom_call.1} parent=5 // pred_check
        %p155 = pneg %p154
      $region22: #{tpu_custom_call.1} parent=5 // pred_check_branch
        %157 = sbr.rel (%p155) target = $region24
      $region23: #{tpu_custom_call.1} parent=5 // pred_region
        // Predicated region
        $region25: #{tpu_custom_call.1} parent=23 // pred_check
          %p158 = pneg %p93
        $region26: #{tpu_custom_call.1} parent=23 // pred_check_branch
          %160 = sbr.rel (%p158) target = $region28
        $region27: #{tpu_custom_call.1} parent=23 // pred_region
          %s161 = sand.u32 %s83, 1
          %s162 = scalar_lea.sflag [#allocation7], %s161
          %s163 = sand.u32 %s83, 1
          %s164 = smul.addr %s163, 32
          %s165 = scalar_lea.vmem [#allocation10], %s164
          %s166 = smul.u32 4, %s24
          %s168 = ssub.s32 512, 512
          %169 = vsyncadd %s162, %s168
          %s170 = smul.addr %s25, 2
          %s171 = smul.addr %s166, 2
          %s172 = sadd.s32 %s170, %s171
          %s173 = smul.addr %s172, 64
          %s174 = scalar_lea.hbm %s2, %s173
          %s175 = sshll.u32 %s165, 4
          %s176 = int_to_ptr.vmem [resolvable:$true] %s175
          %181 = dma.hbm_to_vmem [thread:$0]  %s174, 512, %s176, %s162, 128, 128, 8
        $region28: #{tpu_custom_call.1} parent=23 // pred_fallthru
          _
      $region24: #{tpu_custom_call.1} parent=5 // pred_fallthru
        _
      %p182 = scmp.le.s32.totalorder 1, %s17
      %p183 = scmp.lt.s32.totalorder %s17, 3
      %p184 = pnand %p182, %p183
      %p185 = pneg %p184
      // Predicated region
      $region29: #{tpu_custom_call.1} parent=5 // pred_check
        _
      $region30: #{tpu_custom_call.1} parent=5 // pred_check_branch
        %187 = sbr.rel (%p184) target = $region32
      $region31: #{tpu_custom_call.1} parent=5 // pred_region
        %s188 = ssub.s32 %s17, 1
        // Predicated region
        $region33: #{tpu_custom_call.1} parent=31 // pred_check
          %p189 = pneg %p50
        $region34: #{tpu_custom_call.1} parent=31 // pred_check_branch
          %191 = sbr.rel (%p189) target = $region36
        $region35: #{tpu_custom_call.1} parent=31 // pred_region
          %192 = dma.done [#allocation9], 16
        $region36: #{tpu_custom_call.1} parent=31 // pred_fallthru
          _
        %s193 = sand.u32 %s86, 1
        %s194 = scalar_lea.sflag [#allocation7], %s193
        %s195 = sand.u32 %s86, 1
        %s196 = smul.addr %s195, 32
        %s197 = scalar_lea.vmem [#allocation10], %s196
        // Predicated region
        $region37: #{tpu_custom_call.1} parent=31 // pred_check
          %p198 = pneg %p99
        $region38: #{tpu_custom_call.1} parent=31 // pred_check_branch
          %200 = sbr.rel (%p198) target = $region40
        $region39: #{tpu_custom_call.1} parent=31 // pred_region
          %201 = dma.done %s194, 512
        $region40: #{tpu_custom_call.1} parent=31 // pred_fallthru
          _
        %202 = sfence
        %p203 = pneg %p50
        %p204 = pneg %p47
        %p205 = pneg %p71
        %p206 = pneg %p68
        %s207 = sand.u32 %s86, 1
        %s208 = scalar_lea.sflag [#allocation7], %s207
        %s209 = sand.u32 %s86, 1
        %s210 = smul.addr %s209, 32
        %s211 = scalar_lea.vmem [#allocation10], %s210
        %p212 = pneg %p99
        %p213 = pneg %p96
        %p214 = pneg %p125
        %p215 = pneg %p122
        %s216 = sand.u32 %s112, 1
        %s217 = scalar_lea.sflag [#allocation8], %s216
        %s218 = sand.u32 %s112, 1
        %s219 = smul.addr %s218, 12
        %s220 = scalar_lea.vmem [#allocation11], %s219
        %s221 = smul.u32 4, %s26
        %v222 = vld [vmem:[%s197] sm:$0xff]
        %v223 = vld [vmem:[%s197 + $0x8] sm:$0xff]
        %v224 = vld [vmem:[%s197 + $0x10] sm:$0xff]
        %v225 = vld [vmem:[%s197 + $0x18] sm:$0xff]
        %v230 = vcombine.high %v222, %v222
        %v231 = vcombine.high %v223, %v223
        %v232 = vcombine.high %v224, %v224
        %v233 = vcombine.high %v225, %v225
        %vm238 = vcmask 1043456
        %v239 = vsel %vm238, %v222, -inf
        %v240 = vrot.slane %v239, 4
        %v241 = vmax.f32 %v239, %v240
        %v242 = vrot.slane %v241, 2
        %v243 = vmax.f32 %v241, %v242
        %v244 = vrot.slane %v243, 1
        %v245 = vmax.f32 %v243, %v244
        %v246 = vsel %vm238, %v230, -inf
        %v247 = vrot.slane %v246, 4
        %v248 = vmax.f32 %v246, %v247
        %v249 = vrot.slane %v248, 2
        %v250 = vmax.f32 %v248, %v249
        %v251 = vrot.slane %v250, 1
        %v252 = vmax.f32 %v250, %v251
        %v253 = vsel %vm238, %v223, -inf
        %v254 = vrot.slane %v253, 4
        %v255 = vmax.f32 %v253, %v254
        %v256 = vrot.slane %v255, 2
        %v257 = vmax.f32 %v255, %v256
        %v258 = vrot.slane %v257, 1
        %v259 = vmax.f32 %v257, %v258
        %v260 = vsel %vm238, %v231, -inf
        %v261 = vrot.slane %v260, 4
        %v262 = vmax.f32 %v260, %v261
        %v263 = vrot.slane %v262, 2
        %v264 = vmax.f32 %v262, %v263
        %v265 = vrot.slane %v264, 1
        %v266 = vmax.f32 %v264, %v265
        %v267 = vsel %vm238, %v224, -inf
        %v268 = vrot.slane %v267, 4
        %v269 = vmax.f32 %v267, %v268
        %v270 = vrot.slane %v269, 2
        %v271 = vmax.f32 %v269, %v270
        %v272 = vrot.slane %v271, 1
        %v273 = vmax.f32 %v271, %v272
        %v274 = vsel %vm238, %v232, -inf
        %v275 = vrot.slane %v274, 4
        %v276 = vmax.f32 %v274, %v275
        %v277 = vrot.slane %v276, 2
        %v278 = vmax.f32 %v276, %v277
        %v279 = vrot.slane %v278, 1
        %v280 = vmax.f32 %v278, %v279
        %v281 = vsel %vm238, %v225, -inf
        %v282 = vrot.slane %v281, 4
        %v283 = vmax.f32 %v281, %v282
        %v284 = vrot.slane %v283, 2
        %v285 = vmax.f32 %v283, %v284
        %v286 = vrot.slane %v285, 1
        %v287 = vmax.f32 %v285, %v286
        %v288 = vsel %vm238, %v233, -inf
        %v289 = vrot.slane %v288, 4
        %v290 = vmax.f32 %v288, %v289
        %v291 = vrot.slane %v290, 2
        %v292 = vmax.f32 %v290, %v291
        %v293 = vrot.slane %v292, 1
        %v294 = vmax.f32 %v292, %v293
        %v295 = vsel %vm238, %v222, 0.0
        %v296 = vrot.slane %v295, 4
        %v297 = vadd.f32 %v295, %v296
        %v298 = vrot.slane %v297, 2
        %v299 = vadd.f32 %v297, %v298
        %v300 = vrot.slane %v299, 1
        %v301 = vadd.f32 %v299, %v300
        %v302 = vsel %vm238, %v230, 0.0
        %v303 = vrot.slane %v302, 4
        %v304 = vadd.f32 %v302, %v303
        %v305 = vrot.slane %v304, 2
        %v306 = vadd.f32 %v304, %v305
        %v307 = vrot.slane %v306, 1
        %v308 = vadd.f32 %v306, %v307
        %v309 = vsel %vm238, %v223, 0.0
        %v310 = vrot.slane %v309, 4
        %v311 = vadd.f32 %v309, %v310
        %v312 = vrot.slane %v311, 2
        %v313 = vadd.f32 %v311, %v312
        %v314 = vrot.slane %v313, 1
        %v315 = vadd.f32 %v313, %v314
        %v316 = vsel %vm238, %v231, 0.0
        %v317 = vrot.slane %v316, 4
        %v318 = vadd.f32 %v316, %v317
        %v319 = vrot.slane %v318, 2
        %v320 = vadd.f32 %v318, %v319
        %v321 = vrot.slane %v320, 1
        %v322 = vadd.f32 %v320, %v321
        %v323 = vsel %vm238, %v224, 0.0
        %v324 = vrot.slane %v323, 4
        %v325 = vadd.f32 %v323, %v324
        %v326 = vrot.slane %v325, 2
        %v327 = vadd.f32 %v325, %v326
        %v328 = vrot.slane %v327, 1
        %v329 = vadd.f32 %v327, %v328
        %v330 = vsel %vm238, %v232, 0.0
        %v331 = vrot.slane %v330, 4
        %v332 = vadd.f32 %v330, %v331
        %v333 = vrot.slane %v332, 2
        %v334 = vadd.f32 %v332, %v333
        %v335 = vrot.slane %v334, 1
        %v336 = vadd.f32 %v334, %v335
        %v337 = vsel %vm238, %v225, 0.0
        %v338 = vrot.slane %v337, 4
        %v339 = vadd.f32 %v337, %v338
        %v340 = vrot.slane %v339, 2
        %v341 = vadd.f32 %v339, %v340
        %v342 = vrot.slane %v341, 1
        %v343 = vadd.f32 %v341, %v342
        %v344 = vsel %vm238, %v233, 0.0
        %v345 = vrot.slane %v344, 4
        %v346 = vadd.f32 %v344, %v345
        %v347 = vrot.slane %v346, 2
        %v348 = vadd.f32 %v346, %v347
        %v349 = vrot.slane %v348, 1
        %v350 = vadd.f32 %v348, %v349
        %p351 = scmp.eq.s32.totalorder %s27, 0
        // Predicated region
        $region41: #{tpu_custom_call.1} parent=31 // pred_check
          %p352 = pneg %p351
        $region42: #{tpu_custom_call.1} parent=31 // pred_check_branch
          %354 = sbr.rel (%p352) target = $region44
        $region43: #{tpu_custom_call.1} parent=31 // pred_region
          %v363 = vcombine.low %v245, %v252
          %v364 = vcombine.low %v259, %v266
          %v365 = vcombine.low %v273, %v280
          %v366 = vcombine.low %v287, %v294
          %v367 = vrot.slane %v364, 7
          %vm368 = vcmask 1041409
          %v369 = vsel %vm368, %v367, %v363
          %vm370 = vcmask 1045509
          %v371 = vsel %vm370, %v367, %v369
          %v372 = vrot.slane %v365, 6
          %vm373 = vcmask 1042434
          %v374 = vsel %vm373, %v372, %v371
          %vm375 = vcmask 1046534
          %v376 = vsel %vm375, %v372, %v374
          %v377 = vrot.slane %v366, 5
          %vm378 = vcmask 1043459
          %v379 = vsel %vm378, %v377, %v376
          %vm380 = vcmask 1047559
          %v381 = vsel %vm380, %v377, %v379
          %383 = vst [vmem:[#allocation2] sm:$0xff] %v381
          %v392 = vcombine.low %v301, %v308
          %v393 = vcombine.low %v315, %v322
          %v394 = vcombine.low %v329, %v336
          %v395 = vcombine.low %v343, %v350
          %v396 = vrot.slane %v393, 7
          %v397 = vsel %vm368, %v396, %v392
          %v398 = vsel %vm370, %v396, %v397
          %v399 = vrot.slane %v394, 6
          %v400 = vsel %vm373, %v399, %v398
          %v401 = vsel %vm375, %v399, %v400
          %v402 = vrot.slane %v395, 5
          %v403 = vsel %vm378, %v402, %v401
          %v404 = vsel %vm380, %v402, %v403
          %406 = vst [vmem:[#allocation3] sm:$0xff] %v404
        $region44: #{tpu_custom_call.1} parent=31 // pred_fallthru
          _
        %p407 = scmp.gt.s32.totalorder %s27, 0
        // Predicated region
        $region45: #{tpu_custom_call.1} parent=31 // pred_check
          %p408 = pneg %p407
        $region46: #{tpu_custom_call.1} parent=31 // pred_check_branch
          %410 = sbr.rel (%p408) target = $region48
        $region47: #{tpu_custom_call.1} parent=31 // pred_region
          %v411 = vld [vmem:[#allocation2] sm:$0xff]
          %v420 = vcombine.low %v245, %v252
          %v421 = vcombine.low %v259, %v266
          %v422 = vcombine.low %v273, %v280
          %v423 = vcombine.low %v287, %v294
          %v424 = vrot.slane %v421, 7
          %vm425 = vcmask 1041409
          %v426 = vsel %vm425, %v424, %v420
          %vm427 = vcmask 1045509
          %v428 = vsel %vm427, %v424, %v426
          %v429 = vrot.slane %v422, 6
          %vm430 = vcmask 1042434
          %v431 = vsel %vm430, %v429, %v428
          %vm432 = vcmask 1046534
          %v433 = vsel %vm432, %v429, %v431
          %v434 = vrot.slane %v423, 5
          %vm435 = vcmask 1043459
          %v436 = vsel %vm435, %v434, %v433
          %vm437 = vcmask 1047559
          %v438 = vsel %vm437, %v434, %v436
          %v440 = vmax.f32 %v411, %v438
          %441 = vst [vmem:[#allocation2] sm:$0xff] %v440
          %v442 = vld [vmem:[#allocation3] sm:$0xff]
          %v451 = vcombine.low %v301, %v308
          %v452 = vcombine.low %v315, %v322
          %v453 = vcombine.low %v329, %v336
          %v454 = vcombine.low %v343, %v350
          %v455 = vrot.slane %v452, 7
          %v456 = vsel %vm425, %v455, %v451
          %v457 = vsel %vm427, %v455, %v456
          %v458 = vrot.slane %v453, 6
          %v459 = vsel %vm430, %v458, %v457
          %v460 = vsel %vm432, %v458, %v459
          %v461 = vrot.slane %v454, 5
          %v462 = vsel %vm435, %v461, %v460
          %v463 = vsel %vm437, %v461, %v462
          %v465 = vadd.f32 %v442, %v463
          %466 = vst [vmem:[#allocation3] sm:$0xff] %v465
        $region48: #{tpu_custom_call.1} parent=31 // pred_fallthru
          _
        // Predicated region
        $region49: #{tpu_custom_call.1} parent=31 // pred_check
          %p467 = pneg %p351
        $region50: #{tpu_custom_call.1} parent=31 // pred_check_branch
          %469 = sbr.rel (%p467) target = $region52
        $region51: #{tpu_custom_call.1} parent=31 // pred_region
          %v470 = vld [vmem:[#allocation2] sm:$0xff]
          %v471 = vld [vmem:[#allocation3] sm:$0xff]
          %v472 = vmul.f32 %v471, 0.25
          %473 = vst [vmem:[#allocation4] sm:$0xff] 0.0
          %474 = vst [vmem:[#allocation4 + $0x8] sm:$0xff] 0.0
          %475 = vst [vmem:[#allocation4 + $0x10] sm:$0xf] 0.0
          %476 = vst [vmem:[#allocation4 + $0x14] sm:$0xff] 0.0
          %477 = vst [vmem:[#allocation4 + $0x1c] sm:$0xff] 0.0
          %478 = vst [vmem:[#allocation4 + $0x24] sm:$0xf] 0.0
          %480 = vrot.lane.b32.xlu0 %v470, 69
          %v481 = vpop.permute.xlu0 %480
          %vm483 = vcmask 691752
          %484 = vst.msk [vmem:[#allocation4] sm:$0xf] %vm483, %v481
          %486 = vrot.lane.b32.xlu0 %v472, 69
          %v487 = vpop.permute.xlu0 %486
          %s489 = scalar_lea.vmem [#allocation4], 20
          %490 = vst.msk [vmem:[%s489] sm:$0xf] %vm483, %v487
          %491 = vrot.lane.b32.xlu0 %v470, 75
          %v492 = vpop.permute.xlu0 %491
          %vm494 = vcmask 872152
          %495 = vst.msk [vmem:[#allocation4] sm:$0xf] %vm494, %v492
          %496 = vrot.lane.b32.xlu0 %v472, 75
          %v497 = vpop.permute.xlu0 %496
          %499 = vst.msk [vmem:[%s489] sm:$0xf] %vm494, %v497
          %500 = vrot.lane.b32.xlu0 %v470, 81
          %v501 = vpop.permute.xlu0 %500
          %v502 = vrot.slane %v501, 4
          %vm503 = vcmask 662528
          %v504 = vsel %vm503, %v502, %v501
          %vm506 = vcmask 1044360
          %vm507 = vcmask 7172
          %vm508 = vmor %vm507, %vm506
          %509 = vst.msk [vmem:[#allocation4] sm:$0xff] %vm508, %v504
          %510 = vrot.lane.b32.xlu0 %v472, 81
          %v511 = vpop.permute.xlu0 %510
          %v512 = vrot.slane %v511, 4
          %v513 = vsel %vm503, %v512, %v511
          %515 = vst.msk [vmem:[%s489] sm:$0xff] %vm508, %v513
          %516 = vrot.lane.b32.xlu0 %v470, 87
          %v517 = vpop.permute.xlu0 %516
          %vm519 = vcmask 183352
          %520 = vst.msk [vmem:[#allocation4 + $0x4] sm:$0xf] %vm519, %v517
          %521 = vrot.lane.b32.xlu0 %v472, 87
          %v522 = vpop.permute.xlu0 %521
          %524 = vst.msk [vmem:[%s489 + $0x4] sm:$0xf] %vm519, %v522
          %525 = vrot.lane.b32.xlu0 %v470, 93
          %v526 = vpop.permute.xlu0 %525
          %vm528 = vcmask 363752
          %529 = vst.msk [vmem:[#allocation4 + $0x4] sm:$0xf] %vm528, %v526
          %530 = vrot.lane.b32.xlu0 %v472, 93
          %v531 = vpop.permute.xlu0 %530
          %533 = vst.msk [vmem:[%s489 + $0x4] sm:$0xf] %vm528, %v531
          %534 = vrot.lane.b32.xlu0 %v470, 99
          %v535 = vpop.permute.xlu0 %534
          %vm537 = vcmask 544152
          %538 = vst.msk [vmem:[#allocation4 + $0x4] sm:$0xf] %vm537, %v535
          %539 = vrot.lane.b32.xlu0 %v472, 99
          %v540 = vpop.permute.xlu0 %539
          %542 = vst.msk [vmem:[%s489 + $0x4] sm:$0xf] %vm537, %v540
          %543 = vrot.lane.b32.xlu0 %v470, 105
          %v544 = vpop.permute.xlu0 %543
          %vm546 = vcmask 724552
          %547 = vst.msk [vmem:[#allocation4 + $0x4] sm:$0xf] %vm546, %v544
          %548 = vrot.lane.b32.xlu0 %v472, 105
          %v549 = vpop.permute.xlu0 %548
          %551 = vst.msk [vmem:[%s489 + $0x4] sm:$0xf] %vm546, %v549
          %552 = vrot.lane.b32.xlu0 %v470, 111
          %v553 = vpop.permute.xlu0 %552
          %vm555 = vcmask 904952
          %556 = vst.msk [vmem:[#allocation4 + $0x4] sm:$0xf] %vm555, %v553
          %557 = vrot.lane.b32.xlu0 %v472, 111
          %v558 = vpop.permute.xlu0 %557
          %560 = vst.msk [vmem:[%s489 + $0x4] sm:$0xf] %vm555, %v558
          %v561 = vrot.slane %v470, 4
          %562 = vrot.lane.b32.xlu0 %v561, 117
          %v563 = vpop.permute.xlu0 %562
          %v564 = vrot.slane %v563, 4
          %vm565 = vcmask 957440
          %v566 = vsel %vm565, %v564, %v563
          %vm568 = vcmask 1044392
          %vm569 = vcmask 39940
          %vm570 = vmor %vm569, %vm568
          %571 = vst.msk [vmem:[#allocation4 + $0x4] sm:$0xff] %vm570, %v566
          %v572 = vrot.slane %v472, 4
          %573 = vrot.lane.b32.xlu0 %v572, 117
          %v574 = vpop.permute.xlu0 %573
          %v575 = vrot.slane %v574, 4
          %v576 = vsel %vm565, %v575, %v574
          %578 = vst.msk [vmem:[%s489 + $0x4] sm:$0xff] %vm570, %v576
          %579 = vrot.lane.b32.xlu0 %v470, 112
          %v580 = vpop.permute.xlu0 %579
          %v581 = vrot.slane %v580, 4
          %582 = vrot.lane.b32.xlu0 %v581, 11
          %v583 = vpop.permute.xlu0 %582
          %vm585 = vcmask 216152
          %586 = vst.msk [vmem:[#allocation4 + $0x8] sm:$0xf] %vm585, %v583
          %587 = vrot.lane.b32.xlu0 %v472, 112
          %v588 = vpop.permute.xlu0 %587
          %v589 = vrot.slane %v588, 4
          %590 = vrot.lane.b32.xlu0 %v589, 11
          %v591 = vpop.permute.xlu0 %590
          %593 = vst.msk [vmem:[%s489 + $0x8] sm:$0xf] %vm585, %v591
          %594 = vrot.lane.b32.xlu0 %v470, 96
          %v595 = vpop.permute.xlu0 %594
          %v596 = vrot.slane %v595, 4
          %597 = vrot.lane.b32.xlu0 %v596, 33
          %v598 = vpop.permute.xlu0 %597
          %vm600 = vcmask 396552
          %601 = vst.msk [vmem:[#allocation4 + $0x8] sm:$0xf] %vm600, %v598
          %602 = vrot.lane.b32.xlu0 %v472, 96
          %v603 = vpop.permute.xlu0 %602
          %v604 = vrot.slane %v603, 4
          %605 = vrot.lane.b32.xlu0 %v604, 33
          %v606 = vpop.permute.xlu0 %605
          %608 = vst.msk [vmem:[%s489 + $0x8] sm:$0xf] %vm600, %v606
          %609 = vrot.lane.b32.xlu0 %v470, 80
          %v610 = vpop.permute.xlu0 %609
          %v611 = vrot.slane %v610, 4
          %612 = vrot.lane.b32.xlu0 %v611, 55
          %v613 = vpop.permute.xlu0 %612
          %vm615 = vcmask 576952
          %616 = vst.msk [vmem:[#allocation4 + $0x8] sm:$0xf] %vm615, %v613
          %617 = vrot.lane.b32.xlu0 %v472, 80
          %v618 = vpop.permute.xlu0 %617
          %v619 = vrot.slane %v618, 4
          %620 = vrot.lane.b32.xlu0 %v619, 55
          %v621 = vpop.permute.xlu0 %620
          %623 = vst.msk [vmem:[%s489 + $0x8] sm:$0xf] %vm615, %v621
          %624 = vrot.lane.b32.xlu0 %v470, 64
          %v625 = vpop.permute.xlu0 %624
          %v626 = vrot.slane %v625, 4
          %627 = vrot.lane.b32.xlu0 %v626, 77
          %v628 = vpop.permute.xlu0 %627
          %vm630 = vcmask 757352
          %631 = vst.msk [vmem:[#allocation4 + $0x8] sm:$0xf] %vm630, %v628
          %632 = vrot.lane.b32.xlu0 %v472, 64
          %v633 = vpop.permute.xlu0 %632
          %v634 = vrot.slane %v633, 4
          %635 = vrot.lane.b32.xlu0 %v634, 77
          %v636 = vpop.permute.xlu0 %635
          %638 = vst.msk [vmem:[%s489 + $0x8] sm:$0xf] %vm630, %v636
          %639 = vrot.lane.b32.xlu0 %v470, 48
          %v640 = vpop.permute.xlu0 %639
          %v641 = vrot.slane %v640, 4
          %642 = vrot.lane.b32.xlu0 %v641, 99
          %v643 = vpop.permute.xlu0 %642
          %vm645 = vcmask 937752
          %646 = vst.msk [vmem:[#allocation4 + $0x8] sm:$0xf] %vm645, %v643
          %647 = vrot.lane.b32.xlu0 %v472, 48
          %v648 = vpop.permute.xlu0 %647
          %v649 = vrot.slane %v648, 4
          %650 = vrot.lane.b32.xlu0 %v649, 99
          %v651 = vpop.permute.xlu0 %650
          %653 = vst.msk [vmem:[%s489 + $0x8] sm:$0xf] %vm645, %v651
          %654 = vrot.lane.b32.xlu0 %v470, 32
          %v655 = vpop.permute.xlu0 %654
          %v656 = vrot.slane %v655, 4
          %657 = vrot.lane.b32.xlu0 %v656, 121
          %v658 = vpop.permute.xlu0 %657
          %v659 = vrot.slane %v658, 4
          %vm660 = vcmask 990208
          %v661 = vsel %vm660, %v659, %v658
          %vm663 = vcmask 1044424
          %vm664 = vcmask 72708
          %vm665 = vmor %vm664, %vm663
          %666 = vst.msk [vmem:[#allocation4 + $0x8] sm:$0xff] %vm665, %v661
          %667 = vrot.lane.b32.xlu0 %v472, 32
          %v668 = vpop.permute.xlu0 %667
          %v669 = vrot.slane %v668, 4
          %670 = vrot.lane.b32.xlu0 %v669, 121
          %v671 = vpop.permute.xlu0 %670
          %v672 = vrot.slane %v671, 4
          %v673 = vsel %vm660, %v672, %v671
          %675 = vst.msk [vmem:[%s489 + $0x8] sm:$0xff] %vm665, %v673
          %676 = vrot.lane.b32.xlu0 %v470, 16
          %v677 = vpop.permute.xlu0 %676
          %v678 = vrot.slane %v677, 4
          %679 = vrot.lane.b32.xlu0 %v678, 15
          %v680 = vpop.permute.xlu0 %679
          %vm682 = vcmask 248952
          %683 = vst.msk [vmem:[#allocation4 + $0xc] sm:$0xf] %vm682, %v680
          %684 = vrot.lane.b32.xlu0 %v472, 16
          %v685 = vpop.permute.xlu0 %684
          %v686 = vrot.slane %v685, 4
          %687 = vrot.lane.b32.xlu0 %v686, 15
          %v688 = vpop.permute.xlu0 %687
          %690 = vst.msk [vmem:[%s489 + $0xc] sm:$0xf] %vm682, %v688
          %s691 = sld [smem:[#allocation5]]
          %v692 = vstv %s691
          %v693 = vld [vmem:[#allocation4] sm:$0xff]
          %v694 = vld [vmem:[#allocation4 + $0x8] sm:$0xf]
          %s695 = sld [smem:[#allocation6]]
          %v696 = vstv %s695
          %v697 = vmul.f32 %v693, %v696
          %v698 = vmul.f32 %v694, %v696
          %v699 = vadd.f32 %v692, %v697
          %v700 = vadd.f32 %v692, %v698
          %v701 = vld [vmem:[#allocation4] sm:$0xff]
          %v702 = vld [vmem:[#allocation4 + $0x8] sm:$0xff]
          %s703 = sld [smem:[#allocation6 + $0x1]]
          %v704 = vstv %s703
          %v705 = vmul.f32 %v701, %v704
          %v706 = vmul.f32 %v702, %v704
          %709 = vrot.lane.b32.xlu0 %v705, 127
          %v710 = vpop.permute.xlu0 %709
          %711 = vrot.lane.b32.xlu0 %v706, 127
          %v712 = vpop.permute.xlu0 %711
          %v713 = vrot.slane %v710, 4
          %v714 = vrot.slane %v712, 4
          %v715 = vsel %vm238, %v713, %v714
          %vm716 = vcmask 1039360
          %v717 = vsel %vm716, %v710, %v715
          %v718 = vsel %vm716, %v712, %v714
          %v721 = vadd.f32 %v699, %v717
          %v722 = vadd.f32 %v700, %v718
          %s723 = sld [smem:[#allocation6 + $0x2]]
          %v724 = vstv %s723
          %v725 = vmul.f32 %v701, %v724
          %v726 = vmul.f32 %v702, %v724
          %729 = vrot.lane.b32.xlu0 %v725, 126
          %v730 = vpop.permute.xlu0 %729
          %731 = vrot.lane.b32.xlu0 %v726, 126
          %v732 = vpop.permute.xlu0 %731
          %v733 = vrot.slane %v730, 4
          %v734 = vrot.slane %v732, 4
          %v735 = vsel %vm238, %v733, %v734
          %vm736 = vcmask 1031168
          %v737 = vsel %vm736, %v730, %v735
          %v738 = vsel %vm736, %v732, %v734
          %v741 = vadd.f32 %v721, %v737
          %v742 = vadd.f32 %v722, %v738
          %s743 = sld [smem:[#allocation6 + $0x3]]
          %v744 = vstv %s743
          %v745 = vmul.f32 %v701, %v744
          %v746 = vmul.f32 %v702, %v744
          %749 = vrot.lane.b32.xlu0 %v745, 125
          %v750 = vpop.permute.xlu0 %749
          %751 = vrot.lane.b32.xlu0 %v746, 125
          %v752 = vpop.permute.xlu0 %751
          %v753 = vrot.slane %v750, 4
          %v754 = vrot.slane %v752, 4
          %v755 = vsel %vm238, %v753, %v754
          %vm756 = vcmask 1022976
          %v757 = vsel %vm756, %v750, %v755
          %v758 = vsel %vm756, %v752, %v754
          %v761 = vadd.f32 %v741, %v757
          %v762 = vadd.f32 %v742, %v758
          %s763 = sld [smem:[#allocation6 + $0x4]]
          %v764 = vstv %s763
          %v765 = vmul.f32 %v701, %v764
          %v766 = vmul.f32 %v702, %v764
          %769 = vrot.lane.b32.xlu0 %v765, 124
          %v770 = vpop.permute.xlu0 %769
          %771 = vrot.lane.b32.xlu0 %v766, 124
          %v772 = vpop.permute.xlu0 %771
          %v773 = vrot.slane %v770, 4
          %v774 = vrot.slane %v772, 4
          %v775 = vsel %vm238, %v773, %v774
          %vm776 = vcmask 1014784
          %v777 = vsel %vm776, %v770, %v775
          %v778 = vsel %vm776, %v772, %v774
          %v781 = vadd.f32 %v761, %v777
          %v782 = vadd.f32 %v762, %v778
          %s783 = sld [smem:[#allocation6 + $0x5]]
          %v784 = vstv %s783
          %v785 = vmul.f32 %v701, %v784
          %v786 = vmul.f32 %v702, %v784
          %789 = vrot.lane.b32.xlu0 %v785, 123
          %v790 = vpop.permute.xlu0 %789
          %791 = vrot.lane.b32.xlu0 %v786, 123
          %v792 = vpop.permute.xlu0 %791
          %v793 = vrot.slane %v790, 4
          %v794 = vrot.slane %v792, 4
          %v795 = vsel %vm238, %v793, %v794
          %vm796 = vcmask 1006592
          %v797 = vsel %vm796, %v790, %v795
          %v798 = vsel %vm796, %v792, %v794
          %v801 = vadd.f32 %v781, %v797
          %v802 = vadd.f32 %v782, %v798
          %s803 = sld [smem:[#allocation6 + $0x6]]
          %v804 = vstv %s803
          %v805 = vmul.f32 %v701, %v804
          %v806 = vmul.f32 %v702, %v804
          %809 = vrot.lane.b32.xlu0 %v805, 122
          %v810 = vpop.permute.xlu0 %809
          %811 = vrot.lane.b32.xlu0 %v806, 122
          %v812 = vpop.permute.xlu0 %811
          %v813 = vrot.slane %v810, 4
          %v814 = vrot.slane %v812, 4
          %v815 = vsel %vm238, %v813, %v814
          %vm816 = vcmask 998400
          %v817 = vsel %vm816, %v810, %v815
          %v818 = vsel %vm816, %v812, %v814
          %v821 = vadd.f32 %v801, %v817
          %v822 = vadd.f32 %v802, %v818
          %s823 = sld [smem:[#allocation6 + $0x7]]
          %v824 = vstv %s823
          %v825 = vmul.f32 %v701, %v824
          %v826 = vmul.f32 %v702, %v824
          %829 = vrot.lane.b32.xlu0 %v825, 106
          %v830 = vpop.permute.xlu0 %829
          %831 = vrot.lane.b32.xlu0 %v826, 106
          %v832 = vpop.permute.xlu0 %831
          %v833 = vrot.slane %v830, 4
          %v834 = vrot.slane %v832, 4
          %v835 = vsel %vm238, %v833, %v834
          %vm836 = vcmask 867328
          %v837 = vsel %vm836, %v830, %v835
          %v838 = vsel %vm836, %v832, %v834
          %v841 = vadd.f32 %v821, %v837
          %v842 = vadd.f32 %v822, %v838
          %s843 = sld [smem:[#allocation6 + $0x8]]
          %v844 = vstv %s843
          %v845 = vmul.f32 %v701, %v844
          %v846 = vmul.f32 %v702, %v844
          %849 = vrot.lane.b32.xlu0 %v845, 105
          %v850 = vpop.permute.xlu0 %849
          %851 = vrot.lane.b32.xlu0 %v846, 105
          %v852 = vpop.permute.xlu0 %851
          %v853 = vrot.slane %v850, 4
          %v854 = vrot.slane %v852, 4
          %v855 = vsel %vm238, %v853, %v854
          %vm856 = vcmask 859136
          %v857 = vsel %vm856, %v850, %v855
          %v858 = vsel %vm856, %v852, %v854
          %v861 = vadd.f32 %v841, %v857
          %v862 = vadd.f32 %v842, %v858
          %s863 = sld [smem:[#allocation6 + $0x9]]
          %v864 = vstv %s863
          %v865 = vmul.f32 %v701, %v864
          %v866 = vmul.f32 %v702, %v864
          %869 = vrot.lane.b32.xlu0 %v865, 104
          %v870 = vpop.permute.xlu0 %869
          %871 = vrot.lane.b32.xlu0 %v866, 104
          %v872 = vpop.permute.xlu0 %871
          %v873 = vrot.slane %v870, 4
          %v874 = vrot.slane %v872, 4
          %v875 = vsel %vm238, %v873, %v874
          %vm876 = vcmask 850944
          %v877 = vsel %vm876, %v870, %v875
          %v878 = vsel %vm876, %v872, %v874
          %v881 = vadd.f32 %v861, %v877
          %v882 = vadd.f32 %v862, %v878
          %s883 = sld [smem:[#allocation6 + $0xa]]
          %v884 = vstv %s883
          %v885 = vmul.f32 %v701, %v884
          %v886 = vmul.f32 %v702, %v884
          %889 = vrot.lane.b32.xlu0 %v885, 103
          %v890 = vpop.permute.xlu0 %889
          %891 = vrot.lane.b32.xlu0 %v886, 103
          %v892 = vpop.permute.xlu0 %891
          %v893 = vrot.slane %v890, 4
          %v894 = vrot.slane %v892, 4
          %v895 = vsel %vm238, %v893, %v894
          %vm896 = vcmask 842752
          %v897 = vsel %vm896, %v890, %v895
          %v898 = vsel %vm896, %v892, %v894
          %v901 = vadd.f32 %v881, %v897
          %v902 = vadd.f32 %v882, %v898
          %s903 = sld [smem:[#allocation6 + $0xb]]
          %v904 = vstv %s903
          %v905 = vmul.f32 %v701, %v904
          %v906 = vmul.f32 %v702, %v904
          %909 = vrot.lane.b32.xlu0 %v905, 102
          %v910 = vpop.permute.xlu0 %909
          %911 = vrot.lane.b32.xlu0 %v906, 102
          %v912 = vpop.permute.xlu0 %911
          %v913 = vrot.slane %v910, 4
          %v914 = vrot.slane %v912, 4
          %v915 = vsel %vm238, %v913, %v914
          %vm916 = vcmask 834560
          %v917 = vsel %vm916, %v910, %v915
          %v918 = vsel %vm916, %v912, %v914
          %v921 = vadd.f32 %v901, %v917
          %v922 = vadd.f32 %v902, %v918
          %s923 = sld [smem:[#allocation6 + $0xc]]
          %v924 = vstv %s923
          %v925 = vmul.f32 %v701, %v924
          %v926 = vmul.f32 %v702, %v924
          %929 = vrot.lane.b32.xlu0 %v925, 101
          %v930 = vpop.permute.xlu0 %929
          %931 = vrot.lane.b32.xlu0 %v926, 101
          %v932 = vpop.permute.xlu0 %931
          %v933 = vrot.slane %v930, 4
          %v934 = vrot.slane %v932, 4
          %v935 = vsel %vm238, %v933, %v934
          %vm936 = vcmask 826368
          %v937 = vsel %vm936, %v930, %v935
          %v938 = vsel %vm936, %v932, %v934
          %v941 = vadd.f32 %v921, %v937
          %v942 = vadd.f32 %v922, %v938
          %s943 = sld [smem:[#allocation6 + $0xd]]
          %v944 = vstv %s943
          %v945 = vmul.f32 %v701, %v944
          %v946 = vmul.f32 %v702, %v944
          %949 = vrot.lane.b32.xlu0 %v945, 100
          %v950 = vpop.permute.xlu0 %949
          %951 = vrot.lane.b32.xlu0 %v946, 100
          %v952 = vpop.permute.xlu0 %951
          %v953 = vrot.slane %v950, 4
          %v954 = vrot.slane %v952, 4
          %v955 = vsel %vm238, %v953, %v954
          %vm956 = vcmask 818176
          %v957 = vsel %vm956, %v950, %v955
          %v958 = vsel %vm956, %v952, %v954
          %v961 = vadd.f32 %v941, %v957
          %v962 = vadd.f32 %v942, %v958
          %s963 = sld [smem:[#allocation6 + $0xe]]
          %v964 = vstv %s963
          %v965 = vmul.f32 %v701, %v964
          %v966 = vmul.f32 %v702, %v964
          %969 = vrot.lane.b32.xlu0 %v965, 84
          %v970 = vpop.permute.xlu0 %969
          %971 = vrot.lane.b32.xlu0 %v966, 84
          %v972 = vpop.permute.xlu0 %971
          %v973 = vrot.slane %v970, 4
          %v974 = vrot.slane %v972, 4
          %v975 = vsel %vm238, %v973, %v974
          %vm976 = vcmask 687104
          %v977 = vsel %vm976, %v970, %v975
          %v978 = vsel %vm976, %v972, %v974
          %v981 = vadd.f32 %v961, %v977
          %v982 = vadd.f32 %v962, %v978
          %s983 = sld [smem:[#allocation6 + $0xf]]
          %v984 = vstv %s983
          %v985 = vmul.f32 %v701, %v984
          %v986 = vmul.f32 %v702, %v984
          %989 = vrot.lane.b32.xlu0 %v985, 83
          %v990 = vpop.permute.xlu0 %989
          %991 = vrot.lane.b32.xlu0 %v986, 83
          %v992 = vpop.permute.xlu0 %991
          %v993 = vrot.slane %v990, 4
          %v994 = vrot.slane %v992, 4
          %v995 = vsel %vm238, %v993, %v994
          %vm996 = vcmask 678912
          %v997 = vsel %vm996, %v990, %v995
          %v998 = vsel %vm996, %v992, %v994
          %v1001 = vadd.f32 %v981, %v997
          %v1002 = vadd.f32 %v982, %v998
          %s1003 = sld [smem:[#allocation6 + $0x10]]
          %v1004 = vstv %s1003
          %v1005 = vmul.f32 %v701, %v1004
          %v1006 = vmul.f32 %v702, %v1004
          %1009 = vrot.lane.b32.xlu0 %v1005, 82
          %v1010 = vpop.permute.xlu0 %1009
          %1011 = vrot.lane.b32.xlu0 %v1006, 82
          %v1012 = vpop.permute.xlu0 %1011
          %v1013 = vrot.slane %v1010, 4
          %v1014 = vrot.slane %v1012, 4
          %v1015 = vsel %vm238, %v1013, %v1014
          %vm1016 = vcmask 670720
          %v1017 = vsel %vm1016, %v1010, %v1015
          %v1018 = vsel %vm1016, %v1012, %v1014
          %v1021 = vadd.f32 %v1001, %v1017
          %v1022 = vadd.f32 %v1002, %v1018
          %s1023 = sld [smem:[#allocation6 + $0x11]]
          %v1024 = vstv %s1023
          %v1025 = vmul.f32 %v701, %v1024
          %v1026 = vmul.f32 %v702, %v1024
          %1029 = vrot.lane.b32.xlu0 %v1025, 81
          %v1030 = vpop.permute.xlu0 %1029
          %1031 = vrot.lane.b32.xlu0 %v1026, 81
          %v1032 = vpop.permute.xlu0 %1031
          %v1033 = vrot.slane %v1030, 4
          %v1034 = vrot.slane %v1032, 4
          %v1035 = vsel %vm238, %v1033, %v1034
          %v1036 = vsel %vm503, %v1030, %v1035
          %v1037 = vsel %vm503, %v1032, %v1034
          %v1040 = vadd.f32 %v1021, %v1036
          %v1041 = vadd.f32 %v1022, %v1037
          %s1042 = sld [smem:[#allocation6 + $0x12]]
          %v1043 = vstv %s1042
          %v1044 = vmul.f32 %v701, %v1043
          %v1045 = vmul.f32 %v702, %v1043
          %1048 = vrot.lane.b32.xlu0 %v1044, 80
          %v1049 = vpop.permute.xlu0 %1048
          %1050 = vrot.lane.b32.xlu0 %v1045, 80
          %v1051 = vpop.permute.xlu0 %1050
          %v1052 = vrot.slane %v1049, 4
          %v1053 = vrot.slane %v1051, 4
          %v1054 = vsel %vm238, %v1052, %v1053
          %vm1055 = vcmask 654336
          %v1056 = vsel %vm1055, %v1049, %v1054
          %v1057 = vsel %vm1055, %v1051, %v1053
          %v1060 = vadd.f32 %v1040, %v1056
          %v1061 = vadd.f32 %v1041, %v1057
          %s1062 = sld [smem:[#allocation6 + $0x13]]
          %v1063 = vstv %s1062
          %v1064 = vmul.f32 %v701, %v1063
          %v1065 = vmul.f32 %v702, %v1063
          %1068 = vrot.lane.b32.xlu0 %v1064, 79
          %v1069 = vpop.permute.xlu0 %1068
          %1070 = vrot.lane.b32.xlu0 %v1065, 79
          %v1071 = vpop.permute.xlu0 %1070
          %v1072 = vrot.slane %v1069, 4
          %v1073 = vrot.slane %v1071, 4
          %v1074 = vsel %vm238, %v1072, %v1073
          %vm1075 = vcmask 646144
          %v1076 = vsel %vm1075, %v1069, %v1074
          %v1077 = vsel %vm1075, %v1071, %v1073
          %v1080 = vadd.f32 %v1060, %v1076
          %v1081 = vadd.f32 %v1061, %v1077
          %s1082 = sld [smem:[#allocation6 + $0x14]]
          %v1083 = vstv %s1082
          %v1084 = vmul.f32 %v701, %v1083
          %v1085 = vmul.f32 %v702, %v1083
          %1088 = vrot.lane.b32.xlu0 %v1084, 78
          %v1089 = vpop.permute.xlu0 %1088
          %1090 = vrot.lane.b32.xlu0 %v1085, 78
          %v1091 = vpop.permute.xlu0 %1090
          %v1092 = vrot.slane %v1089, 4
          %v1093 = vrot.slane %v1091, 4
          %v1094 = vsel %vm238, %v1092, %v1093
          %vm1095 = vcmask 637952
          %v1096 = vsel %vm1095, %v1089, %v1094
          %v1097 = vsel %vm1095, %v1091, %v1093
          %v1100 = vadd.f32 %v1080, %v1096
          %v1101 = vadd.f32 %v1081, %v1097
          %s1102 = sld [smem:[#allocation6 + $0x15]]
          %v1103 = vstv %s1102
          %v1104 = vmul.f32 %v701, %v1103
          %v1105 = vmul.f32 %v702, %v1103
          %1108 = vrot.lane.b32.xlu0 %v1104, 62
          %v1109 = vpop.permute.xlu0 %1108
          %1110 = vrot.lane.b32.xlu0 %v1105, 62
          %v1111 = vpop.permute.xlu0 %1110
          %v1112 = vrot.slane %v1109, 4
          %v1113 = vrot.slane %v1111, 4
          %v1114 = vsel %vm238, %v1112, %v1113
          %vm1115 = vcmask 506880
          %v1116 = vsel %vm1115, %v1109, %v1114
          %v1117 = vsel %vm1115, %v1111, %v1113
          %v1120 = vadd.f32 %v1100, %v1116
          %v1121 = vadd.f32 %v1101, %v1117
          %s1122 = sld [smem:[#allocation6 + $0x16]]
          %v1123 = vstv %s1122
          %v1124 = vmul.f32 %v701, %v1123
          %v1125 = vmul.f32 %v702, %v1123
          %1128 = vrot.lane.b32.xlu0 %v1124, 61
          %v1129 = vpop.permute.xlu0 %1128
          %1130 = vrot.lane.b32.xlu0 %v1125, 61
          %v1131 = vpop.permute.xlu0 %1130
          %v1132 = vrot.slane %v1129, 4
          %v1133 = vrot.slane %v1131, 4
          %v1134 = vsel %vm238, %v1132, %v1133
          %vm1135 = vcmask 498688
          %v1136 = vsel %vm1135, %v1129, %v1134
          %v1137 = vsel %vm1135, %v1131, %v1133
          %v1140 = vadd.f32 %v1120, %v1136
          %v1141 = vadd.f32 %v1121, %v1137
          %s1142 = sld [smem:[#allocation6 + $0x17]]
          %v1143 = vstv %s1142
          %v1144 = vmul.f32 %v701, %v1143
          %v1145 = vmul.f32 %v702, %v1143
          %1148 = vrot.lane.b32.xlu0 %v1144, 60
          %v1149 = vpop.permute.xlu0 %1148
          %1150 = vrot.lane.b32.xlu0 %v1145, 60
          %v1151 = vpop.permute.xlu0 %1150
          %v1152 = vrot.slane %v1149, 4
          %v1153 = vrot.slane %v1151, 4
          %v1154 = vsel %vm238, %v1152, %v1153
          %vm1155 = vcmask 490496
          %v1156 = vsel %vm1155, %v1149, %v1154
          %v1157 = vsel %vm1155, %v1151, %v1153
          %v1160 = vadd.f32 %v1140, %v1156
          %v1161 = vadd.f32 %v1141, %v1157
          %s1162 = sld [smem:[#allocation6 + $0x18]]
          %v1163 = vstv %s1162
          %v1164 = vmul.f32 %v701, %v1163
          %v1165 = vmul.f32 %v702, %v1163
          %1168 = vrot.lane.b32.xlu0 %v1164, 59
          %v1169 = vpop.permute.xlu0 %1168
          %1170 = vrot.lane.b32.xlu0 %v1165, 59
          %v1171 = vpop.permute.xlu0 %1170
          %v1172 = vrot.slane %v1169, 4
          %v1173 = vrot.slane %v1171, 4
          %v1174 = vsel %vm238, %v1172, %v1173
          %vm1175 = vcmask 482304
          %v1176 = vsel %vm1175, %v1169, %v1174
          %v1177 = vsel %vm1175, %v1171, %v1173
          %v1180 = vadd.f32 %v1160, %v1176
          %v1181 = vadd.f32 %v1161, %v1177
          %s1182 = sld [smem:[#allocation6 + $0x19]]
          %v1183 = vstv %s1182
          %v1184 = vmul.f32 %v701, %v1183
          %v1185 = vmul.f32 %v702, %v1183
          %1188 = vrot.lane.b32.xlu0 %v1184, 58
          %v1189 = vpop.permute.xlu0 %1188
          %1190 = vrot.lane.b32.xlu0 %v1185, 58
          %v1191 = vpop.permute.xlu0 %1190
          %v1192 = vrot.slane %v1189, 4
          %v1193 = vrot.slane %v1191, 4
          %v1194 = vsel %vm238, %v1192, %v1193
          %vm1195 = vcmask 474112
          %v1196 = vsel %vm1195, %v1189, %v1194
          %v1197 = vsel %vm1195, %v1191, %v1193
          %v1200 = vadd.f32 %v1180, %v1196
          %v1201 = vadd.f32 %v1181, %v1197
          %s1202 = sld [smem:[#allocation6 + $0x1a]]
          %v1203 = vstv %s1202
          %v1204 = vmul.f32 %v701, %v1203
          %v1205 = vmul.f32 %v702, %v1203
          %1208 = vrot.lane.b32.xlu0 %v1204, 57
          %v1209 = vpop.permute.xlu0 %1208
          %1210 = vrot.lane.b32.xlu0 %v1205, 57
          %v1211 = vpop.permute.xlu0 %1210
          %v1212 = vrot.slane %v1209, 4
          %v1213 = vrot.slane %v1211, 4
          %v1214 = vsel %vm238, %v1212, %v1213
          %vm1215 = vcmask 465920
          %v1216 = vsel %vm1215, %v1209, %v1214
          %v1217 = vsel %vm1215, %v1211, %v1213
          %v1220 = vadd.f32 %v1200, %v1216
          %v1221 = vadd.f32 %v1201, %v1217
          %s1222 = sld [smem:[#allocation6 + $0x1b]]
          %v1223 = vstv %s1222
          %v1224 = vmul.f32 %v701, %v1223
          %v1225 = vmul.f32 %v702, %v1223
          %1228 = vrot.lane.b32.xlu0 %v1224, 56
          %v1229 = vpop.permute.xlu0 %1228
          %1230 = vrot.lane.b32.xlu0 %v1225, 56
          %v1231 = vpop.permute.xlu0 %1230
          %v1232 = vrot.slane %v1229, 4
          %v1233 = vrot.slane %v1231, 4
          %v1234 = vsel %vm238, %v1232, %v1233
          %vm1235 = vcmask 457728
          %v1236 = vsel %vm1235, %v1229, %v1234
          %v1237 = vsel %vm1235, %v1231, %v1233
          %v1240 = vadd.f32 %v1220, %v1236
          %v1241 = vadd.f32 %v1221, %v1237
          %s1242 = sld [smem:[#allocation6 + $0x1c]]
          %v1243 = vstv %s1242
          %v1244 = vmul.f32 %v701, %v1243
          %v1245 = vmul.f32 %v702, %v1243
          %1248 = vrot.lane.b32.xlu0 %v1244, 40
          %v1249 = vpop.permute.xlu0 %1248
          %1250 = vrot.lane.b32.xlu0 %v1245, 40
          %v1251 = vpop.permute.xlu0 %1250
          %v1252 = vrot.slane %v1249, 4
          %v1253 = vrot.slane %v1251, 4
          %v1254 = vsel %vm238, %v1252, %v1253
          %vm1255 = vcmask 326656
          %v1256 = vsel %vm1255, %v1249, %v1254
          %v1257 = vsel %vm1255, %v1251, %v1253
          %v1260 = vadd.f32 %v1240, %v1256
          %v1261 = vadd.f32 %v1241, %v1257
          %s1262 = sld [smem:[#allocation6 + $0x1d]]
          %v1263 = vstv %s1262
          %v1264 = vmul.f32 %v701, %v1263
          %v1265 = vmul.f32 %v702, %v1263
          %1268 = vrot.lane.b32.xlu0 %v1264, 39
          %v1269 = vpop.permute.xlu0 %1268
          %1270 = vrot.lane.b32.xlu0 %v1265, 39
          %v1271 = vpop.permute.xlu0 %1270
          %v1272 = vrot.slane %v1269, 4
          %v1273 = vrot.slane %v1271, 4
          %v1274 = vsel %vm238, %v1272, %v1273
          %vm1275 = vcmask 318464
          %v1276 = vsel %vm1275, %v1269, %v1274
          %v1277 = vsel %vm1275, %v1271, %v1273
          %v1280 = vadd.f32 %v1260, %v1276
          %v1281 = vadd.f32 %v1261, %v1277
          %s1282 = sld [smem:[#allocation6 + $0x1e]]
          %v1283 = vstv %s1282
          %v1284 = vmul.f32 %v701, %v1283
          %v1285 = vmul.f32 %v702, %v1283
          %1288 = vrot.lane.b32.xlu0 %v1284, 38
          %v1289 = vpop.permute.xlu0 %1288
          %1290 = vrot.lane.b32.xlu0 %v1285, 38
          %v1291 = vpop.permute.xlu0 %1290
          %v1292 = vrot.slane %v1289, 4
          %v1293 = vrot.slane %v1291, 4
          %v1294 = vsel %vm238, %v1292, %v1293
          %vm1295 = vcmask 310272
          %v1296 = vsel %vm1295, %v1289, %v1294
          %v1297 = vsel %vm1295, %v1291, %v1293
          %v1300 = vadd.f32 %v1280, %v1296
          %v1301 = vadd.f32 %v1281, %v1297
          %s1302 = sld [smem:[#allocation6 + $0x1f]]
          %v1303 = vstv %s1302
          %v1304 = vmul.f32 %v701, %v1303
          %v1305 = vmul.f32 %v702, %v1303
          %1308 = vrot.lane.b32.xlu0 %v1304, 37
          %v1309 = vpop.permute.xlu0 %1308
          %1310 = vrot.lane.b32.xlu0 %v1305, 37
          %v1311 = vpop.permute.xlu0 %1310
          %v1312 = vrot.slane %v1309, 4
          %v1313 = vrot.slane %v1311, 4
          %v1314 = vsel %vm238, %v1312, %v1313
          %vm1315 = vcmask 302080
          %v1316 = vsel %vm1315, %v1309, %v1314
          %v1317 = vsel %vm1315, %v1311, %v1313
          %v1320 = vadd.f32 %v1300, %v1316
          %v1321 = vadd.f32 %v1301, %v1317
          %s1322 = sld [smem:[#allocation6 + $0x20]]
          %v1323 = vstv %s1322
          %v1324 = vmul.f32 %v701, %v1323
          %v1325 = vmul.f32 %v702, %v1323
          %1328 = vrot.lane.b32.xlu0 %v1324, 36
          %v1329 = vpop.permute.xlu0 %1328
          %1330 = vrot.lane.b32.xlu0 %v1325, 36
          %v1331 = vpop.permute.xlu0 %1330
          %v1332 = vrot.slane %v1329, 4
          %v1333 = vrot.slane %v1331, 4
          %v1334 = vsel %vm238, %v1332, %v1333
          %vm1335 = vcmask 293888
          %v1336 = vsel %vm1335, %v1329, %v1334
          %v1337 = vsel %vm1335, %v1331, %v1333
          %v1340 = vadd.f32 %v1320, %v1336
          %v1341 = vadd.f32 %v1321, %v1337
          %s1342 = sld [smem:[#allocation6 + $0x21]]
          %v1343 = vstv %s1342
          %v1344 = vmul.f32 %v701, %v1343
          %v1345 = vmul.f32 %v702, %v1343
          %1348 = vrot.lane.b32.xlu0 %v1344, 35
          %v1349 = vpop.permute.xlu0 %1348
          %1350 = vrot.lane.b32.xlu0 %v1345, 35
          %v1351 = vpop.permute.xlu0 %1350
          %v1352 = vrot.slane %v1349, 4
          %v1353 = vrot.slane %v1351, 4
          %v1354 = vsel %vm238, %v1352, %v1353
          %vm1355 = vcmask 285696
          %v1356 = vsel %vm1355, %v1349, %v1354
          %v1357 = vsel %vm1355, %v1351, %v1353
          %v1360 = vadd.f32 %v1340, %v1356
          %v1361 = vadd.f32 %v1341, %v1357
          %s1362 = sld [smem:[#allocation6 + $0x22]]
          %v1363 = vstv %s1362
          %v1364 = vmul.f32 %v701, %v1363
          %v1365 = vmul.f32 %v702, %v1363
          %1368 = vrot.lane.b32.xlu0 %v1364, 34
          %v1369 = vpop.permute.xlu0 %1368
          %1370 = vrot.lane.b32.xlu0 %v1365, 34
          %v1371 = vpop.permute.xlu0 %1370
          %v1372 = vrot.slane %v1369, 4
          %v1373 = vrot.slane %v1371, 4
          %v1374 = vsel %vm238, %v1372, %v1373
          %vm1375 = vcmask 277504
          %v1376 = vsel %vm1375, %v1369, %v1374
          %v1377 = vsel %vm1375, %v1371, %v1373
          %v1380 = vadd.f32 %v1360, %v1376
          %v1381 = vadd.f32 %v1361, %v1377
          %s1382 = sld [smem:[#allocation6 + $0x23]]
          %v1383 = vstv %s1382
          %v1384 = vmul.f32 %v701, %v1383
          %v1385 = vmul.f32 %v702, %v1383
          %1388 = vrot.lane.b32.xlu0 %v1384, 18
          %v1389 = vpop.permute.xlu0 %1388
          %1390 = vrot.lane.b32.xlu0 %v1385, 18
          %v1391 = vpop.permute.xlu0 %1390
          %v1392 = vrot.slane %v1389, 4
          %v1393 = vrot.slane %v1391, 4
          %v1394 = vsel %vm238, %v1392, %v1393
          %vm1395 = vcmask 146432
          %v1396 = vsel %vm1395, %v1389, %v1394
          %v1397 = vsel %vm1395, %v1391, %v1393
          %v1400 = vadd.f32 %v1380, %v1396
          %v1401 = vadd.f32 %v1381, %v1397
          %s1402 = sld [smem:[#allocation6 + $0x24]]
          %v1403 = vstv %s1402
          %v1404 = vmul.f32 %v701, %v1403
          %v1405 = vmul.f32 %v702, %v1403
          %1408 = vrot.lane.b32.xlu0 %v1404, 17
          %v1409 = vpop.permute.xlu0 %1408
          %1410 = vrot.lane.b32.xlu0 %v1405, 17
          %v1411 = vpop.permute.xlu0 %1410
          %v1412 = vrot.slane %v1409, 4
          %v1413 = vrot.slane %v1411, 4
          %v1414 = vsel %vm238, %v1412, %v1413
          %vm1415 = vcmask 138240
          %v1416 = vsel %vm1415, %v1409, %v1414
          %v1417 = vsel %vm1415, %v1411, %v1413
          %v1420 = vadd.f32 %v1400, %v1416
          %v1421 = vadd.f32 %v1401, %v1417
          %s1422 = sld [smem:[#allocation6 + $0x25]]
          %v1423 = vstv %s1422
          %v1424 = vmul.f32 %v701, %v1423
          %v1425 = vmul.f32 %v702, %v1423
          %1428 = vrot.lane.b32.xlu0 %v1424, 16
          %v1429 = vpop.permute.xlu0 %1428
          %1430 = vrot.lane.b32.xlu0 %v1425, 16
          %v1431 = vpop.permute.xlu0 %1430
          %v1432 = vrot.slane %v1429, 4
          %v1433 = vrot.slane %v1431, 4
          %v1434 = vsel %vm238, %v1432, %v1433
          %vm1435 = vcmask 130048
          %v1436 = vsel %vm1435, %v1429, %v1434
          %v1437 = vsel %vm1435, %v1431, %v1433
          %v1440 = vadd.f32 %v1420, %v1436
          %v1441 = vadd.f32 %v1421, %v1437
          %s1442 = sld [smem:[#allocation6 + $0x26]]
          %v1443 = vstv %s1442
          %v1444 = vmul.f32 %v701, %v1443
          %v1445 = vmul.f32 %v702, %v1443
          %1448 = vrot.lane.b32.xlu0 %v1444, 15
          %v1449 = vpop.permute.xlu0 %1448
          %1450 = vrot.lane.b32.xlu0 %v1445, 15
          %v1451 = vpop.permute.xlu0 %1450
          %v1452 = vrot.slane %v1449, 4
          %v1453 = vrot.slane %v1451, 4
          %v1454 = vsel %vm238, %v1452, %v1453
          %vm1455 = vcmask 121856
          %v1456 = vsel %vm1455, %v1449, %v1454
          %v1457 = vsel %vm1455, %v1451, %v1453
          %v1460 = vadd.f32 %v1440, %v1456
          %v1461 = vadd.f32 %v1441, %v1457
          %s1462 = sld [smem:[#allocation6 + $0x27]]
          %v1463 = vstv %s1462
          %v1464 = vmul.f32 %v701, %v1463
          %v1465 = vmul.f32 %v702, %v1463
          %1468 = vrot.lane.b32.xlu0 %v1464, 14
          %v1469 = vpop.permute.xlu0 %1468
          %1470 = vrot.lane.b32.xlu0 %v1465, 14
          %v1471 = vpop.permute.xlu0 %1470
          %v1472 = vrot.slane %v1469, 4
          %v1473 = vrot.slane %v1471, 4
          %v1474 = vsel %vm238, %v1472, %v1473
          %vm1475 = vcmask 113664
          %v1476 = vsel %vm1475, %v1469, %v1474
          %v1477 = vsel %vm1475, %v1471, %v1473
          %v1480 = vadd.f32 %v1460, %v1476
          %v1481 = vadd.f32 %v1461, %v1477
          %s1482 = sld [smem:[#allocation6 + $0x28]]
          %v1483 = vstv %s1482
          %v1484 = vmul.f32 %v701, %v1483
          %v1485 = vmul.f32 %v702, %v1483
          %1488 = vrot.lane.b32.xlu0 %v1484, 13
          %v1489 = vpop.permute.xlu0 %1488
          %1490 = vrot.lane.b32.xlu0 %v1485, 13
          %v1491 = vpop.permute.xlu0 %1490
          %v1492 = vrot.slane %v1489, 4
          %v1493 = vrot.slane %v1491, 4
          %v1494 = vsel %vm238, %v1492, %v1493
          %vm1495 = vcmask 105472
          %v1496 = vsel %vm1495, %v1489, %v1494
          %v1497 = vsel %vm1495, %v1491, %v1493
          %v1500 = vadd.f32 %v1480, %v1496
          %v1501 = vadd.f32 %v1481, %v1497
          %s1502 = sld [smem:[#allocation6 + $0x29]]
          %v1503 = vstv %s1502
          %v1504 = vmul.f32 %v701, %v1503
          %v1505 = vmul.f32 %v702, %v1503
          %1508 = vrot.lane.b32.xlu0 %v1504, 12
          %v1509 = vpop.permute.xlu0 %1508
          %1510 = vrot.lane.b32.xlu0 %v1505, 12
          %v1511 = vpop.permute.xlu0 %1510
          %v1512 = vrot.slane %v1509, 4
          %v1513 = vrot.slane %v1511, 4
          %v1514 = vsel %vm238, %v1512, %v1513
          %vm1515 = vcmask 97280
          %v1516 = vsel %vm1515, %v1509, %v1514
          %v1517 = vsel %vm1515, %v1511, %v1513
          %v1520 = vadd.f32 %v1500, %v1516
          %v1521 = vadd.f32 %v1501, %v1517
          %v1522 = vld [vmem:[#allocation4 + $0x4] sm:$0xff]
          %v1523 = vld [vmem:[#allocation4 + $0xc] sm:$0xff]
          %s1524 = sld [smem:[#allocation6 + $0x2a]]
          %v1525 = vstv %s1524
          %v1526 = vmul.f32 %v1522, %v1525
          %v1527 = vmul.f32 %v1523, %v1525
          %1530 = vrot.lane.b32.xlu0 %v1526, 124
          %v1531 = vpop.permute.xlu0 %1530
          %1532 = vrot.lane.b32.xlu0 %v1527, 124
          %v1533 = vpop.permute.xlu0 %1532
          %v1534 = vrot.slane %v1531, 4
          %v1535 = vrot.slane %v1533, 4
          %v1536 = vsel %vm238, %v1534, %v1535
          %v1537 = vsel %vm776, %v1531, %v1536
          %v1538 = vsel %vm776, %v1533, %v1535
          %v1541 = vadd.f32 %v1520, %v1537
          %v1542 = vadd.f32 %v1521, %v1538
          %s1543 = sld [smem:[#allocation6 + $0x2b]]
          %v1544 = vstv %s1543
          %v1545 = vmul.f32 %v1522, %v1544
          %v1546 = vmul.f32 %v1523, %v1544
          %1549 = vrot.lane.b32.xlu0 %v1545, 123
          %v1550 = vpop.permute.xlu0 %1549
          %1551 = vrot.lane.b32.xlu0 %v1546, 123
          %v1552 = vpop.permute.xlu0 %1551
          %v1553 = vrot.slane %v1550, 4
          %v1554 = vrot.slane %v1552, 4
          %v1555 = vsel %vm238, %v1553, %v1554
          %v1556 = vsel %vm796, %v1550, %v1555
          %v1557 = vsel %vm796, %v1552, %v1554
          %v1560 = vadd.f32 %v1541, %v1556
          %v1561 = vadd.f32 %v1542, %v1557
          %s1562 = sld [smem:[#allocation6 + $0x2c]]
          %v1563 = vstv %s1562
          %v1564 = vmul.f32 %v1522, %v1563
          %v1565 = vmul.f32 %v1523, %v1563
          %1568 = vrot.lane.b32.xlu0 %v1564, 122
          %v1569 = vpop.permute.xlu0 %1568
          %1570 = vrot.lane.b32.xlu0 %v1565, 122
          %v1571 = vpop.permute.xlu0 %1570
          %v1572 = vrot.slane %v1569, 4
          %v1573 = vrot.slane %v1571, 4
          %v1574 = vsel %vm238, %v1572, %v1573
          %v1575 = vsel %vm816, %v1569, %v1574
          %v1576 = vsel %vm816, %v1571, %v1573
          %v1579 = vadd.f32 %v1560, %v1575
          %v1580 = vadd.f32 %v1561, %v1576
          %s1581 = sld [smem:[#allocation6 + $0x2d]]
          %v1582 = vstv %s1581
          %v1583 = vmul.f32 %v1522, %v1582
          %v1584 = vmul.f32 %v1523, %v1582
          %1587 = vrot.lane.b32.xlu0 %v1583, 121
          %v1588 = vpop.permute.xlu0 %1587
          %1589 = vrot.lane.b32.xlu0 %v1584, 121
          %v1590 = vpop.permute.xlu0 %1589
          %v1591 = vrot.slane %v1588, 4
          %v1592 = vrot.slane %v1590, 4
          %v1593 = vsel %vm238, %v1591, %v1592
          %v1594 = vsel %vm660, %v1588, %v1593
          %v1595 = vsel %vm660, %v1590, %v1592
          %v1598 = vadd.f32 %v1579, %v1594
          %v1599 = vadd.f32 %v1580, %v1595
          %s1600 = sld [smem:[#allocation6 + $0x2e]]
          %v1601 = vstv %s1600
          %v1602 = vmul.f32 %v1522, %v1601
          %v1603 = vmul.f32 %v1523, %v1601
          %1606 = vrot.lane.b32.xlu0 %v1602, 120
          %v1607 = vpop.permute.xlu0 %1606
          %1608 = vrot.lane.b32.xlu0 %v1603, 120
          %v1609 = vpop.permute.xlu0 %1608
          %v1610 = vrot.slane %v1607, 4
          %v1611 = vrot.slane %v1609, 4
          %v1612 = vsel %vm238, %v1610, %v1611
          %vm1613 = vcmask 982016
          %v1614 = vsel %vm1613, %v1607, %v1612
          %v1615 = vsel %vm1613, %v1609, %v1611
          %v1618 = vadd.f32 %v1598, %v1614
          %v1619 = vadd.f32 %v1599, %v1615
          %s1620 = sld [smem:[#allocation6 + $0x2f]]
          %v1621 = vstv %s1620
          %v1622 = vmul.f32 %v1522, %v1621
          %v1623 = vmul.f32 %v1523, %v1621
          %1626 = vrot.lane.b32.xlu0 %v1622, 119
          %v1627 = vpop.permute.xlu0 %1626
          %1628 = vrot.lane.b32.xlu0 %v1623, 119
          %v1629 = vpop.permute.xlu0 %1628
          %v1630 = vrot.slane %v1627, 4
          %v1631 = vrot.slane %v1629, 4
          %v1632 = vsel %vm238, %v1630, %v1631
          %vm1633 = vcmask 973824
          %v1634 = vsel %vm1633, %v1627, %v1632
          %v1635 = vsel %vm1633, %v1629, %v1631
          %v1638 = vadd.f32 %v1618, %v1634
          %v1639 = vadd.f32 %v1619, %v1635
          %s1640 = sld [smem:[#allocation6 + $0x30]]
          %v1641 = vstv %s1640
          %v1642 = vmul.f32 %v1522, %v1641
          %v1643 = vmul.f32 %v1523, %v1641
          %1646 = vrot.lane.b32.xlu0 %v1642, 118
          %v1647 = vpop.permute.xlu0 %1646
          %1648 = vrot.lane.b32.xlu0 %v1643, 118
          %v1649 = vpop.permute.xlu0 %1648
          %v1650 = vrot.slane %v1647, 4
          %v1651 = vrot.slane %v1649, 4
          %v1652 = vsel %vm238, %v1650, %v1651
          %vm1653 = vcmask 965632
          %v1654 = vsel %vm1653, %v1647, %v1652
          %v1655 = vsel %vm1653, %v1649, %v1651
          %v1658 = vadd.f32 %v1638, %v1654
          %v1659 = vadd.f32 %v1639, %v1655
          %v1660 = vld [vmem:[%s489] sm:$0xff]
          %v1661 = vld [vmem:[%s489 + $0x8] sm:$0xf]
          %s1662 = sld [smem:[#allocation6 + $0x31]]
          %v1663 = vstv %s1662
          %v1664 = vmul.f32 %v1660, %v1663
          %v1665 = vmul.f32 %v1661, %v1663
          %v1666 = vadd.f32 %v1658, %v1664
          %v1667 = vadd.f32 %v1659, %v1665
          %v1668 = vld [vmem:[%s489] sm:$0xff]
          %v1669 = vld [vmem:[%s489 + $0x8] sm:$0xff]
          %s1670 = sld [smem:[#allocation6 + $0x32]]
          %v1671 = vstv %s1670
          %v1672 = vmul.f32 %v1668, %v1671
          %v1673 = vmul.f32 %v1669, %v1671
          %1676 = vrot.lane.b32.xlu0 %v1672, 127
          %v1677 = vpop.permute.xlu0 %1676
          %1678 = vrot.lane.b32.xlu0 %v1673, 127
          %v1679 = vpop.permute.xlu0 %1678
          %v1680 = vrot.slane %v1677, 4
          %v1681 = vrot.slane %v1679, 4
          %v1682 = vsel %vm238, %v1680, %v1681
          %v1683 = vsel %vm716, %v1677, %v1682
          %v1684 = vsel %vm716, %v1679, %v1681
          %v1687 = vadd.f32 %v1666, %v1683
          %v1688 = vadd.f32 %v1667, %v1684
          %s1689 = sld [smem:[#allocation6 + $0x33]]
          %v1690 = vstv %s1689
          %v1691 = vmul.f32 %v1668, %v1690
          %v1692 = vmul.f32 %v1669, %v1690
          %1695 = vrot.lane.b32.xlu0 %v1691, 126
          %v1696 = vpop.permute.xlu0 %1695
          %1697 = vrot.lane.b32.xlu0 %v1692, 126
          %v1698 = vpop.permute.xlu0 %1697
          %v1699 = vrot.slane %v1696, 4
          %v1700 = vrot.slane %v1698, 4
          %v1701 = vsel %vm238, %v1699, %v1700
          %v1702 = vsel %vm736, %v1696, %v1701
          %v1703 = vsel %vm736, %v1698, %v1700
          %v1706 = vadd.f32 %v1687, %v1702
          %v1707 = vadd.f32 %v1688, %v1703
          %s1708 = sld [smem:[#allocation6 + $0x34]]
          %v1709 = vstv %s1708
          %v1710 = vmul.f32 %v1668, %v1709
          %v1711 = vmul.f32 %v1669, %v1709
          %1714 = vrot.lane.b32.xlu0 %v1710, 125
          %v1715 = vpop.permute.xlu0 %1714
          %1716 = vrot.lane.b32.xlu0 %v1711, 125
          %v1717 = vpop.permute.xlu0 %1716
          %v1718 = vrot.slane %v1715, 4
          %v1719 = vrot.slane %v1717, 4
          %v1720 = vsel %vm238, %v1718, %v1719
          %v1721 = vsel %vm756, %v1715, %v1720
          %v1722 = vsel %vm756, %v1717, %v1719
          %v1725 = vadd.f32 %v1706, %v1721
          %v1726 = vadd.f32 %v1707, %v1722
          %s1727 = sld [smem:[#allocation6 + $0x35]]
          %v1728 = vstv %s1727
          %v1729 = vmul.f32 %v1668, %v1728
          %v1730 = vmul.f32 %v1669, %v1728
          %1733 = vrot.lane.b32.xlu0 %v1729, 124
          %v1734 = vpop.permute.xlu0 %1733
          %1735 = vrot.lane.b32.xlu0 %v1730, 124
          %v1736 = vpop.permute.xlu0 %1735
          %v1737 = vrot.slane %v1734, 4
          %v1738 = vrot.slane %v1736, 4
          %v1739 = vsel %vm238, %v1737, %v1738
          %v1740 = vsel %vm776, %v1734, %v1739
          %v1741 = vsel %vm776, %v1736, %v1738
          %v1744 = vadd.f32 %v1725, %v1740
          %v1745 = vadd.f32 %v1726, %v1741
          %s1746 = sld [smem:[#allocation6 + $0x36]]
          %v1747 = vstv %s1746
          %v1748 = vmul.f32 %v1668, %v1747
          %v1749 = vmul.f32 %v1669, %v1747
          %1752 = vrot.lane.b32.xlu0 %v1748, 123
          %v1753 = vpop.permute.xlu0 %1752
          %1754 = vrot.lane.b32.xlu0 %v1749, 123
          %v1755 = vpop.permute.xlu0 %1754
          %v1756 = vrot.slane %v1753, 4
          %v1757 = vrot.slane %v1755, 4
          %v1758 = vsel %vm238, %v1756, %v1757
          %v1759 = vsel %vm796, %v1753, %v1758
          %v1760 = vsel %vm796, %v1755, %v1757
          %v1763 = vadd.f32 %v1744, %v1759
          %v1764 = vadd.f32 %v1745, %v1760
          %s1765 = sld [smem:[#allocation6 + $0x37]]
          %v1766 = vstv %s1765
          %v1767 = vmul.f32 %v1668, %v1766
          %v1768 = vmul.f32 %v1669, %v1766
          %1771 = vrot.lane.b32.xlu0 %v1767, 122
          %v1772 = vpop.permute.xlu0 %1771
          %1773 = vrot.lane.b32.xlu0 %v1768, 122
          %v1774 = vpop.permute.xlu0 %1773
          %v1775 = vrot.slane %v1772, 4
          %v1776 = vrot.slane %v1774, 4
          %v1777 = vsel %vm238, %v1775, %v1776
          %v1778 = vsel %vm816, %v1772, %v1777
          %v1779 = vsel %vm816, %v1774, %v1776
          %v1782 = vadd.f32 %v1763, %v1778
          %v1783 = vadd.f32 %v1764, %v1779
          %s1784 = sld [smem:[#allocation6 + $0x38]]
          %v1785 = vstv %s1784
          %v1786 = vmul.f32 %v1668, %v1785
          %v1787 = vmul.f32 %v1669, %v1785
          %1790 = vrot.lane.b32.xlu0 %v1786, 106
          %v1791 = vpop.permute.xlu0 %1790
          %1792 = vrot.lane.b32.xlu0 %v1787, 106
          %v1793 = vpop.permute.xlu0 %1792
          %v1794 = vrot.slane %v1791, 4
          %v1795 = vrot.slane %v1793, 4
          %v1796 = vsel %vm238, %v1794, %v1795
          %v1797 = vsel %vm836, %v1791, %v1796
          %v1798 = vsel %vm836, %v1793, %v1795
          %v1801 = vadd.f32 %v1782, %v1797
          %v1802 = vadd.f32 %v1783, %v1798
          %s1803 = sld [smem:[#allocation6 + $0x39]]
          %v1804 = vstv %s1803
          %v1805 = vmul.f32 %v1668, %v1804
          %v1806 = vmul.f32 %v1669, %v1804
          %1809 = vrot.lane.b32.xlu0 %v1805, 105
          %v1810 = vpop.permute.xlu0 %1809
          %1811 = vrot.lane.b32.xlu0 %v1806, 105
          %v1812 = vpop.permute.xlu0 %1811
          %v1813 = vrot.slane %v1810, 4
          %v1814 = vrot.slane %v1812, 4
          %v1815 = vsel %vm238, %v1813, %v1814
          %v1816 = vsel %vm856, %v1810, %v1815
          %v1817 = vsel %vm856, %v1812, %v1814
          %v1820 = vadd.f32 %v1801, %v1816
          %v1821 = vadd.f32 %v1802, %v1817
          %s1822 = sld [smem:[#allocation6 + $0x3a]]
          %v1823 = vstv %s1822
          %v1824 = vmul.f32 %v1668, %v1823
          %v1825 = vmul.f32 %v1669, %v1823
          %1828 = vrot.lane.b32.xlu0 %v1824, 104
          %v1829 = vpop.permute.xlu0 %1828
          %1830 = vrot.lane.b32.xlu0 %v1825, 104
          %v1831 = vpop.permute.xlu0 %1830
          %v1832 = vrot.slane %v1829, 4
          %v1833 = vrot.slane %v1831, 4
          %v1834 = vsel %vm238, %v1832, %v1833
          %v1835 = vsel %vm876, %v1829, %v1834
          %v1836 = vsel %vm876, %v1831, %v1833
          %v1839 = vadd.f32 %v1820, %v1835
          %v1840 = vadd.f32 %v1821, %v1836
          %s1841 = sld [smem:[#allocation6 + $0x3b]]
          %v1842 = vstv %s1841
          %v1843 = vmul.f32 %v1668, %v1842
          %v1844 = vmul.f32 %v1669, %v1842
          %1847 = vrot.lane.b32.xlu0 %v1843, 103
          %v1848 = vpop.permute.xlu0 %1847
          %1849 = vrot.lane.b32.xlu0 %v1844, 103
          %v1850 = vpop.permute.xlu0 %1849
          %v1851 = vrot.slane %v1848, 4
          %v1852 = vrot.slane %v1850, 4
          %v1853 = vsel %vm238, %v1851, %v1852
          %v1854 = vsel %vm896, %v1848, %v1853
          %v1855 = vsel %vm896, %v1850, %v1852
          %v1858 = vadd.f32 %v1839, %v1854
          %v1859 = vadd.f32 %v1840, %v1855
          %s1860 = sld [smem:[#allocation6 + $0x3c]]
          %v1861 = vstv %s1860
          %v1862 = vmul.f32 %v1668, %v1861
          %v1863 = vmul.f32 %v1669, %v1861
          %1866 = vrot.lane.b32.xlu0 %v1862, 102
          %v1867 = vpop.permute.xlu0 %1866
          %1868 = vrot.lane.b32.xlu0 %v1863, 102
          %v1869 = vpop.permute.xlu0 %1868
          %v1870 = vrot.slane %v1867, 4
          %v1871 = vrot.slane %v1869, 4
          %v1872 = vsel %vm238, %v1870, %v1871
          %v1873 = vsel %vm916, %v1867, %v1872
          %v1874 = vsel %vm916, %v1869, %v1871
          %v1877 = vadd.f32 %v1858, %v1873
          %v1878 = vadd.f32 %v1859, %v1874
          %s1879 = sld [smem:[#allocation6 + $0x3d]]
          %v1880 = vstv %s1879
          %v1881 = vmul.f32 %v1668, %v1880
          %v1882 = vmul.f32 %v1669, %v1880
          %1885 = vrot.lane.b32.xlu0 %v1881, 101
          %v1886 = vpop.permute.xlu0 %1885
          %1887 = vrot.lane.b32.xlu0 %v1882, 101
          %v1888 = vpop.permute.xlu0 %1887
          %v1889 = vrot.slane %v1886, 4
          %v1890 = vrot.slane %v1888, 4
          %v1891 = vsel %vm238, %v1889, %v1890
          %v1892 = vsel %vm936, %v1886, %v1891
          %v1893 = vsel %vm936, %v1888, %v1890
          %v1896 = vadd.f32 %v1877, %v1892
          %v1897 = vadd.f32 %v1878, %v1893
          %s1898 = sld [smem:[#allocation6 + $0x3e]]
          %v1899 = vstv %s1898
          %v1900 = vmul.f32 %v1668, %v1899
          %v1901 = vmul.f32 %v1669, %v1899
          %1904 = vrot.lane.b32.xlu0 %v1900, 100
          %v1905 = vpop.permute.xlu0 %1904
          %1906 = vrot.lane.b32.xlu0 %v1901, 100
          %v1907 = vpop.permute.xlu0 %1906
          %v1908 = vrot.slane %v1905, 4
          %v1909 = vrot.slane %v1907, 4
          %v1910 = vsel %vm238, %v1908, %v1909
          %v1911 = vsel %vm956, %v1905, %v1910
          %v1912 = vsel %vm956, %v1907, %v1909
          %v1915 = vadd.f32 %v1896, %v1911
          %v1916 = vadd.f32 %v1897, %v1912
          %s1917 = sld [smem:[#allocation6 + $0x3f]]
          %v1918 = vstv %s1917
          %v1919 = vmul.f32 %v1668, %v1918
          %v1920 = vmul.f32 %v1669, %v1918
          %1923 = vrot.lane.b32.xlu0 %v1919, 84
          %v1924 = vpop.permute.xlu0 %1923
          %1925 = vrot.lane.b32.xlu0 %v1920, 84
          %v1926 = vpop.permute.xlu0 %1925
          %v1927 = vrot.slane %v1924, 4
          %v1928 = vrot.slane %v1926, 4
          %v1929 = vsel %vm238, %v1927, %v1928
          %v1930 = vsel %vm976, %v1924, %v1929
          %v1931 = vsel %vm976, %v1926, %v1928
          %v1934 = vadd.f32 %v1915, %v1930
          %v1935 = vadd.f32 %v1916, %v1931
          %s1936 = sld [smem:[#allocation6 + $0x40]]
          %v1937 = vstv %s1936
          %v1938 = vmul.f32 %v1668, %v1937
          %v1939 = vmul.f32 %v1669, %v1937
          %1942 = vrot.lane.b32.xlu0 %v1938, 83
          %v1943 = vpop.permute.xlu0 %1942
          %1944 = vrot.lane.b32.xlu0 %v1939, 83
          %v1945 = vpop.permute.xlu0 %1944
          %v1946 = vrot.slane %v1943, 4
          %v1947 = vrot.slane %v1945, 4
          %v1948 = vsel %vm238, %v1946, %v1947
          %v1949 = vsel %vm996, %v1943, %v1948
          %v1950 = vsel %vm996, %v1945, %v1947
          %v1953 = vadd.f32 %v1934, %v1949
          %v1954 = vadd.f32 %v1935, %v1950
          %s1955 = sld [smem:[#allocation6 + $0x41]]
          %v1956 = vstv %s1955
          %v1957 = vmul.f32 %v1668, %v1956
          %v1958 = vmul.f32 %v1669, %v1956
          %1961 = vrot.lane.b32.xlu0 %v1957, 82
          %v1962 = vpop.permute.xlu0 %1961
          %1963 = vrot.lane.b32.xlu0 %v1958, 82
          %v1964 = vpop.permute.xlu0 %1963
          %v1965 = vrot.slane %v1962, 4
          %v1966 = vrot.slane %v1964, 4
          %v1967 = vsel %vm238, %v1965, %v1966
          %v1968 = vsel %vm1016, %v1962, %v1967
          %v1969 = vsel %vm1016, %v1964, %v1966
          %v1972 = vadd.f32 %v1953, %v1968
          %v1973 = vadd.f32 %v1954, %v1969
          %s1974 = sld [smem:[#allocation6 + $0x42]]
          %v1975 = vstv %s1974
          %v1976 = vmul.f32 %v1668, %v1975
          %v1977 = vmul.f32 %v1669, %v1975
          %1980 = vrot.lane.b32.xlu0 %v1976, 81
          %v1981 = vpop.permute.xlu0 %1980
          %1982 = vrot.lane.b32.xlu0 %v1977, 81
          %v1983 = vpop.permute.xlu0 %1982
          %v1984 = vrot.slane %v1981, 4
          %v1985 = vrot.slane %v1983, 4
          %v1986 = vsel %vm238, %v1984, %v1985
          %v1987 = vsel %vm503, %v1981, %v1986
          %v1988 = vsel %vm503, %v1983, %v1985
          %v1991 = vadd.f32 %v1972, %v1987
          %v1992 = vadd.f32 %v1973, %v1988
          %s1993 = sld [smem:[#allocation6 + $0x43]]
          %v1994 = vstv %s1993
          %v1995 = vmul.f32 %v1668, %v1994
          %v1996 = vmul.f32 %v1669, %v1994
          %1999 = vrot.lane.b32.xlu0 %v1995, 80
          %v2000 = vpop.permute.xlu0 %1999
          %2001 = vrot.lane.b32.xlu0 %v1996, 80
          %v2002 = vpop.permute.xlu0 %2001
          %v2003 = vrot.slane %v2000, 4
          %v2004 = vrot.slane %v2002, 4
          %v2005 = vsel %vm238, %v2003, %v2004
          %v2006 = vsel %vm1055, %v2000, %v2005
          %v2007 = vsel %vm1055, %v2002, %v2004
          %v2010 = vadd.f32 %v1991, %v2006
          %v2011 = vadd.f32 %v1992, %v2007
          %s2012 = sld [smem:[#allocation6 + $0x44]]
          %v2013 = vstv %s2012
          %v2014 = vmul.f32 %v1668, %v2013
          %v2015 = vmul.f32 %v1669, %v2013
          %2018 = vrot.lane.b32.xlu0 %v2014, 79
          %v2019 = vpop.permute.xlu0 %2018
          %2020 = vrot.lane.b32.xlu0 %v2015, 79
          %v2021 = vpop.permute.xlu0 %2020
          %v2022 = vrot.slane %v2019, 4
          %v2023 = vrot.slane %v2021, 4
          %v2024 = vsel %vm238, %v2022, %v2023
          %v2025 = vsel %vm1075, %v2019, %v2024
          %v2026 = vsel %vm1075, %v2021, %v2023
          %v2029 = vadd.f32 %v2010, %v2025
          %v2030 = vadd.f32 %v2011, %v2026
          %s2031 = sld [smem:[#allocation6 + $0x45]]
          %v2032 = vstv %s2031
          %v2033 = vmul.f32 %v1668, %v2032
          %v2034 = vmul.f32 %v1669, %v2032
          %2037 = vrot.lane.b32.xlu0 %v2033, 78
          %v2038 = vpop.permute.xlu0 %2037
          %2039 = vrot.lane.b32.xlu0 %v2034, 78
          %v2040 = vpop.permute.xlu0 %2039
          %v2041 = vrot.slane %v2038, 4
          %v2042 = vrot.slane %v2040, 4
          %v2043 = vsel %vm238, %v2041, %v2042
          %v2044 = vsel %vm1095, %v2038, %v2043
          %v2045 = vsel %vm1095, %v2040, %v2042
          %v2048 = vadd.f32 %v2029, %v2044
          %v2049 = vadd.f32 %v2030, %v2045
          %s2050 = sld [smem:[#allocation6 + $0x46]]
          %v2051 = vstv %s2050
          %v2052 = vmul.f32 %v1668, %v2051
          %v2053 = vmul.f32 %v1669, %v2051
          %2056 = vrot.lane.b32.xlu0 %v2052, 62
          %v2057 = vpop.permute.xlu0 %2056
          %2058 = vrot.lane.b32.xlu0 %v2053, 62
          %v2059 = vpop.permute.xlu0 %2058
          %v2060 = vrot.slane %v2057, 4
          %v2061 = vrot.slane %v2059, 4
          %v2062 = vsel %vm238, %v2060, %v2061
          %v2063 = vsel %vm1115, %v2057, %v2062
          %v2064 = vsel %vm1115, %v2059, %v2061
          %v2067 = vadd.f32 %v2048, %v2063
          %v2068 = vadd.f32 %v2049, %v2064
          %s2069 = sld [smem:[#allocation6 + $0x47]]
          %v2070 = vstv %s2069
          %v2071 = vmul.f32 %v1668, %v2070
          %v2072 = vmul.f32 %v1669, %v2070
          %2075 = vrot.lane.b32.xlu0 %v2071, 61
          %v2076 = vpop.permute.xlu0 %2075
          %2077 = vrot.lane.b32.xlu0 %v2072, 61
          %v2078 = vpop.permute.xlu0 %2077
          %v2079 = vrot.slane %v2076, 4
          %v2080 = vrot.slane %v2078, 4
          %v2081 = vsel %vm238, %v2079, %v2080
          %v2082 = vsel %vm1135, %v2076, %v2081
          %v2083 = vsel %vm1135, %v2078, %v2080
          %v2086 = vadd.f32 %v2067, %v2082
          %v2087 = vadd.f32 %v2068, %v2083
          %s2088 = sld [smem:[#allocation6 + $0x48]]
          %v2089 = vstv %s2088
          %v2090 = vmul.f32 %v1668, %v2089
          %v2091 = vmul.f32 %v1669, %v2089
          %2094 = vrot.lane.b32.xlu0 %v2090, 60
          %v2095 = vpop.permute.xlu0 %2094
          %2096 = vrot.lane.b32.xlu0 %v2091, 60
          %v2097 = vpop.permute.xlu0 %2096
          %v2098 = vrot.slane %v2095, 4
          %v2099 = vrot.slane %v2097, 4
          %v2100 = vsel %vm238, %v2098, %v2099
          %v2101 = vsel %vm1155, %v2095, %v2100
          %v2102 = vsel %vm1155, %v2097, %v2099
          %v2105 = vadd.f32 %v2086, %v2101
          %v2106 = vadd.f32 %v2087, %v2102
          %s2107 = sld [smem:[#allocation6 + $0x49]]
          %v2108 = vstv %s2107
          %v2109 = vmul.f32 %v1668, %v2108
          %v2110 = vmul.f32 %v1669, %v2108
          %2113 = vrot.lane.b32.xlu0 %v2109, 59
          %v2114 = vpop.permute.xlu0 %2113
          %2115 = vrot.lane.b32.xlu0 %v2110, 59
          %v2116 = vpop.permute.xlu0 %2115
          %v2117 = vrot.slane %v2114, 4
          %v2118 = vrot.slane %v2116, 4
          %v2119 = vsel %vm238, %v2117, %v2118
          %v2120 = vsel %vm1175, %v2114, %v2119
          %v2121 = vsel %vm1175, %v2116, %v2118
          %v2124 = vadd.f32 %v2105, %v2120
          %v2125 = vadd.f32 %v2106, %v2121
          %s2126 = sld [smem:[#allocation6 + $0x4a]]
          %v2127 = vstv %s2126
          %v2128 = vmul.f32 %v1668, %v2127
          %v2129 = vmul.f32 %v1669, %v2127
          %2132 = vrot.lane.b32.xlu0 %v2128, 58
          %v2133 = vpop.permute.xlu0 %2132
          %2134 = vrot.lane.b32.xlu0 %v2129, 58
          %v2135 = vpop.permute.xlu0 %2134
          %v2136 = vrot.slane %v2133, 4
          %v2137 = vrot.slane %v2135, 4
          %v2138 = vsel %vm238, %v2136, %v2137
          %v2139 = vsel %vm1195, %v2133, %v2138
          %v2140 = vsel %vm1195, %v2135, %v2137
          %v2143 = vadd.f32 %v2124, %v2139
          %v2144 = vadd.f32 %v2125, %v2140
          %s2145 = sld [smem:[#allocation6 + $0x4b]]
          %v2146 = vstv %s2145
          %v2147 = vmul.f32 %v1668, %v2146
          %v2148 = vmul.f32 %v1669, %v2146
          %2151 = vrot.lane.b32.xlu0 %v2147, 57
          %v2152 = vpop.permute.xlu0 %2151
          %2153 = vrot.lane.b32.xlu0 %v2148, 57
          %v2154 = vpop.permute.xlu0 %2153
          %v2155 = vrot.slane %v2152, 4
          %v2156 = vrot.slane %v2154, 4
          %v2157 = vsel %vm238, %v2155, %v2156
          %v2158 = vsel %vm1215, %v2152, %v2157
          %v2159 = vsel %vm1215, %v2154, %v2156
          %v2162 = vadd.f32 %v2143, %v2158
          %v2163 = vadd.f32 %v2144, %v2159
          %s2164 = sld [smem:[#allocation6 + $0x4c]]
          %v2165 = vstv %s2164
          %v2166 = vmul.f32 %v1668, %v2165
          %v2167 = vmul.f32 %v1669, %v2165
          %2170 = vrot.lane.b32.xlu0 %v2166, 56
          %v2171 = vpop.permute.xlu0 %2170
          %2172 = vrot.lane.b32.xlu0 %v2167, 56
          %v2173 = vpop.permute.xlu0 %2172
          %v2174 = vrot.slane %v2171, 4
          %v2175 = vrot.slane %v2173, 4
          %v2176 = vsel %vm238, %v2174, %v2175
          %v2177 = vsel %vm1235, %v2171, %v2176
          %v2178 = vsel %vm1235, %v2173, %v2175
          %v2181 = vadd.f32 %v2162, %v2177
          %v2182 = vadd.f32 %v2163, %v2178
          %s2183 = sld [smem:[#allocation6 + $0x4d]]
          %v2184 = vstv %s2183
          %v2185 = vmul.f32 %v1668, %v2184
          %v2186 = vmul.f32 %v1669, %v2184
          %2189 = vrot.lane.b32.xlu0 %v2185, 40
          %v2190 = vpop.permute.xlu0 %2189
          %2191 = vrot.lane.b32.xlu0 %v2186, 40
          %v2192 = vpop.permute.xlu0 %2191
          %v2193 = vrot.slane %v2190, 4
          %v2194 = vrot.slane %v2192, 4
          %v2195 = vsel %vm238, %v2193, %v2194
          %v2196 = vsel %vm1255, %v2190, %v2195
          %v2197 = vsel %vm1255, %v2192, %v2194
          %v2200 = vadd.f32 %v2181, %v2196
          %v2201 = vadd.f32 %v2182, %v2197
          %s2202 = sld [smem:[#allocation6 + $0x4e]]
          %v2203 = vstv %s2202
          %v2204 = vmul.f32 %v1668, %v2203
          %v2205 = vmul.f32 %v1669, %v2203
          %2208 = vrot.lane.b32.xlu0 %v2204, 39
          %v2209 = vpop.permute.xlu0 %2208
          %2210 = vrot.lane.b32.xlu0 %v2205, 39
          %v2211 = vpop.permute.xlu0 %2210
          %v2212 = vrot.slane %v2209, 4
          %v2213 = vrot.slane %v2211, 4
          %v2214 = vsel %vm238, %v2212, %v2213
          %v2215 = vsel %vm1275, %v2209, %v2214
          %v2216 = vsel %vm1275, %v2211, %v2213
          %v2219 = vadd.f32 %v2200, %v2215
          %v2220 = vadd.f32 %v2201, %v2216
          %s2221 = sld [smem:[#allocation6 + $0x4f]]
          %v2222 = vstv %s2221
          %v2223 = vmul.f32 %v1668, %v2222
          %v2224 = vmul.f32 %v1669, %v2222
          %2227 = vrot.lane.b32.xlu0 %v2223, 38
          %v2228 = vpop.permute.xlu0 %2227
          %2229 = vrot.lane.b32.xlu0 %v2224, 38
          %v2230 = vpop.permute.xlu0 %2229
          %v2231 = vrot.slane %v2228, 4
          %v2232 = vrot.slane %v2230, 4
          %v2233 = vsel %vm238, %v2231, %v2232
          %v2234 = vsel %vm1295, %v2228, %v2233
          %v2235 = vsel %vm1295, %v2230, %v2232
          %v2238 = vadd.f32 %v2219, %v2234
          %v2239 = vadd.f32 %v2220, %v2235
          %s2240 = sld [smem:[#allocation6 + $0x50]]
          %v2241 = vstv %s2240
          %v2242 = vmul.f32 %v1668, %v2241
          %v2243 = vmul.f32 %v1669, %v2241
          %2246 = vrot.lane.b32.xlu0 %v2242, 37
          %v2247 = vpop.permute.xlu0 %2246
          %2248 = vrot.lane.b32.xlu0 %v2243, 37
          %v2249 = vpop.permute.xlu0 %2248
          %v2250 = vrot.slane %v2247, 4
          %v2251 = vrot.slane %v2249, 4
          %v2252 = vsel %vm238, %v2250, %v2251
          %v2253 = vsel %vm1315, %v2247, %v2252
          %v2254 = vsel %vm1315, %v2249, %v2251
          %v2257 = vadd.f32 %v2238, %v2253
          %v2258 = vadd.f32 %v2239, %v2254
          %s2259 = sld [smem:[#allocation6 + $0x51]]
          %v2260 = vstv %s2259
          %v2261 = vmul.f32 %v1668, %v2260
          %v2262 = vmul.f32 %v1669, %v2260
          %2265 = vrot.lane.b32.xlu0 %v2261, 36
          %v2266 = vpop.permute.xlu0 %2265
          %2267 = vrot.lane.b32.xlu0 %v2262, 36
          %v2268 = vpop.permute.xlu0 %2267
          %v2269 = vrot.slane %v2266, 4
          %v2270 = vrot.slane %v2268, 4
          %v2271 = vsel %vm238, %v2269, %v2270
          %v2272 = vsel %vm1335, %v2266, %v2271
          %v2273 = vsel %vm1335, %v2268, %v2270
          %v2276 = vadd.f32 %v2257, %v2272
          %v2277 = vadd.f32 %v2258, %v2273
          %s2278 = sld [smem:[#allocation6 + $0x52]]
          %v2279 = vstv %s2278
          %v2280 = vmul.f32 %v1668, %v2279
          %v2281 = vmul.f32 %v1669, %v2279
          %2284 = vrot.lane.b32.xlu0 %v2280, 35
          %v2285 = vpop.permute.xlu0 %2284
          %2286 = vrot.lane.b32.xlu0 %v2281, 35
          %v2287 = vpop.permute.xlu0 %2286
          %v2288 = vrot.slane %v2285, 4
          %v2289 = vrot.slane %v2287, 4
          %v2290 = vsel %vm238, %v2288, %v2289
          %v2291 = vsel %vm1355, %v2285, %v2290
          %v2292 = vsel %vm1355, %v2287, %v2289
          %v2295 = vadd.f32 %v2276, %v2291
          %v2296 = vadd.f32 %v2277, %v2292
          %s2297 = sld [smem:[#allocation6 + $0x53]]
          %v2298 = vstv %s2297
          %v2299 = vmul.f32 %v1668, %v2298
          %v2300 = vmul.f32 %v1669, %v2298
          %2303 = vrot.lane.b32.xlu0 %v2299, 34
          %v2304 = vpop.permute.xlu0 %2303
          %2305 = vrot.lane.b32.xlu0 %v2300, 34
          %v2306 = vpop.permute.xlu0 %2305
          %v2307 = vrot.slane %v2304, 4
          %v2308 = vrot.slane %v2306, 4
          %v2309 = vsel %vm238, %v2307, %v2308
          %v2310 = vsel %vm1375, %v2304, %v2309
          %v2311 = vsel %vm1375, %v2306, %v2308
          %v2314 = vadd.f32 %v2295, %v2310
          %v2315 = vadd.f32 %v2296, %v2311
          %s2316 = sld [smem:[#allocation6 + $0x54]]
          %v2317 = vstv %s2316
          %v2318 = vmul.f32 %v1668, %v2317
          %v2319 = vmul.f32 %v1669, %v2317
          %2322 = vrot.lane.b32.xlu0 %v2318, 18
          %v2323 = vpop.permute.xlu0 %2322
          %2324 = vrot.lane.b32.xlu0 %v2319, 18
          %v2325 = vpop.permute.xlu0 %2324
          %v2326 = vrot.slane %v2323, 4
          %v2327 = vrot.slane %v2325, 4
          %v2328 = vsel %vm238, %v2326, %v2327
          %v2329 = vsel %vm1395, %v2323, %v2328
          %v2330 = vsel %vm1395, %v2325, %v2327
          %v2333 = vadd.f32 %v2314, %v2329
          %v2334 = vadd.f32 %v2315, %v2330
          %s2335 = sld [smem:[#allocation6 + $0x55]]
          %v2336 = vstv %s2335
          %v2337 = vmul.f32 %v1668, %v2336
          %v2338 = vmul.f32 %v1669, %v2336
          %2341 = vrot.lane.b32.xlu0 %v2337, 17
          %v2342 = vpop.permute.xlu0 %2341
          %2343 = vrot.lane.b32.xlu0 %v2338, 17
          %v2344 = vpop.permute.xlu0 %2343
          %v2345 = vrot.slane %v2342, 4
          %v2346 = vrot.slane %v2344, 4
          %v2347 = vsel %vm238, %v2345, %v2346
          %v2348 = vsel %vm1415, %v2342, %v2347
          %v2349 = vsel %vm1415, %v2344, %v2346
          %v2352 = vadd.f32 %v2333, %v2348
          %v2353 = vadd.f32 %v2334, %v2349
          %s2354 = sld [smem:[#allocation6 + $0x56]]
          %v2355 = vstv %s2354
          %v2356 = vmul.f32 %v1668, %v2355
          %v2357 = vmul.f32 %v1669, %v2355
          %2360 = vrot.lane.b32.xlu0 %v2356, 16
          %v2361 = vpop.permute.xlu0 %2360
          %2362 = vrot.lane.b32.xlu0 %v2357, 16
          %v2363 = vpop.permute.xlu0 %2362
          %v2364 = vrot.slane %v2361, 4
          %v2365 = vrot.slane %v2363, 4
          %v2366 = vsel %vm238, %v2364, %v2365
          %v2367 = vsel %vm1435, %v2361, %v2366
          %v2368 = vsel %vm1435, %v2363, %v2365
          %v2371 = vadd.f32 %v2352, %v2367
          %v2372 = vadd.f32 %v2353, %v2368
          %s2373 = sld [smem:[#allocation6 + $0x57]]
          %v2374 = vstv %s2373
          %v2375 = vmul.f32 %v1668, %v2374
          %v2376 = vmul.f32 %v1669, %v2374
          %2379 = vrot.lane.b32.xlu0 %v2375, 15
          %v2380 = vpop.permute.xlu0 %2379
          %2381 = vrot.lane.b32.xlu0 %v2376, 15
          %v2382 = vpop.permute.xlu0 %2381
          %v2383 = vrot.slane %v2380, 4
          %v2384 = vrot.slane %v2382, 4
          %v2385 = vsel %vm238, %v2383, %v2384
          %v2386 = vsel %vm1455, %v2380, %v2385
          %v2387 = vsel %vm1455, %v2382, %v2384
          %v2390 = vadd.f32 %v2371, %v2386
          %v2391 = vadd.f32 %v2372, %v2387
          %s2392 = sld [smem:[#allocation6 + $0x58]]
          %v2393 = vstv %s2392
          %v2394 = vmul.f32 %v1668, %v2393
          %v2395 = vmul.f32 %v1669, %v2393
          %2398 = vrot.lane.b32.xlu0 %v2394, 14
          %v2399 = vpop.permute.xlu0 %2398
          %2400 = vrot.lane.b32.xlu0 %v2395, 14
          %v2401 = vpop.permute.xlu0 %2400
          %v2402 = vrot.slane %v2399, 4
          %v2403 = vrot.slane %v2401, 4
          %v2404 = vsel %vm238, %v2402, %v2403
          %v2405 = vsel %vm1475, %v2399, %v2404
          %v2406 = vsel %vm1475, %v2401, %v2403
          %v2409 = vadd.f32 %v2390, %v2405
          %v2410 = vadd.f32 %v2391, %v2406
          %s2411 = sld [smem:[#allocation6 + $0x59]]
          %v2412 = vstv %s2411
          %v2413 = vmul.f32 %v1668, %v2412
          %v2414 = vmul.f32 %v1669, %v2412
          %2417 = vrot.lane.b32.xlu0 %v2413, 13
          %v2418 = vpop.permute.xlu0 %2417
          %2419 = vrot.lane.b32.xlu0 %v2414, 13
          %v2420 = vpop.permute.xlu0 %2419
          %v2421 = vrot.slane %v2418, 4
          %v2422 = vrot.slane %v2420, 4
          %v2423 = vsel %vm238, %v2421, %v2422
          %v2424 = vsel %vm1495, %v2418, %v2423
          %v2425 = vsel %vm1495, %v2420, %v2422
          %v2428 = vadd.f32 %v2409, %v2424
          %v2429 = vadd.f32 %v2410, %v2425
          %s2430 = sld [smem:[#allocation6 + $0x5a]]
          %v2431 = vstv %s2430
          %v2432 = vmul.f32 %v1668, %v2431
          %v2433 = vmul.f32 %v1669, %v2431
          %2436 = vrot.lane.b32.xlu0 %v2432, 12
          %v2437 = vpop.permute.xlu0 %2436
          %2438 = vrot.lane.b32.xlu0 %v2433, 12
          %v2439 = vpop.permute.xlu0 %2438
          %v2440 = vrot.slane %v2437, 4
          %v2441 = vrot.slane %v2439, 4
          %v2442 = vsel %vm238, %v2440, %v2441
          %v2443 = vsel %vm1515, %v2437, %v2442
          %v2444 = vsel %vm1515, %v2439, %v2441
          %v2447 = vadd.f32 %v2428, %v2443
          %v2448 = vadd.f32 %v2429, %v2444
          %v2449 = vld [vmem:[%s489 + $0x4] sm:$0xff]
          %v2450 = vld [vmem:[%s489 + $0xc] sm:$0xff]
          %s2451 = sld [smem:[#allocation6 + $0x5b]]
          %v2452 = vstv %s2451
          %v2453 = vmul.f32 %v2449, %v2452
          %v2454 = vmul.f32 %v2450, %v2452
          %2457 = vrot.lane.b32.xlu0 %v2453, 124
          %v2458 = vpop.permute.xlu0 %2457
          %2459 = vrot.lane.b32.xlu0 %v2454, 124
          %v2460 = vpop.permute.xlu0 %2459
          %v2461 = vrot.slane %v2458, 4
          %v2462 = vrot.slane %v2460, 4
          %v2463 = vsel %vm238, %v2461, %v2462
          %v2464 = vsel %vm776, %v2458, %v2463
          %v2465 = vsel %vm776, %v2460, %v2462
          %v2468 = vadd.f32 %v2447, %v2464
          %v2469 = vadd.f32 %v2448, %v2465
          %s2470 = sld [smem:[#allocation6 + $0x5c]]
          %v2471 = vstv %s2470
          %v2472 = vmul.f32 %v2449, %v2471
          %v2473 = vmul.f32 %v2450, %v2471
          %2476 = vrot.lane.b32.xlu0 %v2472, 123
          %v2477 = vpop.permute.xlu0 %2476
          %2478 = vrot.lane.b32.xlu0 %v2473, 123
          %v2479 = vpop.permute.xlu0 %2478
          %v2480 = vrot.slane %v2477, 4
          %v2481 = vrot.slane %v2479, 4
          %v2482 = vsel %vm238, %v2480, %v2481
          %v2483 = vsel %vm796, %v2477, %v2482
          %v2484 = vsel %vm796, %v2479, %v2481
          %v2487 = vadd.f32 %v2468, %v2483
          %v2488 = vadd.f32 %v2469, %v2484
          %s2489 = sld [smem:[#allocation6 + $0x5d]]
          %v2490 = vstv %s2489
          %v2491 = vmul.f32 %v2449, %v2490
          %v2492 = vmul.f32 %v2450, %v2490
          %2495 = vrot.lane.b32.xlu0 %v2491, 122
          %v2496 = vpop.permute.xlu0 %2495
          %2497 = vrot.lane.b32.xlu0 %v2492, 122
          %v2498 = vpop.permute.xlu0 %2497
          %v2499 = vrot.slane %v2496, 4
          %v2500 = vrot.slane %v2498, 4
          %v2501 = vsel %vm238, %v2499, %v2500
          %v2502 = vsel %vm816, %v2496, %v2501
          %v2503 = vsel %vm816, %v2498, %v2500
          %v2506 = vadd.f32 %v2487, %v2502
          %v2507 = vadd.f32 %v2488, %v2503
          %s2508 = sld [smem:[#allocation6 + $0x5e]]
          %v2509 = vstv %s2508
          %v2510 = vmul.f32 %v2449, %v2509
          %v2511 = vmul.f32 %v2450, %v2509
          %2514 = vrot.lane.b32.xlu0 %v2510, 121
          %v2515 = vpop.permute.xlu0 %2514
          %2516 = vrot.lane.b32.xlu0 %v2511, 121
          %v2517 = vpop.permute.xlu0 %2516
          %v2518 = vrot.slane %v2515, 4
          %v2519 = vrot.slane %v2517, 4
          %v2520 = vsel %vm238, %v2518, %v2519
          %v2521 = vsel %vm660, %v2515, %v2520
          %v2522 = vsel %vm660, %v2517, %v2519
          %v2525 = vadd.f32 %v2506, %v2521
          %v2526 = vadd.f32 %v2507, %v2522
          %s2527 = sld [smem:[#allocation6 + $0x5f]]
          %v2528 = vstv %s2527
          %v2529 = vmul.f32 %v2449, %v2528
          %v2530 = vmul.f32 %v2450, %v2528
          %2533 = vrot.lane.b32.xlu0 %v2529, 120
          %v2534 = vpop.permute.xlu0 %2533
          %2535 = vrot.lane.b32.xlu0 %v2530, 120
          %v2536 = vpop.permute.xlu0 %2535
          %v2537 = vrot.slane %v2534, 4
          %v2538 = vrot.slane %v2536, 4
          %v2539 = vsel %vm238, %v2537, %v2538
          %v2540 = vsel %vm1613, %v2534, %v2539
          %v2541 = vsel %vm1613, %v2536, %v2538
          %v2544 = vadd.f32 %v2525, %v2540
          %v2545 = vadd.f32 %v2526, %v2541
          %s2546 = sld [smem:[#allocation6 + $0x60]]
          %v2547 = vstv %s2546
          %v2548 = vmul.f32 %v2449, %v2547
          %v2549 = vmul.f32 %v2450, %v2547
          %2552 = vrot.lane.b32.xlu0 %v2548, 119
          %v2553 = vpop.permute.xlu0 %2552
          %2554 = vrot.lane.b32.xlu0 %v2549, 119
          %v2555 = vpop.permute.xlu0 %2554
          %v2556 = vrot.slane %v2553, 4
          %v2557 = vrot.slane %v2555, 4
          %v2558 = vsel %vm238, %v2556, %v2557
          %v2559 = vsel %vm1633, %v2553, %v2558
          %v2560 = vsel %vm1633, %v2555, %v2557
          %v2563 = vadd.f32 %v2544, %v2559
          %v2564 = vadd.f32 %v2545, %v2560
          %s2565 = sld [smem:[#allocation6 + $0x61]]
          %v2566 = vstv %s2565
          %v2567 = vmul.f32 %v2449, %v2566
          %v2568 = vmul.f32 %v2450, %v2566
          %2571 = vrot.lane.b32.xlu0 %v2567, 118
          %v2572 = vpop.permute.xlu0 %2571
          %2573 = vrot.lane.b32.xlu0 %v2568, 118
          %v2574 = vpop.permute.xlu0 %2573
          %v2575 = vrot.slane %v2572, 4
          %v2576 = vrot.slane %v2574, 4
          %v2577 = vsel %vm238, %v2575, %v2576
          %v2578 = vsel %vm1653, %v2572, %v2577
          %v2579 = vsel %vm1653, %v2574, %v2576
          %v2582 = vadd.f32 %v2563, %v2578
          %v2583 = vadd.f32 %v2564, %v2579
          %v2584 = vxor.u32 %v2582, 2147483648
          %v2585 = vxor.u32 %v2583, 2147483648
          %v2586 = vmul.f32 %v2584, 1.442695
          %v2587 = vpow.pop %v2586
          %v2588 = vmul.f32 %v2585, 1.442695
          %v2589 = vpow.pop %v2588
          %v2590 = vadd.f32 %v2587, 1.0
          %v2591 = vadd.f32 %v2589, 1.0
          %v2592 = vrcp.pop %v2590
          %v2593 = vmul.f32 1.0, %v2592
          %v2594 = vrcp.pop %v2591
          %v2595 = vmul.f32 1.0, %v2594
          %2596 = vst [vmem:[%s220] sm:$0xff] %v2593
          %2597 = vst [vmem:[%s220 + $0x8] sm:$0xf] %v2595
        $region52: #{tpu_custom_call.1} parent=31 // pred_fallthru
          _
        %s2598 = sand.u32 %s112, 1
        %s2599 = scalar_lea.sflag [#allocation8], %s2598
        %s2600 = sand.u32 %s112, 1
        %s2601 = smul.addr %s2600, 12
        %s2602 = scalar_lea.vmem [#allocation11], %s2601
        // Predicated region
        $region53: #{tpu_custom_call.1} parent=31 // pred_check
          %p2603 = pneg %p122
        $region54: #{tpu_custom_call.1} parent=31 // pred_check_branch
          %2605 = sbr.rel (%p2603) target = $region56
        $region55: #{tpu_custom_call.1} parent=31 // pred_region
          %s2607 = ssub.s32 192, 192
          %2608 = vsyncadd %s2599, %s2607
          %s2609 = smul.addr %s26, 3
          %s2610 = smul.addr %s2609, 64
          %s2611 = scalar_lea.hbm %s3, %s2610
          %s2613 = sshll.u32 %s2602, 4
          %s2614 = int_to_ptr.vmem [resolvable:$true] %s2613
          %2616 = dma.vmem_to_hbm [thread:$0]  %s2614, 192, %s2611, %s2599
        $region56: #{tpu_custom_call.1} parent=31 // pred_fallthru
          _
      $region32: #{tpu_custom_call.1} parent=5 // pred_fallthru
        _
      %p2617 = scmp.le.s32.totalorder 2, %s17
      // Predicated region
      $region57: #{tpu_custom_call.1} parent=5 // pred_check
        %p2618 = pneg %p2617
      $region58: #{tpu_custom_call.1} parent=5 // pred_check_branch
        %2620 = sbr.rel (%p2618) target = $region60
      $region59: #{tpu_custom_call.1} parent=5 // pred_region
        %s2621 = ssub.s32 %s17, 2
        // Predicated region
        $region61: #{tpu_custom_call.1} parent=59 // pred_check
          %p2622 = pneg %p128
        $region62: #{tpu_custom_call.1} parent=59 // pred_check_branch
          %2624 = sbr.rel (%p2622) target = $region64
        $region63: #{tpu_custom_call.1} parent=59 // pred_region
          %s2625 = sand.u32 %s113, 1
          %s2626 = scalar_lea.sflag [#allocation8], %s2625
          %s2627 = sand.u32 %s113, 1
          %s2628 = smul.addr %s2627, 12
          %s2629 = scalar_lea.vmem [#allocation11], %s2628
          %2630 = dma.done %s2626, 192
        $region64: #{tpu_custom_call.1} parent=59 // pred_fallthru
          _
      $region60: #{tpu_custom_call.1} parent=5 // pred_fallthru
        _
    $region6: #{tpu_custom_call.1} parent=1 // loop_footer
      %s21 = sadd.s32 1, %s17
    $region7: #{tpu_custom_call.1} parent=1 // loop_footer_branch
      %16 = sbr.rel target = $region3
    $region8: #{tpu_custom_call.1} parent=1 // loop_exit
      _
    %2631 = vsyncpa [#allocation7], 1
    %s2632 = scalar_lea.sflag [#allocation7], 1
    %2633 = vsyncpa %s2632, 1
    %2634 = vsyncpa [#allocation8], 1
    %s2635 = scalar_lea.sflag [#allocation8], 1
    %2636 = vsyncpa %s2635, 1
    %2637 = vsyncpa [#allocation9], 1
    %s2638 = scalar_lea.sflag [#allocation9], 1
    %2639 = vsyncpa %s2638, 1

</llo_original>
